<compile_context>
chip_gen: v6e
topology: v6e:2x2x1
jax: 0.10.0
libtpu: 0.0.40
codegen_flags: <defaults>
</compile_context>

<pallas_src>
import functools

import jax
import jax.numpy as jnp
import numpy as np
from jax.experimental import pallas as pl
from jax.experimental.pallas import tpu as pltpu

EPS = float(jnp.finfo(jnp.float32).eps)      # torch.finfo(torch.float32).eps
MAG_CLAMP = 1e-7
VMEM_LIMIT_BYTES = 48 * 1024 * 1024          # fits v5e/v6e scoped + v7x 64 MiB


def _round_up(x, m):
    return ((x + m - 1) // m) * m


# --------------------------------------------------------------------------
# Pallas kernel
# --------------------------------------------------------------------------
def _fold_rows(a, rows):
    """Sum a (rows, F) array to (8, F) using only sublane-aligned VPU adds."""
    acc = a[0:8]
    for r in range(8, rows, 8):
        acc = acc + a[r:r + 8]
    return acc


def _stft_loss_kernel(xy_ref, w_ref, d2_ref, y2_ref, lg_ref, *, row_tile, f_pad):
    @pl.when(pl.program_id(0) == 0)
    def _init():
        d2_ref[...] = jnp.zeros_like(d2_ref)
        y2_ref[...] = jnp.zeros_like(y2_ref)
        lg_ref[...] = jnp.zeros_like(lg_ref)

    # xy block = [x rows (row_tile) ; y rows (row_tile)] of windowed-frame LHS.
    # Single MXU matmul against resident [win*cos | win*sin]:
    # (2*row_tile, n_fft) @ (n_fft, 2*f_pad) -> f32 (2*row_tile, 2*f_pad)
    res = jnp.dot(xy_ref[...], w_ref[...], preferred_element_type=jnp.float32)
    re = res[:, :f_pad]
    im = res[:, f_pad:]
    power = jnp.maximum(re * re + im * im, MAG_CLAMP)        # (2*row_tile, f_pad)
    mag = jnp.sqrt(power)
    x_mag = mag[:row_tile]
    y_mag = mag[row_tile:]

    diff = y_mag - x_mag
    d2 = diff * diff
    y2 = power[row_tile:]                 # == y_mag**2 (clamped power)
    lg = jnp.abs(jnp.log(EPS + y_mag) - jnp.log(EPS + x_mag))

    d2_ref[...] += _fold_rows(d2, row_tile)
    y2_ref[...] += _fold_rows(y2, row_tile)
    lg_ref[...] += _fold_rows(lg, row_tile)


# --------------------------------------------------------------------------
# Host-side constants (numpy -> baked literals) and framing glue
# --------------------------------------------------------------------------
def _dft_weights(n_fft, win_length, f_pad, dtype):
    """(n_fft, 2*f_pad) = [hann*cos | hann*sin], F columns valid, rest zero."""
    F = n_fft // 2 + 1
    # periodic hann window of win_length, zero-padded (centered) to n_fft
    w = 0.5 - 0.5 * np.cos(2.0 * np.pi * np.arange(win_length) / win_length)
    win = np.zeros(n_fft, dtype=np.float64)
    left = (n_fft - win_length) // 2
    win[left:left + win_length] = w
    n = np.arange(n_fft, dtype=np.float64)[:, None]
    k = np.arange(F, dtype=np.float64)[None, :]
    phase = 2.0 * np.pi * n * k / n_fft          # float64: no int overflow
    out = np.zeros((n_fft, 2 * f_pad), dtype=np.float64)
    out[:, :F] = np.cos(phase) * win[:, None]
    out[:, f_pad:f_pad + F] = np.sin(phase) * win[:, None]   # sign irrelevant (|.|)
    return jnp.asarray(out, dtype=dtype)


def _frame_signal(x, n_fft, hop):
    # x: (B, C, T) -> frames (B*C*n_frames, n_fft); torch.stft center=True.
    # TODO(synk): frames are still materialized in HBM; an in-kernel DMA
    # gather from the reflect-padded signal would cut HBM traffic ~4-8x.
    B, C, T = x.shape
    pad = n_fft // 2
    xp = jnp.pad(x, ((0, 0), (0, 0), (pad, pad)), mode="reflect")
    n_frames = 1 + T // hop
    idx = jnp.arange(n_frames)[:, None] * hop + jnp.arange(n_fft)[None, :]
    frames = xp[:, :, idx]                       # (B, C, n_frames, n_fft)
    return frames.reshape(B * C * n_frames, n_fft)


def _stack_and_pad(xf, yf, row_tile, dtype):
    """Interleave x/y frames per row-tile -> (num_tiles*2*row_tile, n_fft)."""
    N, n_fft = xf.shape
    num_tiles = max(1, -(-N // row_tile))
    n_pad = num_tiles * row_tile
    pad_rows = n_pad - N
    xf = jnp.pad(xf, ((0, pad_rows), (0, 0)))
    yf = jnp.pad(yf, ((0, pad_rows), (0, 0)))
    x3 = xf.reshape(num_tiles, row_tile, n_fft)
    y3 = yf.reshape(num_tiles, row_tile, n_fft)
    xy = jnp.stack([x3, y3], axis=1).reshape(num_tiles * 2 * row_tile, n_fft)
    return xy.astype(dtype), num_tiles, n_pad


# --------------------------------------------------------------------------
# Per-resolution STFT losses: Pallas path and pure-JAX reference path
# --------------------------------------------------------------------------
def stft_losses_pallas(x, y, n_fft, hop, win_length, *, row_tile=256,
                       matmul_dtype=jnp.bfloat16):
    assert row_tile % 8 == 0
    F = n_fft // 2 + 1
    f_pad = _round_up(F, 128)                    # lane-dense MXU output

    xf = _frame_signal(x, n_fft, hop)
    yf = _frame_signal(y, n_fft, hop)
    N = xf.shape[0]
    xy, num_tiles, n_pad = _stack_and_pad(xf, yf, row_tile, matmul_dtype)
    w = _dft_weights(n_fft, win_length, f_pad, matmul_dtype)

    kernel = functools.partial(_stft_loss_kernel, row_tile=row_tile, f_pad=f_pad)
    d2, y2, lg = pl.pallas_call(
        kernel,
        grid=(num_tiles,),
        in_specs=[
            pl.BlockSpec((2 * row_tile, n_fft), lambda i: (i, 0)),
            pl.BlockSpec((n_fft, 2 * f_pad), lambda i: (0, 0)),   # resident
        ],
        out_specs=[pl.BlockSpec((8, f_pad), lambda i: (0, 0))] * 3,
        out_shape=[jax.ShapeDtypeStruct((8, f_pad), jnp.float32)] * 3,
        compiler_params=pltpu.CompilerParams(
            dimension_semantics=("arbitrary",),
            vmem_limit_bytes=VMEM_LIMIT_BYTES),
    )(xy, w)

    sum_d2 = jnp.sum(d2)
    # exact clamp bias from padded rows/columns in the ||y||^2 sum
    pad_cells = n_pad * f_pad - N * F
    sum_y2 = jnp.sum(y2) - MAG_CLAMP * pad_cells
    sum_lg = jnp.sum(lg)

    sc_loss = jnp.sqrt(sum_d2) / (jnp.sqrt(sum_y2) + EPS)
    mag_loss = sum_lg / (N * F)
    return sc_loss, mag_loss


def stft_losses_ref(x, y, n_fft, hop, win_length, *, matmul_dtype=jnp.bfloat16,
                    **_unused):
    F = n_fft // 2 + 1
    f_pad = _round_up(F, 128)
    w = _dft_weights(n_fft, win_length, f_pad, matmul_dtype)
    cosm = w[:, :F]
    sinm = w[:, f_pad:f_pad + F]
    xf = _frame_signal(x, n_fft, hop).astype(matmul_dtype)
    yf = _frame_signal(y, n_fft, hop).astype(matmul_dtype)
    xr = jnp.dot(xf, cosm, preferred_element_type=jnp.float32)
    xi = jnp.dot(xf, sinm, preferred_element_type=jnp.float32)
    yr = jnp.dot(yf, cosm, preferred_element_type=jnp.float32)
    yi = jnp.dot(yf, sinm, preferred_element_type=jnp.float32)
    x_mag = jnp.sqrt(jnp.maximum(xr * xr + xi * xi, MAG_CLAMP))
    y_mag = jnp.sqrt(jnp.maximum(yr * yr + yi * yi, MAG_CLAMP))
    sc = jnp.linalg.norm(y_mag - x_mag) / (jnp.linalg.norm(y_mag) + EPS)
    mag = jnp.mean(jnp.abs(jnp.log(EPS + y_mag) - jnp.log(EPS + x_mag)))
    return sc, mag


# --------------------------------------------------------------------------
# MRSTFTLoss.forward
# --------------------------------------------------------------------------
def mrstft_loss(output_audio, predicted_audio, n_ffts, hop_lengths, win_lengths,
                factor_sc=0.1, factor_mag=0.1, per_res_fn=stft_losses_pallas,
                **per_res_kwargs):
    # TODO(synk): reconstruct_audio is undefined in the reference; treated as identity.
    x = output_audio[None, ...]       # (1, C, T) -- the .unsqueeze(0) in forward
    y = predicted_audio[None, ...]

    sc_loss = jnp.zeros((1,), jnp.float32)
    mag_loss = jnp.zeros((1,), jnp.float32)
    for nf, hp, wl in zip(n_ffts, hop_lengths, win_lengths):
        sc_l, mag_l = per_res_fn(x, y, nf, hp, wl, **per_res_kwargs)
        sc_loss = sc_loss + sc_l
        mag_loss = mag_loss + mag_l
    sc_loss = sc_loss / len(n_ffts)
    mag_loss = mag_loss / len(n_ffts)
    return {"loss": factor_sc * sc_loss + factor_mag * mag_loss}


# --------------------------------------------------------------------------
if __name__ == "__main__":
    key = jax.random.PRNGKey(0)
    k1, k2 = jax.random.split(key)

    # small, module-consistent shapes: 2-channel audio of 4096 samples
    C, T = 2, 4096
    output_audio = jax.random.normal(k1, (C, T), jnp.float32)
    predicted_audio = output_audio + 0.1 * jax.random.normal(k2, (C, T), jnp.float32)

    # scaled-down multi-resolution config (same structure as the defaults)
    n_ffts = (256, 512, 128)
    hop_lengths = (64, 128, 32)
    win_lengths = (192, 384, 96)

    # jit the whole multi-resolution loss; row_tile=64 exercises multi-tile grids
    loss_fn = jax.jit(lambda a, b: mrstft_loss(
        a, b, n_ffts, hop_lengths, win_lengths,
        per_res_fn=stft_losses_pallas, row_tile=64))
    out = loss_fn(output_audio, predicted_audio)
    loss = jax.block_until_ready(out["loss"])
    assert loss.shape == (1,) and loss.dtype == jnp.float32

    # 1) check against a pure-JAX reference at matched (bf16-matmul) precision
    ref = mrstft_loss(output_audio, predicted_audio, n_ffts, hop_lengths,
                      win_lengths, per_res_fn=stft_losses_ref)["loss"]
    ref = jax.block_until_ready(ref)
    assert jnp.allclose(loss, ref, rtol=2e-3, atol=1e-5), (loss, ref)

    # 2) loose check against the full-f32 reference (bf16 MXU perturbation only)
    ref32 = mrstft_loss(output_audio, predicted_audio, n_ffts, hop_lengths,
                        win_lengths, per_res_fn=stft_losses_ref,
                        matmul_dtype=jnp.float32)["loss"]
    ref32 = jax.block_until_ready(ref32)
    assert jnp.allclose(loss, ref32, rtol=1e-1, atol=1e-4), (loss, ref32)

    print("KERNEL_OK")
</pallas_src>

<mosaic_0001>
module attributes {stable_mosaic.version = 11 : i64} {
  func.func @_stft_loss_kernel(%arg0: i32, %arg1: memref<128x512xbf16, #tpu.memory_space<vmem>>, %arg2: memref<512x768xbf16, #tpu.memory_space<vmem>>, %arg3: memref<8x384xf32, #tpu.memory_space<vmem>>, %arg4: memref<8x384xf32, #tpu.memory_space<vmem>>, %arg5: memref<8x384xf32, #tpu.memory_space<vmem>>) attributes {dimension_semantics = [#tpu.dimension_semantics<arbitrary>], iteration_bounds = array<i64: 2>, scalar_prefetch = 0 : i64, scratch_operands = 0 : i64, tpu.core_type = #tpu.core_type<tc>, window_params = [{transform_indices = @transform_0, window_bounds = array<i64: 128, 512>}, {pipeline_mode = #tpu.pipeline_mode<synchronous>, transform_indices = @transform_1, window_bounds = array<i64: 512, 768>}, {pipeline_mode = #tpu.pipeline_mode<synchronous>, transform_indices = @transform_2, window_bounds = array<i64: 8, 384>}, {pipeline_mode = #tpu.pipeline_mode<synchronous>, transform_indices = @transform_3, window_bounds = array<i64: 8, 384>}, {pipeline_mode = #tpu.pipeline_mode<synchronous>, transform_indices = @transform_4, window_bounds = array<i64: 8, 384>}]} {
    %c0_i32 = arith.constant 0 : i32
    %0 = arith.cmpi eq, %arg0, %c0_i32 : i32
    %1 = arith.extui %0 : i1 to i32
    %c0_i32_0 = arith.constant 0 : i32
    %2 = arith.cmpi ne, %1, %c0_i32_0 : i32
    scf.if %2 {
      %cst_19 = arith.constant 0.000000e+00 : f32
      %81 = vector.broadcast %cst_19 : f32 to vector<8x384xf32>
      %c0_20 = arith.constant 0 : index
      %c0_21 = arith.constant 0 : index
      %82 = vector.load %arg3[%c0_20, %c0_21] : memref<8x384xf32, #tpu.memory_space<vmem>>, vector<8x384xf32>
      tpu.vector_store %arg3[%c0_20, %c0_21], %81 {strides = array<i32>} : memref<8x384xf32, #tpu.memory_space<vmem>>, vector<8x384xf32>,
      %cst_22 = arith.constant 0.000000e+00 : f32
      %83 = vector.broadcast %cst_22 : f32 to vector<8x384xf32>
      %c0_23 = arith.constant 0 : index
      %c0_24 = arith.constant 0 : index
      %84 = vector.load %arg4[%c0_23, %c0_24] : memref<8x384xf32, #tpu.memory_space<vmem>>, vector<8x384xf32>
      tpu.vector_store %arg4[%c0_23, %c0_24], %83 {strides = array<i32>} : memref<8x384xf32, #tpu.memory_space<vmem>>, vector<8x384xf32>,
      %cst_25 = arith.constant 0.000000e+00 : f32
      %85 = vector.broadcast %cst_25 : f32 to vector<8x384xf32>
      %c0_26 = arith.constant 0 : index
      %c0_27 = arith.constant 0 : index
      %86 = vector.load %arg5[%c0_26, %c0_27] : memref<8x384xf32, #tpu.memory_space<vmem>>, vector<8x384xf32>
      tpu.vector_store %arg5[%c0_26, %c0_27], %85 {strides = array<i32>} : memref<8x384xf32, #tpu.memory_space<vmem>>, vector<8x384xf32>,
    } else {
    }
    %c0 = arith.constant 0 : index
    %c0_1 = arith.constant 0 : index
    %3 = vector.load %arg1[%c0, %c0_1] : memref<128x512xbf16, #tpu.memory_space<vmem>>, vector<128x512xbf16>
    %c0_2 = arith.constant 0 : index
    %c0_3 = arith.constant 0 : index
    %4 = vector.load %arg2[%c0_2, %c0_3] : memref<512x768xbf16, #tpu.memory_space<vmem>>, vector<512x768xbf16>
    %cst = arith.constant dense<0.000000e+00> : vector<128x768xf32>
    %5 = tpu.matmul %3, %4, %cst {dimension_numbers = #tpu.dot_dimension_numbers<[1], [0], [0], [1], [0, 0, 1, 1], [], []>} : vector<128x512xbf16>, vector<512x768xbf16>, vector<128x768xf32> -> vector<128x768xf32>
    %6 = vector.extract_strided_slice %5 {offsets = [0, 0], sizes = [128, 384], strides = [1, 1]} : vector<128x768xf32> to vector<128x384xf32>
    %7 = vector.extract_strided_slice %5 {offsets = [0, 384], sizes = [128, 384], strides = [1, 1]} : vector<128x768xf32> to vector<128x384xf32>
    %8 = arith.mulf %6, %6 : vector<128x384xf32>
    %9 = arith.mulf %7, %7 : vector<128x384xf32>
    %10 = arith.addf %8, %9 : vector<128x384xf32>
    %cst_4 = arith.constant 1.000000e-07 : f32
    %11 = vector.broadcast %cst_4 : f32 to vector<128x384xf32>
    %12 = arith.maximumf %10, %11 : vector<128x384xf32>
    %13 = math.sqrt %12 : vector<128x384xf32>
    %14 = vector.extract_strided_slice %13 {offsets = [0, 0], sizes = [64, 384], strides = [1, 1]} : vector<128x384xf32> to vector<64x384xf32>
    %15 = vector.extract_strided_slice %13 {offsets = [64, 0], sizes = [64, 384], strides = [1, 1]} : vector<128x384xf32> to vector<64x384xf32>
    %16 = arith.subf %15, %14 : vector<64x384xf32>
    %17 = arith.mulf %16, %16 : vector<64x384xf32>
    %18 = vector.extract_strided_slice %12 {offsets = [64, 0], sizes = [64, 384], strides = [1, 1]} : vector<128x384xf32> to vector<64x384xf32>
    %cst_5 = arith.constant 1.1920929E-7 : f32
    %19 = vector.broadcast %cst_5 : f32 to vector<64x384xf32>
    %20 = arith.addf %19, %15 : vector<64x384xf32>
    %21 = math.log %20 : vector<64x384xf32>
    %cst_6 = arith.constant 1.1920929E-7 : f32
    %22 = vector.broadcast %cst_6 : f32 to vector<64x384xf32>
    %23 = arith.addf %22, %14 : vector<64x384xf32>
    %24 = math.log %23 : vector<64x384xf32>
    %25 = arith.subf %21, %24 : vector<64x384xf32>
    %26 = math.absf %25 : vector<64x384xf32>
    %c0_7 = arith.constant 0 : index
    %c0_8 = arith.constant 0 : index
    %27 = vector.load %arg3[%c0_7, %c0_8] : memref<8x384xf32, #tpu.memory_space<vmem>>, vector<8x384xf32>
    %28 = vector.extract_strided_slice %17 {offsets = [0, 0], sizes = [8, 384], strides = [1, 1]} : vector<64x384xf32> to vector<8x384xf32>
    %29 = vector.extract_strided_slice %17 {offsets = [8, 0], sizes = [8, 384], strides = [1, 1]} : vector<64x384xf32> to vector<8x384xf32>
    %30 = arith.addf %28, %29 : vector<8x384xf32>
    %31 = vector.extract_strided_slice %17 {offsets = [16, 0], sizes = [8, 384], strides = [1, 1]} : vector<64x384xf32> to vector<8x384xf32>
    %32 = arith.addf %30, %31 : vector<8x384xf32>
    %33 = vector.extract_strided_slice %17 {offsets = [24, 0], sizes = [8, 384], strides = [1, 1]} : vector<64x384xf32> to vector<8x384xf32>
    %34 = arith.addf %32, %33 : vector<8x384xf32>
    %35 = vector.extract_strided_slice %17 {offsets = [32, 0], sizes = [8, 384], strides = [1, 1]} : vector<64x384xf32> to vector<8x384xf32>
    %36 = arith.addf %34, %35 : vector<8x384xf32>
    %37 = vector.extract_strided_slice %17 {offsets = [40, 0], sizes = [8, 384], strides = [1, 1]} : vector<64x384xf32> to vector<8x384xf32>
    %38 = arith.addf %36, %37 : vector<8x384xf32>
    %39 = vector.extract_strided_slice %17 {offsets = [48, 0], sizes = [8, 384], strides = [1, 1]} : vector<64x384xf32> to vector<8x384xf32>
    %40 = arith.addf %38, %39 : vector<8x384xf32>
    %41 = vector.extract_strided_slice %17 {offsets = [56, 0], sizes = [8, 384], strides = [1, 1]} : vector<64x384xf32> to vector<8x384xf32>
    %42 = arith.addf %40, %41 : vector<8x384xf32>
    %43 = arith.addf %27, %42 : vector<8x384xf32>
    %c0_9 = arith.constant 0 : index
    %c0_10 = arith.constant 0 : index
    %44 = vector.load %arg3[%c0_9, %c0_10] : memref<8x384xf32, #tpu.memory_space<vmem>>, vector<8x384xf32>
    tpu.vector_store %arg3[%c0_9, %c0_10], %43 {strides = array<i32>} : memref<8x384xf32, #tpu.memory_space<vmem>>, vector<8x384xf32>,
    %c0_11 = arith.constant 0 : index
    %c0_12 = arith.constant 0 : index
    %45 = vector.load %arg4[%c0_11, %c0_12] : memref<8x384xf32, #tpu.memory_space<vmem>>, vector<8x384xf32>
    %46 = vector.extract_strided_slice %18 {offsets = [0, 0], sizes = [8, 384], strides = [1, 1]} : vector<64x384xf32> to vector<8x384xf32>
    %47 = vector.extract_strided_slice %18 {offsets = [8, 0], sizes = [8, 384], strides = [1, 1]} : vector<64x384xf32> to vector<8x384xf32>
    %48 = arith.addf %46, %47 : vector<8x384xf32>
    %49 = vector.extract_strided_slice %18 {offsets = [16, 0], sizes = [8, 384], strides = [1, 1]} : vector<64x384xf32> to vector<8x384xf32>
    %50 = arith.addf %48, %49 : vector<8x384xf32>
    %51 = vector.extract_strided_slice %18 {offsets = [24, 0], sizes = [8, 384], strides = [1, 1]} : vector<64x384xf32> to vector<8x384xf32>
    %52 = arith.addf %50, %51 : vector<8x384xf32>
    %53 = vector.extract_strided_slice %18 {offsets = [32, 0], sizes = [8, 384], strides = [1, 1]} : vector<64x384xf32> to vector<8x384xf32>
    %54 = arith.addf %52, %53 : vector<8x384xf32>
    %55 = vector.extract_strided_slice %18 {offsets = [40, 0], sizes = [8, 384], strides = [1, 1]} : vector<64x384xf32> to vector<8x384xf32>
    %56 = arith.addf %54, %55 : vector<8x384xf32>
    %57 = vector.extract_strided_slice %18 {offsets = [48, 0], sizes = [8, 384], strides = [1, 1]} : vector<64x384xf32> to vector<8x384xf32>
    %58 = arith.addf %56, %57 : vector<8x384xf32>
    %59 = vector.extract_strided_slice %18 {offsets = [56, 0], sizes = [8, 384], strides = [1, 1]} : vector<64x384xf32> to vector<8x384xf32>
    %60 = arith.addf %58, %59 : vector<8x384xf32>
    %61 = arith.addf %45, %60 : vector<8x384xf32>
    %c0_13 = arith.constant 0 : index
    %c0_14 = arith.constant 0 : index
    %62 = vector.load %arg4[%c0_13, %c0_14] : memref<8x384xf32, #tpu.memory_space<vmem>>, vector<8x384xf32>
    tpu.vector_store %arg4[%c0_13, %c0_14], %61 {strides = array<i32>} : memref<8x384xf32, #tpu.memory_space<vmem>>, vector<8x384xf32>,
    %c0_15 = arith.constant 0 : index
    %c0_16 = arith.constant 0 : index
    %63 = vector.load %arg5[%c0_15, %c0_16] : memref<8x384xf32, #tpu.memory_space<vmem>>, vector<8x384xf32>
    %64 = vector.extract_strided_slice %26 {offsets = [0, 0], sizes = [8, 384], strides = [1, 1]} : vector<64x384xf32> to vector<8x384xf32>
    %65 = vector.extract_strided_slice %26 {offsets = [8, 0], sizes = [8, 384], strides = [1, 1]} : vector<64x384xf32> to vector<8x384xf32>
    %66 = arith.addf %64, %65 : vector<8x384xf32>
    %67 = vector.extract_strided_slice %26 {offsets = [16, 0], sizes = [8, 384], strides = [1, 1]} : vector<64x384xf32> to vector<8x384xf32>
    %68 = arith.addf %66, %67 : vector<8x384xf32>
    %69 = vector.extract_strided_slice %26 {offsets = [24, 0], sizes = [8, 384], strides = [1, 1]} : vector<64x384xf32> to vector<8x384xf32>
    %70 = arith.addf %68, %69 : vector<8x384xf32>
    %71 = vector.extract_strided_slice %26 {offsets = [32, 0], sizes = [8, 384], strides = [1, 1]} : vector<64x384xf32> to vector<8x384xf32>
    %72 = arith.addf %70, %71 : vector<8x384xf32>
    %73 = vector.extract_strided_slice %26 {offsets = [40, 0], sizes = [8, 384], strides = [1, 1]} : vector<64x384xf32> to vector<8x384xf32>
    %74 = arith.addf %72, %73 : vector<8x384xf32>
    %75 = vector.extract_strided_slice %26 {offsets = [48, 0], sizes = [8, 384], strides = [1, 1]} : vector<64x384xf32> to vector<8x384xf32>
    %76 = arith.addf %74, %75 : vector<8x384xf32>
    %77 = vector.extract_strided_slice %26 {offsets = [56, 0], sizes = [8, 384], strides = [1, 1]} : vector<64x384xf32> to vector<8x384xf32>
    %78 = arith.addf %76, %77 : vector<8x384xf32>
    %79 = arith.addf %63, %78 : vector<8x384xf32>
    %c0_17 = arith.constant 0 : index
    %c0_18 = arith.constant 0 : index
    %80 = vector.load %arg5[%c0_17, %c0_18] : memref<8x384xf32, #tpu.memory_space<vmem>>, vector<8x384xf32>
    tpu.vector_store %arg5[%c0_17, %c0_18], %79 {strides = array<i32>} : memref<8x384xf32, #tpu.memory_space<vmem>>, vector<8x384xf32>,
    return
  }
  func.func @transform_0(%arg0: i32) -> (i32, i32) {
    %c0_i32 = arith.constant 0 : i32
    %c0_i32_0 = arith.constant 0 : i32
    return %arg0, %c0_i32 : i32, i32
  }
  func.func @transform_1(%arg0: i32) -> (i32, i32) {
    %c0_i32 = arith.constant 0 : i32
    %c0_i32_0 = arith.constant 0 : i32
    %c0_i32_1 = arith.constant 0 : i32
    return %c0_i32, %c0_i32_0 : i32, i32
  }
  func.func @transform_2(%arg0: i32) -> (i32, i32) {
    %c0_i32 = arith.constant 0 : i32
    %c0_i32_0 = arith.constant 0 : i32
    %c0_i32_1 = arith.constant 0 : i32
    return %c0_i32, %c0_i32_0 : i32, i32
  }
  func.func @transform_3(%arg0: i32) -> (i32, i32) {
    %c0_i32 = arith.constant 0 : i32
    %c0_i32_0 = arith.constant 0 : i32
    %c0_i32_1 = arith.constant 0 : i32
    return %c0_i32, %c0_i32_0 : i32, i32
  }
  func.func @transform_4(%arg0: i32) -> (i32, i32) {
    %c0_i32 = arith.constant 0 : i32
    %c0_i32_0 = arith.constant 0 : i32
    %c0_i32_1 = arith.constant 0 : i32
    return %c0_i32, %c0_i32_0 : i32, i32
  }
}

module attributes {stable_mosaic.version = 11 : i64} {
  func.func @_stft_loss_kernel(%arg0: i32, %arg1: memref<128x256xbf16, #tpu.memory_space<vmem>>, %arg2: memref<256x512xbf16, #tpu.memory_space<vmem>>, %arg3: memref<8x256xf32, #tpu.memory_space<vmem>>, %arg4: memref<8x256xf32, #tpu.memory_space<vmem>>, %arg5: memref<8x256xf32, #tpu.memory_space<vmem>>) attributes {dimension_semantics = [#tpu.dimension_semantics<arbitrary>], iteration_bounds = array<i64: 3>, scalar_prefetch = 0 : i64, scratch_operands = 0 : i64, tpu.core_type = #tpu.core_type<tc>, window_params = [{transform_indices = @transform_0, window_bounds = array<i64: 128, 256>}, {pipeline_mode = #tpu.pipeline_mode<synchronous>, transform_indices = @transform_1, window_bounds = array<i64: 256, 512>}, {pipeline_mode = #tpu.pipeline_mode<synchronous>, transform_indices = @transform_2, window_bounds = array<i64: 8, 256>}, {pipeline_mode = #tpu.pipeline_mode<synchronous>, transform_indices = @transform_3, window_bounds = array<i64: 8, 256>}, {pipeline_mode = #tpu.pipeline_mode<synchronous>, transform_indices = @transform_4, window_bounds = array<i64: 8, 256>}]} {
    %c0_i32 = arith.constant 0 : i32
    %0 = arith.cmpi eq, %arg0, %c0_i32 : i32
    %1 = arith.extui %0 : i1 to i32
    %c0_i32_0 = arith.constant 0 : i32
    %2 = arith.cmpi ne, %1, %c0_i32_0 : i32
    scf.if %2 {
      %cst_19 = arith.constant 0.000000e+00 : f32
      %81 = vector.broadcast %cst_19 : f32 to vector<8x256xf32>
      %c0_20 = arith.constant 0 : index
      %c0_21 = arith.constant 0 : index
      %82 = vector.load %arg3[%c0_20, %c0_21] : memref<8x256xf32, #tpu.memory_space<vmem>>, vector<8x256xf32>
      tpu.vector_store %arg3[%c0_20, %c0_21], %81 {strides = array<i32>} : memref<8x256xf32, #tpu.memory_space<vmem>>, vector<8x256xf32>,
      %cst_22 = arith.constant 0.000000e+00 : f32
      %83 = vector.broadcast %cst_22 : f32 to vector<8x256xf32>
      %c0_23 = arith.constant 0 : index
      %c0_24 = arith.constant 0 : index
      %84 = vector.load %arg4[%c0_23, %c0_24] : memref<8x256xf32, #tpu.memory_space<vmem>>, vector<8x256xf32>
      tpu.vector_store %arg4[%c0_23, %c0_24], %83 {strides = array<i32>} : memref<8x256xf32, #tpu.memory_space<vmem>>, vector<8x256xf32>,
      %cst_25 = arith.constant 0.000000e+00 : f32
      %85 = vector.broadcast %cst_25 : f32 to vector<8x256xf32>
      %c0_26 = arith.constant 0 : index
      %c0_27 = arith.constant 0 : index
      %86 = vector.load %arg5[%c0_26, %c0_27] : memref<8x256xf32, #tpu.memory_space<vmem>>, vector<8x256xf32>
      tpu.vector_store %arg5[%c0_26, %c0_27], %85 {strides = array<i32>} : memref<8x256xf32, #tpu.memory_space<vmem>>, vector<8x256xf32>,
    } else {
    }
    %c0 = arith.constant 0 : index
    %c0_1 = arith.constant 0 : index
    %3 = vector.load %arg1[%c0, %c0_1] : memref<128x256xbf16, #tpu.memory_space<vmem>>, vector<128x256xbf16>
    %c0_2 = arith.constant 0 : index
    %c0_3 = arith.constant 0 : index
    %4 = vector.load %arg2[%c0_2, %c0_3] : memref<256x512xbf16, #tpu.memory_space<vmem>>, vector<256x512xbf16>
    %cst = arith.constant dense<0.000000e+00> : vector<128x512xf32>
    %5 = tpu.matmul %3, %4, %cst {dimension_numbers = #tpu.dot_dimension_numbers<[1], [0], [0], [1], [0, 0, 1, 1], [], []>} : vector<128x256xbf16>, vector<256x512xbf16>, vector<128x512xf32> -> vector<128x512xf32>
    %6 = vector.extract_strided_slice %5 {offsets = [0, 0], sizes = [128, 256], strides = [1, 1]} : vector<128x512xf32> to vector<128x256xf32>
    %7 = vector.extract_strided_slice %5 {offsets = [0, 256], sizes = [128, 256], strides = [1, 1]} : vector<128x512xf32> to vector<128x256xf32>
    %8 = arith.mulf %6, %6 : vector<128x256xf32>
    %9 = arith.mulf %7, %7 : vector<128x256xf32>
    %10 = arith.addf %8, %9 : vector<128x256xf32>
    %cst_4 = arith.constant 1.000000e-07 : f32
    %11 = vector.broadcast %cst_4 : f32 to vector<128x256xf32>
    %12 = arith.maximumf %10, %11 : vector<128x256xf32>
    %13 = math.sqrt %12 : vector<128x256xf32>
    %14 = vector.extract_strided_slice %13 {offsets = [0, 0], sizes = [64, 256], strides = [1, 1]} : vector<128x256xf32> to vector<64x256xf32>
    %15 = vector.extract_strided_slice %13 {offsets = [64, 0], sizes = [64, 256], strides = [1, 1]} : vector<128x256xf32> to vector<64x256xf32>
    %16 = arith.subf %15, %14 : vector<64x256xf32>
    %17 = arith.mulf %16, %16 : vector<64x256xf32>
    %18 = vector.extract_strided_slice %12 {offsets = [64, 0], sizes = [64, 256], strides = [1, 1]} : vector<128x256xf32> to vector<64x256xf32>
    %cst_5 = arith.constant 1.1920929E-7 : f32
    %19 = vector.broadcast %cst_5 : f32 to vector<64x256xf32>
    %20 = arith.addf %19, %15 : vector<64x256xf32>
    %21 = math.log %20 : vector<64x256xf32>
    %cst_6 = arith.constant 1.1920929E-7 : f32
    %22 = vector.broadcast %cst_6 : f32 to vector<64x256xf32>
    %23 = arith.addf %22, %14 : vector<64x256xf32>
    %24 = math.log %23 : vector<64x256xf32>
    %25 = arith.subf %21, %24 : vector<64x256xf32>
    %26 = math.absf %25 : vector<64x256xf32>
    %c0_7 = arith.constant 0 : index
    %c0_8 = arith.constant 0 : index
    %27 = vector.load %arg3[%c0_7, %c0_8] : memref<8x256xf32, #tpu.memory_space<vmem>>, vector<8x256xf32>
    %28 = vector.extract_strided_slice %17 {offsets = [0, 0], sizes = [8, 256], strides = [1, 1]} : vector<64x256xf32> to vector<8x256xf32>
    %29 = vector.extract_strided_slice %17 {offsets = [8, 0], sizes = [8, 256], strides = [1, 1]} : vector<64x256xf32> to vector<8x256xf32>
    %30 = arith.addf %28, %29 : vector<8x256xf32>
    %31 = vector.extract_strided_slice %17 {offsets = [16, 0], sizes = [8, 256], strides = [1, 1]} : vector<64x256xf32> to vector<8x256xf32>
    %32 = arith.addf %30, %31 : vector<8x256xf32>
    %33 = vector.extract_strided_slice %17 {offsets = [24, 0], sizes = [8, 256], strides = [1, 1]} : vector<64x256xf32> to vector<8x256xf32>
    %34 = arith.addf %32, %33 : vector<8x256xf32>
    %35 = vector.extract_strided_slice %17 {offsets = [32, 0], sizes = [8, 256], strides = [1, 1]} : vector<64x256xf32> to vector<8x256xf32>
    %36 = arith.addf %34, %35 : vector<8x256xf32>
    %37 = vector.extract_strided_slice %17 {offsets = [40, 0], sizes = [8, 256], strides = [1, 1]} : vector<64x256xf32> to vector<8x256xf32>
    %38 = arith.addf %36, %37 : vector<8x256xf32>
    %39 = vector.extract_strided_slice %17 {offsets = [48, 0], sizes = [8, 256], strides = [1, 1]} : vector<64x256xf32> to vector<8x256xf32>
    %40 = arith.addf %38, %39 : vector<8x256xf32>
    %41 = vector.extract_strided_slice %17 {offsets = [56, 0], sizes = [8, 256], strides = [1, 1]} : vector<64x256xf32> to vector<8x256xf32>
    %42 = arith.addf %40, %41 : vector<8x256xf32>
    %43 = arith.addf %27, %42 : vector<8x256xf32>
    %c0_9 = arith.constant 0 : index
    %c0_10 = arith.constant 0 : index
    %44 = vector.load %arg3[%c0_9, %c0_10] : memref<8x256xf32, #tpu.memory_space<vmem>>, vector<8x256xf32>
    tpu.vector_store %arg3[%c0_9, %c0_10], %43 {strides = array<i32>} : memref<8x256xf32, #tpu.memory_space<vmem>>, vector<8x256xf32>,
    %c0_11 = arith.constant 0 : index
    %c0_12 = arith.constant 0 : index
    %45 = vector.load %arg4[%c0_11, %c0_12] : memref<8x256xf32, #tpu.memory_space<vmem>>, vector<8x256xf32>
    %46 = vector.extract_strided_slice %18 {offsets = [0, 0], sizes = [8, 256], strides = [1, 1]} : vector<64x256xf32> to vector<8x256xf32>
    %47 = vector.extract_strided_slice %18 {offsets = [8, 0], sizes = [8, 256], strides = [1, 1]} : vector<64x256xf32> to vector<8x256xf32>
    %48 = arith.addf %46, %47 : vector<8x256xf32>
    %49 = vector.extract_strided_slice %18 {offsets = [16, 0], sizes = [8, 256], strides = [1, 1]} : vector<64x256xf32> to vector<8x256xf32>
    %50 = arith.addf %48, %49 : vector<8x256xf32>
    %51 = vector.extract_strided_slice %18 {offsets = [24, 0], sizes = [8, 256], strides = [1, 1]} : vector<64x256xf32> to vector<8x256xf32>
    %52 = arith.addf %50, %51 : vector<8x256xf32>
    %53 = vector.extract_strided_slice %18 {offsets = [32, 0], sizes = [8, 256], strides = [1, 1]} : vector<64x256xf32> to vector<8x256xf32>
    %54 = arith.addf %52, %53 : vector<8x256xf32>
    %55 = vector.extract_strided_slice %18 {offsets = [40, 0], sizes = [8, 256], strides = [1, 1]} : vector<64x256xf32> to vector<8x256xf32>
    %56 = arith.addf %54, %55 : vector<8x256xf32>
    %57 = vector.extract_strided_slice %18 {offsets = [48, 0], sizes = [8, 256], strides = [1, 1]} : vector<64x256xf32> to vector<8x256xf32>
    %58 = arith.addf %56, %57 : vector<8x256xf32>
    %59 = vector.extract_strided_slice %18 {offsets = [56, 0], sizes = [8, 256], strides = [1, 1]} : vector<64x256xf32> to vector<8x256xf32>
    %60 = arith.addf %58, %59 : vector<8x256xf32>
    %61 = arith.addf %45, %60 : vector<8x256xf32>
    %c0_13 = arith.constant 0 : index
    %c0_14 = arith.constant 0 : index
    %62 = vector.load %arg4[%c0_13, %c0_14] : memref<8x256xf32, #tpu.memory_space<vmem>>, vector<8x256xf32>
    tpu.vector_store %arg4[%c0_13, %c0_14], %61 {strides = array<i32>} : memref<8x256xf32, #tpu.memory_space<vmem>>, vector<8x256xf32>,
    %c0_15 = arith.constant 0 : index
    %c0_16 = arith.constant 0 : index
    %63 = vector.load %arg5[%c0_15, %c0_16] : memref<8x256xf32, #tpu.memory_space<vmem>>, vector<8x256xf32>
    %64 = vector.extract_strided_slice %26 {offsets = [0, 0], sizes = [8, 256], strides = [1, 1]} : vector<64x256xf32> to vector<8x256xf32>
    %65 = vector.extract_strided_slice %26 {offsets = [8, 0], sizes = [8, 256], strides = [1, 1]} : vector<64x256xf32> to vector<8x256xf32>
    %66 = arith.addf %64, %65 : vector<8x256xf32>
    %67 = vector.extract_strided_slice %26 {offsets = [16, 0], sizes = [8, 256], strides = [1, 1]} : vector<64x256xf32> to vector<8x256xf32>
    %68 = arith.addf %66, %67 : vector<8x256xf32>
    %69 = vector.extract_strided_slice %26 {offsets = [24, 0], sizes = [8, 256], strides = [1, 1]} : vector<64x256xf32> to vector<8x256xf32>
    %70 = arith.addf %68, %69 : vector<8x256xf32>
    %71 = vector.extract_strided_slice %26 {offsets = [32, 0], sizes = [8, 256], strides = [1, 1]} : vector<64x256xf32> to vector<8x256xf32>
    %72 = arith.addf %70, %71 : vector<8x256xf32>
    %73 = vector.extract_strided_slice %26 {offsets = [40, 0], sizes = [8, 256], strides = [1, 1]} : vector<64x256xf32> to vector<8x256xf32>
    %74 = arith.addf %72, %73 : vector<8x256xf32>
    %75 = vector.extract_strided_slice %26 {offsets = [48, 0], sizes = [8, 256], strides = [1, 1]} : vector<64x256xf32> to vector<8x256xf32>
    %76 = arith.addf %74, %75 : vector<8x256xf32>
    %77 = vector.extract_strided_slice %26 {offsets = [56, 0], sizes = [8, 256], strides = [1, 1]} : vector<64x256xf32> to vector<8x256xf32>
    %78 = arith.addf %76, %77 : vector<8x256xf32>
    %79 = arith.addf %63, %78 : vector<8x256xf32>
    %c0_17 = arith.constant 0 : index
    %c0_18 = arith.constant 0 : index
    %80 = vector.load %arg5[%c0_17, %c0_18] : memref<8x256xf32, #tpu.memory_space<vmem>>, vector<8x256xf32>
    tpu.vector_store %arg5[%c0_17, %c0_18], %79 {strides = array<i32>} : memref<8x256xf32, #tpu.memory_space<vmem>>, vector<8x256xf32>,
    return
  }
  func.func @transform_0(%arg0: i32) -> (i32, i32) {
    %c0_i32 = arith.constant 0 : i32
    %c0_i32_0 = arith.constant 0 : i32
    return %arg0, %c0_i32 : i32, i32
  }
  func.func @transform_1(%arg0: i32) -> (i32, i32) {
    %c0_i32 = arith.constant 0 : i32
    %c0_i32_0 = arith.constant 0 : i32
    %c0_i32_1 = arith.constant 0 : i32
    return %c0_i32, %c0_i32_0 : i32, i32
  }
  func.func @transform_2(%arg0: i32) -> (i32, i32) {
    %c0_i32 = arith.constant 0 : i32
    %c0_i32_0 = arith.constant 0 : i32
    %c0_i32_1 = arith.constant 0 : i32
    return %c0_i32, %c0_i32_0 : i32, i32
  }
  func.func @transform_3(%arg0: i32) -> (i32, i32) {
    %c0_i32 = arith.constant 0 : i32
    %c0_i32_0 = arith.constant 0 : i32
    %c0_i32_1 = arith.constant 0 : i32
    return %c0_i32, %c0_i32_0 : i32, i32
  }
  func.func @transform_4(%arg0: i32) -> (i32, i32) {
    %c0_i32 = arith.constant 0 : i32
    %c0_i32_0 = arith.constant 0 : i32
    %c0_i32_1 = arith.constant 0 : i32
    return %c0_i32, %c0_i32_0 : i32, i32
  }
}

module attributes {stable_mosaic.version = 11 : i64} {
  func.func @_stft_loss_kernel(%arg0: i32, %arg1: memref<128x128xbf16, #tpu.memory_space<vmem>>, %arg2: memref<128x256xbf16, #tpu.memory_space<vmem>>, %arg3: memref<8x128xf32, #tpu.memory_space<vmem>>, %arg4: memref<8x128xf32, #tpu.memory_space<vmem>>, %arg5: memref<8x128xf32, #tpu.memory_space<vmem>>) attributes {dimension_semantics = [#tpu.dimension_semantics<arbitrary>], iteration_bounds = array<i64: 5>, scalar_prefetch = 0 : i64, scratch_operands = 0 : i64, tpu.core_type = #tpu.core_type<tc>, window_params = [{transform_indices = @transform_0, window_bounds = array<i64: 128, 128>}, {pipeline_mode = #tpu.pipeline_mode<synchronous>, transform_indices = @transform_1, window_bounds = array<i64: 128, 256>}, {pipeline_mode = #tpu.pipeline_mode<synchronous>, transform_indices = @transform_2, window_bounds = array<i64: 8, 128>}, {pipeline_mode = #tpu.pipeline_mode<synchronous>, transform_indices = @transform_3, window_bounds = array<i64: 8, 128>}, {pipeline_mode = #tpu.pipeline_mode<synchronous>, transform_indices = @transform_4, window_bounds = array<i64: 8, 128>}]} {
    %c0_i32 = arith.constant 0 : i32
    %0 = arith.cmpi eq, %arg0, %c0_i32 : i32
    %1 = arith.extui %0 : i1 to i32
    %c0_i32_0 = arith.constant 0 : i32
    %2 = arith.cmpi ne, %1, %c0_i32_0 : i32
    scf.if %2 {
      %cst_19 = arith.constant 0.000000e+00 : f32
      %81 = vector.broadcast %cst_19 : f32 to vector<8x128xf32>
      %c0_20 = arith.constant 0 : index
      %c0_21 = arith.constant 0 : index
      %82 = vector.load %arg3[%c0_20, %c0_21] : memref<8x128xf32, #tpu.memory_space<vmem>>, vector<8x128xf32>
      tpu.vector_store %arg3[%c0_20, %c0_21], %81 {strides = array<i32>} : memref<8x128xf32, #tpu.memory_space<vmem>>, vector<8x128xf32>,
      %cst_22 = arith.constant 0.000000e+00 : f32
      %83 = vector.broadcast %cst_22 : f32 to vector<8x128xf32>
      %c0_23 = arith.constant 0 : index
      %c0_24 = arith.constant 0 : index
      %84 = vector.load %arg4[%c0_23, %c0_24] : memref<8x128xf32, #tpu.memory_space<vmem>>, vector<8x128xf32>
      tpu.vector_store %arg4[%c0_23, %c0_24], %83 {strides = array<i32>} : memref<8x128xf32, #tpu.memory_space<vmem>>, vector<8x128xf32>,
      %cst_25 = arith.constant 0.000000e+00 : f32
      %85 = vector.broadcast %cst_25 : f32 to vector<8x128xf32>
      %c0_26 = arith.constant 0 : index
      %c0_27 = arith.constant 0 : index
      %86 = vector.load %arg5[%c0_26, %c0_27] : memref<8x128xf32, #tpu.memory_space<vmem>>, vector<8x128xf32>
      tpu.vector_store %arg5[%c0_26, %c0_27], %85 {strides = array<i32>} : memref<8x128xf32, #tpu.memory_space<vmem>>, vector<8x128xf32>,
    } else {
    }
    %c0 = arith.constant 0 : index
    %c0_1 = arith.constant 0 : index
    %3 = vector.load %arg1[%c0, %c0_1] : memref<128x128xbf16, #tpu.memory_space<vmem>>, vector<128x128xbf16>
    %c0_2 = arith.constant 0 : index
    %c0_3 = arith.constant 0 : index
    %4 = vector.load %arg2[%c0_2, %c0_3] : memref<128x256xbf16, #tpu.memory_space<vmem>>, vector<128x256xbf16>
    %cst = arith.constant dense<0.000000e+00> : vector<128x256xf32>
    %5 = tpu.matmul %3, %4, %cst {dimension_numbers = #tpu.dot_dimension_numbers<[1], [0], [0], [1], [0, 0, 1, 1], [], []>} : vector<128x128xbf16>, vector<128x256xbf16>, vector<128x256xf32> -> vector<128x256xf32>
    %6 = vector.extract_strided_slice %5 {offsets = [0, 0], sizes = [128, 128], strides = [1, 1]} : vector<128x256xf32> to vector<128x128xf32>
    %7 = vector.extract_strided_slice %5 {offsets = [0, 128], sizes = [128, 128], strides = [1, 1]} : vector<128x256xf32> to vector<128x128xf32>
    %8 = arith.mulf %6, %6 : vector<128x128xf32>
    %9 = arith.mulf %7, %7 : vector<128x128xf32>
    %10 = arith.addf %8, %9 : vector<128x128xf32>
    %cst_4 = arith.constant 1.000000e-07 : f32
    %11 = vector.broadcast %cst_4 : f32 to vector<128x128xf32>
    %12 = arith.maximumf %10, %11 : vector<128x128xf32>
    %13 = math.sqrt %12 : vector<128x128xf32>
    %14 = vector.extract_strided_slice %13 {offsets = [0, 0], sizes = [64, 128], strides = [1, 1]} : vector<128x128xf32> to vector<64x128xf32>
    %15 = vector.extract_strided_slice %13 {offsets = [64, 0], sizes = [64, 128], strides = [1, 1]} : vector<128x128xf32> to vector<64x128xf32>
    %16 = arith.subf %15, %14 : vector<64x128xf32>
    %17 = arith.mulf %16, %16 : vector<64x128xf32>
    %18 = vector.extract_strided_slice %12 {offsets = [64, 0], sizes = [64, 128], strides = [1, 1]} : vector<128x128xf32> to vector<64x128xf32>
    %cst_5 = arith.constant 1.1920929E-7 : f32
    %19 = vector.broadcast %cst_5 : f32 to vector<64x128xf32>
    %20 = arith.addf %19, %15 : vector<64x128xf32>
    %21 = math.log %20 : vector<64x128xf32>
    %cst_6 = arith.constant 1.1920929E-7 : f32
    %22 = vector.broadcast %cst_6 : f32 to vector<64x128xf32>
    %23 = arith.addf %22, %14 : vector<64x128xf32>
    %24 = math.log %23 : vector<64x128xf32>
    %25 = arith.subf %21, %24 : vector<64x128xf32>
    %26 = math.absf %25 : vector<64x128xf32>
    %c0_7 = arith.constant 0 : index
    %c0_8 = arith.constant 0 : index
    %27 = vector.load %arg3[%c0_7, %c0_8] : memref<8x128xf32, #tpu.memory_space<vmem>>, vector<8x128xf32>
    %28 = vector.extract_strided_slice %17 {offsets = [0, 0], sizes = [8, 128], strides = [1, 1]} : vector<64x128xf32> to vector<8x128xf32>
    %29 = vector.extract_strided_slice %17 {offsets = [8, 0], sizes = [8, 128], strides = [1, 1]} : vector<64x128xf32> to vector<8x128xf32>
    %30 = arith.addf %28, %29 : vector<8x128xf32>
    %31 = vector.extract_strided_slice %17 {offsets = [16, 0], sizes = [8, 128], strides = [1, 1]} : vector<64x128xf32> to vector<8x128xf32>
    %32 = arith.addf %30, %31 : vector<8x128xf32>
    %33 = vector.extract_strided_slice %17 {offsets = [24, 0], sizes = [8, 128], strides = [1, 1]} : vector<64x128xf32> to vector<8x128xf32>
    %34 = arith.addf %32, %33 : vector<8x128xf32>
    %35 = vector.extract_strided_slice %17 {offsets = [32, 0], sizes = [8, 128], strides = [1, 1]} : vector<64x128xf32> to vector<8x128xf32>
    %36 = arith.addf %34, %35 : vector<8x128xf32>
    %37 = vector.extract_strided_slice %17 {offsets = [40, 0], sizes = [8, 128], strides = [1, 1]} : vector<64x128xf32> to vector<8x128xf32>
    %38 = arith.addf %36, %37 : vector<8x128xf32>
    %39 = vector.extract_strided_slice %17 {offsets = [48, 0], sizes = [8, 128], strides = [1, 1]} : vector<64x128xf32> to vector<8x128xf32>
    %40 = arith.addf %38, %39 : vector<8x128xf32>
    %41 = vector.extract_strided_slice %17 {offsets = [56, 0], sizes = [8, 128], strides = [1, 1]} : vector<64x128xf32> to vector<8x128xf32>
    %42 = arith.addf %40, %41 : vector<8x128xf32>
    %43 = arith.addf %27, %42 : vector<8x128xf32>
    %c0_9 = arith.constant 0 : index
    %c0_10 = arith.constant 0 : index
    %44 = vector.load %arg3[%c0_9, %c0_10] : memref<8x128xf32, #tpu.memory_space<vmem>>, vector<8x128xf32>
    tpu.vector_store %arg3[%c0_9, %c0_10], %43 {strides = array<i32>} : memref<8x128xf32, #tpu.memory_space<vmem>>, vector<8x128xf32>,
    %c0_11 = arith.constant 0 : index
    %c0_12 = arith.constant 0 : index
    %45 = vector.load %arg4[%c0_11, %c0_12] : memref<8x128xf32, #tpu.memory_space<vmem>>, vector<8x128xf32>
    %46 = vector.extract_strided_slice %18 {offsets = [0, 0], sizes = [8, 128], strides = [1, 1]} : vector<64x128xf32> to vector<8x128xf32>
    %47 = vector.extract_strided_slice %18 {offsets = [8, 0], sizes = [8, 128], strides = [1, 1]} : vector<64x128xf32> to vector<8x128xf32>
    %48 = arith.addf %46, %47 : vector<8x128xf32>
    %49 = vector.extract_strided_slice %18 {offsets = [16, 0], sizes = [8, 128], strides = [1, 1]} : vector<64x128xf32> to vector<8x128xf32>
    %50 = arith.addf %48, %49 : vector<8x128xf32>
    %51 = vector.extract_strided_slice %18 {offsets = [24, 0], sizes = [8, 128], strides = [1, 1]} : vector<64x128xf32> to vector<8x128xf32>
    %52 = arith.addf %50, %51 : vector<8x128xf32>
    %53 = vector.extract_strided_slice %18 {offsets = [32, 0], sizes = [8, 128], strides = [1, 1]} : vector<64x128xf32> to vector<8x128xf32>
    %54 = arith.addf %52, %53 : vector<8x128xf32>
    %55 = vector.extract_strided_slice %18 {offsets = [40, 0], sizes = [8, 128], strides = [1, 1]} : vector<64x128xf32> to vector<8x128xf32>
    %56 = arith.addf %54, %55 : vector<8x128xf32>
    %57 = vector.extract_strided_slice %18 {offsets = [48, 0], sizes = [8, 128], strides = [1, 1]} : vector<64x128xf32> to vector<8x128xf32>
    %58 = arith.addf %56, %57 : vector<8x128xf32>
    %59 = vector.extract_strided_slice %18 {offsets = [56, 0], sizes = [8, 128], strides = [1, 1]} : vector<64x128xf32> to vector<8x128xf32>
    %60 = arith.addf %58, %59 : vector<8x128xf32>
    %61 = arith.addf %45, %60 : vector<8x128xf32>
    %c0_13 = arith.constant 0 : index
    %c0_14 = arith.constant 0 : index
    %62 = vector.load %arg4[%c0_13, %c0_14] : memref<8x128xf32, #tpu.memory_space<vmem>>, vector<8x128xf32>
    tpu.vector_store %arg4[%c0_13, %c0_14], %61 {strides = array<i32>} : memref<8x128xf32, #tpu.memory_space<vmem>>, vector<8x128xf32>,
    %c0_15 = arith.constant 0 : index
    %c0_16 = arith.constant 0 : index
    %63 = vector.load %arg5[%c0_15, %c0_16] : memref<8x128xf32, #tpu.memory_space<vmem>>, vector<8x128xf32>
    %64 = vector.extract_strided_slice %26 {offsets = [0, 0], sizes = [8, 128], strides = [1, 1]} : vector<64x128xf32> to vector<8x128xf32>
    %65 = vector.extract_strided_slice %26 {offsets = [8, 0], sizes = [8, 128], strides = [1, 1]} : vector<64x128xf32> to vector<8x128xf32>
    %66 = arith.addf %64, %65 : vector<8x128xf32>
    %67 = vector.extract_strided_slice %26 {offsets = [16, 0], sizes = [8, 128], strides = [1, 1]} : vector<64x128xf32> to vector<8x128xf32>
    %68 = arith.addf %66, %67 : vector<8x128xf32>
    %69 = vector.extract_strided_slice %26 {offsets = [24, 0], sizes = [8, 128], strides = [1, 1]} : vector<64x128xf32> to vector<8x128xf32>
    %70 = arith.addf %68, %69 : vector<8x128xf32>
    %71 = vector.extract_strided_slice %26 {offsets = [32, 0], sizes = [8, 128], strides = [1, 1]} : vector<64x128xf32> to vector<8x128xf32>
    %72 = arith.addf %70, %71 : vector<8x128xf32>
    %73 = vector.extract_strided_slice %26 {offsets = [40, 0], sizes = [8, 128], strides = [1, 1]} : vector<64x128xf32> to vector<8x128xf32>
    %74 = arith.addf %72, %73 : vector<8x128xf32>
    %75 = vector.extract_strided_slice %26 {offsets = [48, 0], sizes = [8, 128], strides = [1, 1]} : vector<64x128xf32> to vector<8x128xf32>
    %76 = arith.addf %74, %75 : vector<8x128xf32>
    %77 = vector.extract_strided_slice %26 {offsets = [56, 0], sizes = [8, 128], strides = [1, 1]} : vector<64x128xf32> to vector<8x128xf32>
    %78 = arith.addf %76, %77 : vector<8x128xf32>
    %79 = arith.addf %63, %78 : vector<8x128xf32>
    %c0_17 = arith.constant 0 : index
    %c0_18 = arith.constant 0 : index
    %80 = vector.load %arg5[%c0_17, %c0_18] : memref<8x128xf32, #tpu.memory_space<vmem>>, vector<8x128xf32>
    tpu.vector_store %arg5[%c0_17, %c0_18], %79 {strides = array<i32>} : memref<8x128xf32, #tpu.memory_space<vmem>>, vector<8x128xf32>,
    return
  }
  func.func @transform_0(%arg0: i32) -> (i32, i32) {
    %c0_i32 = arith.constant 0 : i32
    %c0_i32_0 = arith.constant 0 : i32
    return %arg0, %c0_i32 : i32, i32
  }
  func.func @transform_1(%arg0: i32) -> (i32, i32) {
    %c0_i32 = arith.constant 0 : i32
    %c0_i32_0 = arith.constant 0 : i32
    %c0_i32_1 = arith.constant 0 : i32
    return %c0_i32, %c0_i32_0 : i32, i32
  }
  func.func @transform_2(%arg0: i32) -> (i32, i32) {
    %c0_i32 = arith.constant 0 : i32
    %c0_i32_0 = arith.constant 0 : i32
    %c0_i32_1 = arith.constant 0 : i32
    return %c0_i32, %c0_i32_0 : i32, i32
  }
  func.func @transform_3(%arg0: i32) -> (i32, i32) {
    %c0_i32 = arith.constant 0 : i32
    %c0_i32_0 = arith.constant 0 : i32
    %c0_i32_1 = arith.constant 0 : i32
    return %c0_i32, %c0_i32_0 : i32, i32
  }
  func.func @transform_4(%arg0: i32) -> (i32, i32) {
    %c0_i32 = arith.constant 0 : i32
    %c0_i32_0 = arith.constant 0 : i32
    %c0_i32_1 = arith.constant 0 : i32
    return %c0_i32, %c0_i32_0 : i32, i32
  }
}

</mosaic_0001>

<llo_original>
// kernel: _lambda_.4
$region0: #{_lambda_.4}
  #allocation0 [shape = 'u32[]', space=smem, size = 0x4, offset = 0x4, fixed_abs, tag = 'smem constant byte address 0x4 - core index']
  #allocation1 [shape = 'u32[144,128]{1,0:T(1,128)}', space=vmem, size = 0x12000, scoped, tag = 'internal scratch']
  %s0 = inlined_call_operand.vmem [shape: bf16[256,512], index: 0, kind: input, shape index: {}]
  %s1 = inlined_call_operand.vmem [shape: bf16[512,768], index: 1, kind: input, shape index: {}]
  %s2 = inlined_call_operand.vmem [shape: f32[8,384], index: 2, kind: output, shape index: {0}]
  %s3 = inlined_call_operand.vmem [shape: f32[8,384], index: 3, kind: output, shape index: {1}]
  %s4 = inlined_call_operand.vmem [shape: f32[8,384], index: 4, kind: output, shape index: {2}]
  %5 = xla_tuple %s2, %s3, %s4
  %s6 = sld [smem:[#allocation0]]
  $region61: #{_lambda_.4} parent=0
    _
  %s8 = ssub.s32 1, %s6
  %s9 = scalar_select 0, %s8, %s6
  loop: start=0, step=1, limit=4
  $region2: #{_lambda_.4} parent=0 // loop_pre_header
    _
  $region3: #{_lambda_.4} parent=0 // loop_header
    %s11 = sphi 0, %s15
    %p12 = scmp.ge.s32.totalorder %s11, 4
    %s21 = sphi 0, %s23
    %s24 = sphi 0, %s21
    %s25 = sphi 0, %s24
    %s41 = sphi 0, %s25
    %s45 = sphi 0, %s45
    %s47 = sphi 0, %s45
    %s48 = sphi 0, %s47
    %s62 = sphi 0, %s48
    %s66 = sphi 0, %s66
    %s68 = sphi 0, %s66
    %s69 = sphi 0, %s68
    %s83 = sphi 0, %s69
    %s87 = sphi 0, %s87
    %s89 = sphi 0, %s87
    %s90 = sphi 0, %s89
    %s104 = sphi 0, %s90
    %s108 = sphi 0, %s108
    %s110 = sphi 0, %s108
    %s111 = sphi 0, %s110
    %s125 = sphi 0, %s111
  $region4: #{_lambda_.4} parent=0 // loop_header_branch
    %14 = sbr.rel (%p12) target = $region8
  $region5: #{_lambda_.4} parent=0 // loop_body
    %s16 = ssub.s32 %s11, 1
    %s17 = ssub.s32 %s11, 2
    %s18 = sadd.s32 %s11, 1
    %s19 = ssub.s32 %s11, %s18
    %p20 = scmp.eq.s32.totalorder %s19, 0
    %s22 = sadd.s32 %s21, 1
    %s23 = scalar_select %p20, %s21, %s22
    %p26 = pneg %p20
    %p27 = scmp.eq.s32.totalorder %s11, 1
    %p28 = por %p26, %p27
    %p29 = scmp.ne.s32.totalorder %s21, %s24
    %p30 = scmp.eq.s32.totalorder %s11, 0
    %p31 = por %p29, %p30
    %p32 = scmp.ne.s32.totalorder %s21, %s24
    %p33 = scmp.eq.s32.totalorder %s16, 1
    %p34 = por %p32, %p33
    %p35 = scmp.ne.s32.totalorder %s24, %s25
    %p36 = scmp.eq.s32.totalorder %s16, 0
    %p37 = por %p35, %p36
    %p38 = scmp.ne.s32.totalorder %s24, %s25
    %p39 = scmp.eq.s32.totalorder %s17, 1
    %p40 = por %p38, %p39
    %p42 = scmp.ne.s32.totalorder %s25, %s41
    %p43 = scmp.eq.s32.totalorder %s17, 0
    %p44 = por %p42, %p43
    %s46 = sadd.s32 %s45, 1
    %p49 = scmp.eq.s32.totalorder %s11, 1
    %p50 = scmp.ne.s32.totalorder %s45, %s47
    %p51 = scmp.eq.s32.totalorder %s11, 0
    %p52 = por %p50, %p51
    %p53 = scmp.ne.s32.totalorder %s45, %s47
    %p54 = scmp.eq.s32.totalorder %s16, 1
    %p55 = por %p53, %p54
    %p56 = scmp.ne.s32.totalorder %s47, %s48
    %p57 = scmp.eq.s32.totalorder %s16, 0
    %p58 = por %p56, %p57
    %p59 = scmp.ne.s32.totalorder %s47, %s48
    %p60 = scmp.eq.s32.totalorder %s17, 1
    %p61 = por %p59, %p60
    %p63 = scmp.ne.s32.totalorder %s48, %s62
    %p64 = scmp.eq.s32.totalorder %s17, 0
    %p65 = por %p63, %p64
    %s67 = sadd.s32 %s66, 1
    %p70 = scmp.eq.s32.totalorder %s11, 1
    %p71 = scmp.ne.s32.totalorder %s66, %s68
    %p72 = scmp.eq.s32.totalorder %s11, 0
    %p73 = por %p71, %p72
    %p74 = scmp.ne.s32.totalorder %s66, %s68
    %p75 = scmp.eq.s32.totalorder %s16, 1
    %p76 = por %p74, %p75
    %p77 = scmp.ne.s32.totalorder %s68, %s69
    %p78 = scmp.eq.s32.totalorder %s16, 0
    %p79 = por %p77, %p78
    %p80 = scmp.ne.s32.totalorder %s68, %s69
    %p81 = scmp.eq.s32.totalorder %s17, 1
    %p82 = por %p80, %p81
    %p84 = scmp.ne.s32.totalorder %s69, %s83
    %p85 = scmp.eq.s32.totalorder %s17, 0
    %p86 = por %p84, %p85
    %s88 = sadd.s32 %s87, 1
    %p91 = scmp.eq.s32.totalorder %s11, 1
    %p92 = scmp.ne.s32.totalorder %s87, %s89
    %p93 = scmp.eq.s32.totalorder %s11, 0
    %p94 = por %p92, %p93
    %p95 = scmp.ne.s32.totalorder %s87, %s89
    %p96 = scmp.eq.s32.totalorder %s16, 1
    %p97 = por %p95, %p96
    %p98 = scmp.ne.s32.totalorder %s89, %s90
    %p99 = scmp.eq.s32.totalorder %s16, 0
    %p100 = por %p98, %p99
    %p101 = scmp.ne.s32.totalorder %s89, %s90
    %p102 = scmp.eq.s32.totalorder %s17, 1
    %p103 = por %p101, %p102
    %p105 = scmp.ne.s32.totalorder %s90, %s104
    %p106 = scmp.eq.s32.totalorder %s17, 0
    %p107 = por %p105, %p106
    %s109 = sadd.s32 %s108, 1
    %p112 = scmp.eq.s32.totalorder %s11, 1
    %p113 = scmp.ne.s32.totalorder %s108, %s110
    %p114 = scmp.eq.s32.totalorder %s11, 0
    %p115 = por %p113, %p114
    %p116 = scmp.ne.s32.totalorder %s108, %s110
    %p117 = scmp.eq.s32.totalorder %s16, 1
    %p118 = por %p116, %p117
    %p119 = scmp.ne.s32.totalorder %s110, %s111
    %p120 = scmp.eq.s32.totalorder %s16, 0
    %p121 = por %p119, %p120
    %p122 = scmp.ne.s32.totalorder %s110, %s111
    %p123 = scmp.eq.s32.totalorder %s17, 1
    %p124 = por %p122, %p123
    %p126 = scmp.ne.s32.totalorder %s111, %s125
    %p127 = scmp.eq.s32.totalorder %s17, 0
    %p128 = por %p126, %p127
    %p129 = scmp.le.s32.totalorder 1, %s11
    %p130 = scmp.lt.s32.totalorder %s11, 3
    %p131 = pnand %p129, %p130
    %p132 = pneg %p131
    // Predicated region
    $region9: #{_lambda_.4} parent=5 // pred_check
      _
    $region10: #{_lambda_.4} parent=5 // pred_check_branch
      %134 = sbr.rel (%p131) target = $region12
    $region11: #{_lambda_.4} parent=5 // pred_region
      %s135 = ssub.s32 %s11, 1
      // Predicated region
      $region13: #{_lambda_.4} parent=11 // pred_check
        %p136 = pneg %p58
      $region14: #{_lambda_.4} parent=11 // pred_check_branch
        %138 = sbr.rel (%p136) target = $region16
      $region15: #{_lambda_.4} parent=11 // pred_region
        _
      $region16: #{_lambda_.4} parent=11 // pred_fallthru
        _
    $region12: #{_lambda_.4} parent=5 // pred_fallthru
      _
    %p139 = scmp.lt.s32.totalorder %s11, 2
    // Predicated region
    $region17: #{_lambda_.4} parent=5 // pred_check
      %p140 = pneg %p139
    $region18: #{_lambda_.4} parent=5 // pred_check_branch
      %142 = sbr.rel (%p140) target = $region20
    $region19: #{_lambda_.4} parent=5 // pred_region
      // Predicated region
      $region21: #{_lambda_.4} parent=19 // pred_check
        %p143 = pneg %p31
      $region22: #{_lambda_.4} parent=19 // pred_check_branch
        %145 = sbr.rel (%p143) target = $region24
      $region23: #{_lambda_.4} parent=19 // pred_region
        %s146 = smul.u32 16, %s11
        %p147 = scmp.lt.s32.totalorder %s146, 31
        %s148 = scalar_select %p147, %s146, 31
        %s149 = smul.addr %s148, 4
        %s150 = smul.addr %s149, 4
        %s151 = scalar_lea.vmem %s0, %s150
        %s152 = smul.u32 16, %s11
      $region24: #{_lambda_.4} parent=19 // pred_fallthru
        _
    $region20: #{_lambda_.4} parent=5 // pred_fallthru
      _
    %p153 = scmp.le.s32.totalorder 1, %s11
    %p154 = scmp.lt.s32.totalorder %s11, 3
    %p155 = pnand %p153, %p154
    %p156 = pneg %p155
    // Predicated region
    $region25: #{_lambda_.4} parent=5 // pred_check
      _
    $region26: #{_lambda_.4} parent=5 // pred_check_branch
      %158 = sbr.rel (%p155) target = $region28
    $region27: #{_lambda_.4} parent=5 // pred_region
      %s159 = ssub.s32 %s11, 1
      %s160 = smul.u32 16, %s16
      %p161 = scmp.lt.s32.totalorder %s160, 31
      %s162 = scalar_select %p161, %s160, 31
      %s163 = smul.addr %s162, 4
      %s164 = smul.addr %s163, 4
      %s165 = scalar_lea.vmem %s0, %s164
      %p166 = pneg %p37
      %p167 = pneg %p34
      %p168 = pneg %p58
      %p169 = pneg %p55
      %p170 = pneg %p79
      %p171 = pneg %p76
      %p172 = pneg %p100
      %p173 = pneg %p97
      %p174 = pneg %p121
      %p175 = pneg %p118
      %s176 = smul.u32 16, %s16
      %p177 = scmp.lt.s32.totalorder %s176, 31
      %s178 = scalar_select %p177, %s176, 31
      %s179 = smul.addr %s178, 4
      %s180 = smul.addr %s179, 4
      %s181 = scalar_lea.vmem %s0, %s180
      %s182 = smul.u32 16, %s16
      %p183 = scmp.eq.s32.totalorder %s16, 0
      // Predicated region
      $region29: #{_lambda_.4} parent=27 // pred_check
        %p184 = pneg %p183
      $region30: #{_lambda_.4} parent=27 // pred_check_branch
        %186 = sbr.rel (%p184) target = $region32
      $region31: #{_lambda_.4} parent=27 // pred_region
        %187 = vst [vmem:[%s2] sm:$0xff] 0.0
        %188 = vst [vmem:[%s2 + $0x8] sm:$0xff] 0.0
        %189 = vst [vmem:[%s2 + $0x10] sm:$0xff] 0.0
        %190 = vst [vmem:[%s3] sm:$0xff] 0.0
        %191 = vst [vmem:[%s3 + $0x8] sm:$0xff] 0.0
        %192 = vst [vmem:[%s3 + $0x10] sm:$0xff] 0.0
        %193 = vst [vmem:[%s4] sm:$0xff] 0.0
        %194 = vst [vmem:[%s4 + $0x8] sm:$0xff] 0.0
        %195 = vst [vmem:[%s4 + $0x10] sm:$0xff] 0.0
      $region32: #{_lambda_.4} parent=27 // pred_fallthru
        _
      %v196 = vld [vmem:[%s181] sm:$0xff]
      %v197 = vld [vmem:[%s181 + $0x8] sm:$0xff]
      %v198 = vld [vmem:[%s181 + $0x10] sm:$0xff]
      %v199 = vld [vmem:[%s181 + $0x18] sm:$0xff]
      %v200 = vld [vmem:[%s181 + $0x20] sm:$0xff]
      %v201 = vld [vmem:[%s181 + $0x28] sm:$0xff]
      %v202 = vld [vmem:[%s181 + $0x30] sm:$0xff]
      %v203 = vld [vmem:[%s181 + $0x38] sm:$0xff]
      %v204 = vld [vmem:[%s181 + $0x40] sm:$0xff]
      %v205 = vld [vmem:[%s181 + $0x48] sm:$0xff]
      %v206 = vld [vmem:[%s181 + $0x50] sm:$0xff]
      %v207 = vld [vmem:[%s181 + $0x58] sm:$0xff]
      %v208 = vld [vmem:[%s181 + $0x60] sm:$0xff]
      %v209 = vld [vmem:[%s181 + $0x68] sm:$0xff]
      %v210 = vld [vmem:[%s181 + $0x70] sm:$0xff]
      %v211 = vld [vmem:[%s181 + $0x78] sm:$0xff]
      %v212 = vld [vmem:[%s181 + $0x80] sm:$0xff]
      %v213 = vld [vmem:[%s181 + $0x88] sm:$0xff]
      %v214 = vld [vmem:[%s181 + $0x90] sm:$0xff]
      %v215 = vld [vmem:[%s181 + $0x98] sm:$0xff]
      %v216 = vld [vmem:[%s181 + $0xa0] sm:$0xff]
      %v217 = vld [vmem:[%s181 + $0xa8] sm:$0xff]
      %v218 = vld [vmem:[%s181 + $0xb0] sm:$0xff]
      %v219 = vld [vmem:[%s181 + $0xb8] sm:$0xff]
      %v220 = vld [vmem:[%s181 + $0xc0] sm:$0xff]
      %v221 = vld [vmem:[%s181 + $0xc8] sm:$0xff]
      %v222 = vld [vmem:[%s181 + $0xd0] sm:$0xff]
      %v223 = vld [vmem:[%s181 + $0xd8] sm:$0xff]
      %v224 = vld [vmem:[%s181 + $0xe0] sm:$0xff]
      %v225 = vld [vmem:[%s181 + $0xe8] sm:$0xff]
      %v226 = vld [vmem:[%s181 + $0xf0] sm:$0xff]
      %v227 = vld [vmem:[%s181 + $0xf8] sm:$0xff]
      %v228 = vld [vmem:[%s1] sm:$0xff]
      %v229 = vld [vmem:[%s1 + $0x8] sm:$0xff]
      %v230 = vld [vmem:[%s1 + $0x10] sm:$0xff]
      %v231 = vld [vmem:[%s1 + $0x18] sm:$0xff]
      %v232 = vld [vmem:[%s1 + $0x20] sm:$0xff]
      %v233 = vld [vmem:[%s1 + $0x28] sm:$0xff]
      %v234 = vld [vmem:[%s1 + $0x30] sm:$0xff]
      %v235 = vld [vmem:[%s1 + $0x38] sm:$0xff]
      %v236 = vld [vmem:[%s1 + $0x40] sm:$0xff]
      %v237 = vld [vmem:[%s1 + $0x48] sm:$0xff]
      %v238 = vld [vmem:[%s1 + $0x50] sm:$0xff]
      %v239 = vld [vmem:[%s1 + $0x58] sm:$0xff]
      %v240 = vld [vmem:[%s1 + $0x60] sm:$0xff]
      %v241 = vld [vmem:[%s1 + $0x68] sm:$0xff]
      %v242 = vld [vmem:[%s1 + $0x70] sm:$0xff]
      %v243 = vld [vmem:[%s1 + $0x78] sm:$0xff]
      %v244 = vld [vmem:[%s1 + $0x80] sm:$0xff]
      %v245 = vld [vmem:[%s1 + $0x88] sm:$0xff]
      %v246 = vld [vmem:[%s1 + $0x90] sm:$0xff]
      %v247 = vld [vmem:[%s1 + $0x98] sm:$0xff]
      %v248 = vld [vmem:[%s1 + $0xa0] sm:$0xff]
      %v249 = vld [vmem:[%s1 + $0xa8] sm:$0xff]
      %v250 = vld [vmem:[%s1 + $0xb0] sm:$0xff]
      %v251 = vld [vmem:[%s1 + $0xb8] sm:$0xff]
      %v252 = vld [vmem:[%s1 + $0xc0] sm:$0xff]
      %v253 = vld [vmem:[%s1 + $0xc8] sm:$0xff]
      %v254 = vld [vmem:[%s1 + $0xd0] sm:$0xff]
      %v255 = vld [vmem:[%s1 + $0xd8] sm:$0xff]
      %v256 = vld [vmem:[%s1 + $0xe0] sm:$0xff]
      %v257 = vld [vmem:[%s1 + $0xe8] sm:$0xff]
      %v258 = vld [vmem:[%s1 + $0xf0] sm:$0xff]
      %v259 = vld [vmem:[%s1 + $0xf8] sm:$0xff]
      %v260 = vld [vmem:[%s1 + $0x100] sm:$0xff]
      %v261 = vld [vmem:[%s1 + $0x108] sm:$0xff]
      %v262 = vld [vmem:[%s1 + $0x110] sm:$0xff]
      %v263 = vld [vmem:[%s1 + $0x118] sm:$0xff]
      %v264 = vld [vmem:[%s1 + $0x120] sm:$0xff]
      %v265 = vld [vmem:[%s1 + $0x128] sm:$0xff]
      %v266 = vld [vmem:[%s1 + $0x130] sm:$0xff]
      %v267 = vld [vmem:[%s1 + $0x138] sm:$0xff]
      %v268 = vld [vmem:[%s1 + $0x140] sm:$0xff]
      %v269 = vld [vmem:[%s1 + $0x148] sm:$0xff]
      %v270 = vld [vmem:[%s1 + $0x150] sm:$0xff]
      %v271 = vld [vmem:[%s1 + $0x158] sm:$0xff]
      %v272 = vld [vmem:[%s1 + $0x160] sm:$0xff]
      %v273 = vld [vmem:[%s1 + $0x168] sm:$0xff]
      %v274 = vld [vmem:[%s1 + $0x170] sm:$0xff]
      %v275 = vld [vmem:[%s1 + $0x178] sm:$0xff]
      %v276 = vld [vmem:[%s1 + $0x180] sm:$0xff]
      %v277 = vld [vmem:[%s1 + $0x188] sm:$0xff]
      %v278 = vld [vmem:[%s1 + $0x190] sm:$0xff]
      %v279 = vld [vmem:[%s1 + $0x198] sm:$0xff]
      %v280 = vld [vmem:[%s1 + $0x1a0] sm:$0xff]
      %v281 = vld [vmem:[%s1 + $0x1a8] sm:$0xff]
      %v282 = vld [vmem:[%s1 + $0x1b0] sm:$0xff]
      %v283 = vld [vmem:[%s1 + $0x1b8] sm:$0xff]
      %v284 = vld [vmem:[%s1 + $0x1c0] sm:$0xff]
      %v285 = vld [vmem:[%s1 + $0x1c8] sm:$0xff]
      %v286 = vld [vmem:[%s1 + $0x1d0] sm:$0xff]
      %v287 = vld [vmem:[%s1 + $0x1d8] sm:$0xff]
      %v288 = vld [vmem:[%s1 + $0x1e0] sm:$0xff]
      %v289 = vld [vmem:[%s1 + $0x1e8] sm:$0xff]
      %v290 = vld [vmem:[%s1 + $0x1f0] sm:$0xff]
      %v291 = vld [vmem:[%s1 + $0x1f8] sm:$0xff]
      %v292 = vld [vmem:[%s1 + $0x200] sm:$0xff]
      %v293 = vld [vmem:[%s1 + $0x208] sm:$0xff]
      %v294 = vld [vmem:[%s1 + $0x210] sm:$0xff]
      %v295 = vld [vmem:[%s1 + $0x218] sm:$0xff]
      %v296 = vld [vmem:[%s1 + $0x220] sm:$0xff]
      %v297 = vld [vmem:[%s1 + $0x228] sm:$0xff]
      %v298 = vld [vmem:[%s1 + $0x230] sm:$0xff]
      %v299 = vld [vmem:[%s1 + $0x238] sm:$0xff]
      %v300 = vld [vmem:[%s1 + $0x240] sm:$0xff]
      %v301 = vld [vmem:[%s1 + $0x248] sm:$0xff]
      %v302 = vld [vmem:[%s1 + $0x250] sm:$0xff]
      %v303 = vld [vmem:[%s1 + $0x258] sm:$0xff]
      %v304 = vld [vmem:[%s1 + $0x260] sm:$0xff]
      %v305 = vld [vmem:[%s1 + $0x268] sm:$0xff]
      %v306 = vld [vmem:[%s1 + $0x270] sm:$0xff]
      %v307 = vld [vmem:[%s1 + $0x278] sm:$0xff]
      %v308 = vld [vmem:[%s1 + $0x280] sm:$0xff]
      %v309 = vld [vmem:[%s1 + $0x288] sm:$0xff]
      %v310 = vld [vmem:[%s1 + $0x290] sm:$0xff]
      %v311 = vld [vmem:[%s1 + $0x298] sm:$0xff]
      %v312 = vld [vmem:[%s1 + $0x2a0] sm:$0xff]
      %v313 = vld [vmem:[%s1 + $0x2a8] sm:$0xff]
      %v314 = vld [vmem:[%s1 + $0x2b0] sm:$0xff]
      %v315 = vld [vmem:[%s1 + $0x2b8] sm:$0xff]
      %v316 = vld [vmem:[%s1 + $0x2c0] sm:$0xff]
      %v317 = vld [vmem:[%s1 + $0x2c8] sm:$0xff]
      %v318 = vld [vmem:[%s1 + $0x2d0] sm:$0xff]
      %v319 = vld [vmem:[%s1 + $0x2d8] sm:$0xff]
      %v320 = vld [vmem:[%s1 + $0x2e0] sm:$0xff]
      %v321 = vld [vmem:[%s1 + $0x2e8] sm:$0xff]
      %v322 = vld [vmem:[%s1 + $0x2f0] sm:$0xff]
      %v323 = vld [vmem:[%s1 + $0x2f8] sm:$0xff]
      %v324 = vld [vmem:[%s1 + $0x300] sm:$0xff]
      %v325 = vld [vmem:[%s1 + $0x308] sm:$0xff]
      %v326 = vld [vmem:[%s1 + $0x310] sm:$0xff]
      %v327 = vld [vmem:[%s1 + $0x318] sm:$0xff]
      %v328 = vld [vmem:[%s1 + $0x320] sm:$0xff]
      %v329 = vld [vmem:[%s1 + $0x328] sm:$0xff]
      %v330 = vld [vmem:[%s1 + $0x330] sm:$0xff]
      %v331 = vld [vmem:[%s1 + $0x338] sm:$0xff]
      %v332 = vld [vmem:[%s1 + $0x340] sm:$0xff]
      %v333 = vld [vmem:[%s1 + $0x348] sm:$0xff]
      %v334 = vld [vmem:[%s1 + $0x350] sm:$0xff]
      %v335 = vld [vmem:[%s1 + $0x358] sm:$0xff]
      %v336 = vld [vmem:[%s1 + $0x360] sm:$0xff]
      %v337 = vld [vmem:[%s1 + $0x368] sm:$0xff]
      %v338 = vld [vmem:[%s1 + $0x370] sm:$0xff]
      %v339 = vld [vmem:[%s1 + $0x378] sm:$0xff]
      %v340 = vld [vmem:[%s1 + $0x380] sm:$0xff]
      %v341 = vld [vmem:[%s1 + $0x388] sm:$0xff]
      %v342 = vld [vmem:[%s1 + $0x390] sm:$0xff]
      %v343 = vld [vmem:[%s1 + $0x398] sm:$0xff]
      %v344 = vld [vmem:[%s1 + $0x3a0] sm:$0xff]
      %v345 = vld [vmem:[%s1 + $0x3a8] sm:$0xff]
      %v346 = vld [vmem:[%s1 + $0x3b0] sm:$0xff]
      %v347 = vld [vmem:[%s1 + $0x3b8] sm:$0xff]
      %v348 = vld [vmem:[%s1 + $0x3c0] sm:$0xff]
      %v349 = vld [vmem:[%s1 + $0x3c8] sm:$0xff]
      %v350 = vld [vmem:[%s1 + $0x3d0] sm:$0xff]
      %v351 = vld [vmem:[%s1 + $0x3d8] sm:$0xff]
      %v352 = vld [vmem:[%s1 + $0x3e0] sm:$0xff]
      %v353 = vld [vmem:[%s1 + $0x3e8] sm:$0xff]
      %v354 = vld [vmem:[%s1 + $0x3f0] sm:$0xff]
      %v355 = vld [vmem:[%s1 + $0x3f8] sm:$0xff]
      %v356 = vld [vmem:[%s1 + $0x400] sm:$0xff]
      %v357 = vld [vmem:[%s1 + $0x408] sm:$0xff]
      %v358 = vld [vmem:[%s1 + $0x410] sm:$0xff]
      %v359 = vld [vmem:[%s1 + $0x418] sm:$0xff]
      %v360 = vld [vmem:[%s1 + $0x420] sm:$0xff]
      %v361 = vld [vmem:[%s1 + $0x428] sm:$0xff]
      %v362 = vld [vmem:[%s1 + $0x430] sm:$0xff]
      %v363 = vld [vmem:[%s1 + $0x438] sm:$0xff]
      %v364 = vld [vmem:[%s1 + $0x440] sm:$0xff]
      %v365 = vld [vmem:[%s1 + $0x448] sm:$0xff]
      %v366 = vld [vmem:[%s1 + $0x450] sm:$0xff]
      %v367 = vld [vmem:[%s1 + $0x458] sm:$0xff]
      %v368 = vld [vmem:[%s1 + $0x460] sm:$0xff]
      %v369 = vld [vmem:[%s1 + $0x468] sm:$0xff]
      %v370 = vld [vmem:[%s1 + $0x470] sm:$0xff]
      %v371 = vld [vmem:[%s1 + $0x478] sm:$0xff]
      %v372 = vld [vmem:[%s1 + $0x480] sm:$0xff]
      %v373 = vld [vmem:[%s1 + $0x488] sm:$0xff]
      %v374 = vld [vmem:[%s1 + $0x490] sm:$0xff]
      %v375 = vld [vmem:[%s1 + $0x498] sm:$0xff]
      %v376 = vld [vmem:[%s1 + $0x4a0] sm:$0xff]
      %v377 = vld [vmem:[%s1 + $0x4a8] sm:$0xff]
      %v378 = vld [vmem:[%s1 + $0x4b0] sm:$0xff]
      %v379 = vld [vmem:[%s1 + $0x4b8] sm:$0xff]
      %v380 = vld [vmem:[%s1 + $0x4c0] sm:$0xff]
      %v381 = vld [vmem:[%s1 + $0x4c8] sm:$0xff]
      %v382 = vld [vmem:[%s1 + $0x4d0] sm:$0xff]
      %v383 = vld [vmem:[%s1 + $0x4d8] sm:$0xff]
      %v384 = vld [vmem:[%s1 + $0x4e0] sm:$0xff]
      %v385 = vld [vmem:[%s1 + $0x4e8] sm:$0xff]
      %v386 = vld [vmem:[%s1 + $0x4f0] sm:$0xff]
      %v387 = vld [vmem:[%s1 + $0x4f8] sm:$0xff]
      %v388 = vld [vmem:[%s1 + $0x500] sm:$0xff]
      %v389 = vld [vmem:[%s1 + $0x508] sm:$0xff]
      %v390 = vld [vmem:[%s1 + $0x510] sm:$0xff]
      %v391 = vld [vmem:[%s1 + $0x518] sm:$0xff]
      %v392 = vld [vmem:[%s1 + $0x520] sm:$0xff]
      %v393 = vld [vmem:[%s1 + $0x528] sm:$0xff]
      %v394 = vld [vmem:[%s1 + $0x530] sm:$0xff]
      %v395 = vld [vmem:[%s1 + $0x538] sm:$0xff]
      %v396 = vld [vmem:[%s1 + $0x540] sm:$0xff]
      %v397 = vld [vmem:[%s1 + $0x548] sm:$0xff]
      %v398 = vld [vmem:[%s1 + $0x550] sm:$0xff]
      %v399 = vld [vmem:[%s1 + $0x558] sm:$0xff]
      %v400 = vld [vmem:[%s1 + $0x560] sm:$0xff]
      %v401 = vld [vmem:[%s1 + $0x568] sm:$0xff]
      %v402 = vld [vmem:[%s1 + $0x570] sm:$0xff]
      %v403 = vld [vmem:[%s1 + $0x578] sm:$0xff]
      %v404 = vld [vmem:[%s1 + $0x580] sm:$0xff]
      %v405 = vld [vmem:[%s1 + $0x588] sm:$0xff]
      %v406 = vld [vmem:[%s1 + $0x590] sm:$0xff]
      %v407 = vld [vmem:[%s1 + $0x598] sm:$0xff]
      %v408 = vld [vmem:[%s1 + $0x5a0] sm:$0xff]
      %v409 = vld [vmem:[%s1 + $0x5a8] sm:$0xff]
      %v410 = vld [vmem:[%s1 + $0x5b0] sm:$0xff]
      %v411 = vld [vmem:[%s1 + $0x5b8] sm:$0xff]
      %v412 = vld [vmem:[%s1 + $0x5c0] sm:$0xff]
      %v413 = vld [vmem:[%s1 + $0x5c8] sm:$0xff]
      %v414 = vld [vmem:[%s1 + $0x5d0] sm:$0xff]
      %v415 = vld [vmem:[%s1 + $0x5d8] sm:$0xff]
      %v416 = vld [vmem:[%s1 + $0x5e0] sm:$0xff]
      %v417 = vld [vmem:[%s1 + $0x5e8] sm:$0xff]
      %v418 = vld [vmem:[%s1 + $0x5f0] sm:$0xff]
      %v419 = vld [vmem:[%s1 + $0x5f8] sm:$0xff]
      %v452 = vunpack.c.l.b16 %v196
      %v453 = vunpack.c.h.b16 %v196
      %v454 = vunpack.c.l.b16 %v197
      %v455 = vunpack.c.h.b16 %v197
      %v456 = vunpack.c.l.b16 %v198
      %v457 = vunpack.c.h.b16 %v198
      %v458 = vunpack.c.l.b16 %v199
      %v459 = vunpack.c.h.b16 %v199
      %v460 = vunpack.c.l.b16 %v200
      %v461 = vunpack.c.h.b16 %v200
      %v462 = vunpack.c.l.b16 %v201
      %v463 = vunpack.c.h.b16 %v201
      %v464 = vunpack.c.l.b16 %v202
      %v465 = vunpack.c.h.b16 %v202
      %v466 = vunpack.c.l.b16 %v203
      %v467 = vunpack.c.h.b16 %v203
      %v468 = vunpack.c.l.b16 %v204
      %v469 = vunpack.c.h.b16 %v204
      %v470 = vunpack.c.l.b16 %v205
      %v471 = vunpack.c.h.b16 %v205
      %v472 = vunpack.c.l.b16 %v206
      %v473 = vunpack.c.h.b16 %v206
      %v474 = vunpack.c.l.b16 %v207
      %v475 = vunpack.c.h.b16 %v207
      %v476 = vunpack.c.l.b16 %v208
      %v477 = vunpack.c.h.b16 %v208
      %v478 = vunpack.c.l.b16 %v209
      %v479 = vunpack.c.h.b16 %v209
      %v480 = vunpack.c.l.b16 %v210
      %v481 = vunpack.c.h.b16 %v210
      %v482 = vunpack.c.l.b16 %v211
      %v483 = vunpack.c.h.b16 %v211
      %v484 = vunpack.c.l.b16 %v212
      %v485 = vunpack.c.h.b16 %v212
      %v486 = vunpack.c.l.b16 %v213
      %v487 = vunpack.c.h.b16 %v213
      %v488 = vunpack.c.l.b16 %v214
      %v489 = vunpack.c.h.b16 %v214
      %v490 = vunpack.c.l.b16 %v215
      %v491 = vunpack.c.h.b16 %v215
      %v492 = vunpack.c.l.b16 %v216
      %v493 = vunpack.c.h.b16 %v216
      %v494 = vunpack.c.l.b16 %v217
      %v495 = vunpack.c.h.b16 %v217
      %v496 = vunpack.c.l.b16 %v218
      %v497 = vunpack.c.h.b16 %v218
      %v498 = vunpack.c.l.b16 %v219
      %v499 = vunpack.c.h.b16 %v219
      %v500 = vunpack.c.l.b16 %v220
      %v501 = vunpack.c.h.b16 %v220
      %v502 = vunpack.c.l.b16 %v221
      %v503 = vunpack.c.h.b16 %v221
      %v504 = vunpack.c.l.b16 %v222
      %v505 = vunpack.c.h.b16 %v222
      %v506 = vunpack.c.l.b16 %v223
      %v507 = vunpack.c.h.b16 %v223
      %v508 = vunpack.c.l.b16 %v224
      %v509 = vunpack.c.h.b16 %v224
      %v510 = vunpack.c.l.b16 %v225
      %v511 = vunpack.c.h.b16 %v225
      %v512 = vunpack.c.l.b16 %v226
      %v513 = vunpack.c.h.b16 %v226
      %v514 = vunpack.c.l.b16 %v227
      %v515 = vunpack.c.h.b16 %v227
      %v516 = vpack.c.b16 %v456, %v452
      %v517 = vpack.c.b16 %v457, %v453
      %v518 = vpack.c.b16 %v458, %v454
      %v519 = vpack.c.b16 %v459, %v455
      %v520 = vpack.c.b16 %v464, %v460
      %v521 = vpack.c.b16 %v465, %v461
      %v522 = vpack.c.b16 %v466, %v462
      %v523 = vpack.c.b16 %v467, %v463
      %v524 = vpack.c.b16 %v472, %v468
      %v525 = vpack.c.b16 %v473, %v469
      %v526 = vpack.c.b16 %v474, %v470
      %v527 = vpack.c.b16 %v475, %v471
      %v528 = vpack.c.b16 %v480, %v476
      %v529 = vpack.c.b16 %v481, %v477
      %v530 = vpack.c.b16 %v482, %v478
      %v531 = vpack.c.b16 %v483, %v479
      %v532 = vpack.c.b16 %v488, %v484
      %v533 = vpack.c.b16 %v489, %v485
      %v534 = vpack.c.b16 %v490, %v486
      %v535 = vpack.c.b16 %v491, %v487
      %v536 = vpack.c.b16 %v496, %v492
      %v537 = vpack.c.b16 %v497, %v493
      %v538 = vpack.c.b16 %v498, %v494
      %v539 = vpack.c.b16 %v499, %v495
      %v540 = vpack.c.b16 %v504, %v500
      %v541 = vpack.c.b16 %v505, %v501
      %v542 = vpack.c.b16 %v506, %v502
      %v543 = vpack.c.b16 %v507, %v503
      %v544 = vpack.c.b16 %v512, %v508
      %v545 = vpack.c.b16 %v513, %v509
      %v546 = vpack.c.b16 %v514, %v510
      %v547 = vpack.c.b16 %v515, %v511
      %v772 = vunpack.c.l.b16 %v228
      %v773 = vunpack.c.h.b16 %v228
      %v774 = vunpack.c.l.b16 %v229
      %v775 = vunpack.c.h.b16 %v229
      %v776 = vunpack.c.l.b16 %v230
      %v777 = vunpack.c.h.b16 %v230
      %v778 = vunpack.c.l.b16 %v231
      %v779 = vunpack.c.h.b16 %v231
      %v780 = vunpack.c.l.b16 %v232
      %v781 = vunpack.c.h.b16 %v232
      %v782 = vunpack.c.l.b16 %v233
      %v783 = vunpack.c.h.b16 %v233
      %v784 = vunpack.c.l.b16 %v234
      %v785 = vunpack.c.h.b16 %v234
      %v786 = vunpack.c.l.b16 %v235
      %v787 = vunpack.c.h.b16 %v235
      %v788 = vunpack.c.l.b16 %v236
      %v789 = vunpack.c.h.b16 %v236
      %v790 = vunpack.c.l.b16 %v237
      %v791 = vunpack.c.h.b16 %v237
      %v792 = vunpack.c.l.b16 %v238
      %v793 = vunpack.c.h.b16 %v238
      %v794 = vunpack.c.l.b16 %v239
      %v795 = vunpack.c.h.b16 %v239
      %v796 = vunpack.c.l.b16 %v240
      %v797 = vunpack.c.h.b16 %v240
      %v798 = vunpack.c.l.b16 %v241
      %v799 = vunpack.c.h.b16 %v241
      %v800 = vunpack.c.l.b16 %v242
      %v801 = vunpack.c.h.b16 %v242
      %v802 = vunpack.c.l.b16 %v243
      %v803 = vunpack.c.h.b16 %v243
      %v804 = vunpack.c.l.b16 %v244
      %v805 = vunpack.c.h.b16 %v244
      %v806 = vunpack.c.l.b16 %v245
      %v807 = vunpack.c.h.b16 %v245
      %v808 = vunpack.c.l.b16 %v246
      %v809 = vunpack.c.h.b16 %v246
      %v810 = vunpack.c.l.b16 %v247
      %v811 = vunpack.c.h.b16 %v247
      %v812 = vunpack.c.l.b16 %v248
      %v813 = vunpack.c.h.b16 %v248
      %v814 = vunpack.c.l.b16 %v249
      %v815 = vunpack.c.h.b16 %v249
      %v816 = vunpack.c.l.b16 %v250
      %v817 = vunpack.c.h.b16 %v250
      %v818 = vunpack.c.l.b16 %v251
      %v819 = vunpack.c.h.b16 %v251
      %v820 = vunpack.c.l.b16 %v252
      %v821 = vunpack.c.h.b16 %v252
      %v822 = vunpack.c.l.b16 %v253
      %v823 = vunpack.c.h.b16 %v253
      %v824 = vunpack.c.l.b16 %v254
      %v825 = vunpack.c.h.b16 %v254
      %v826 = vunpack.c.l.b16 %v255
      %v827 = vunpack.c.h.b16 %v255
      %v828 = vunpack.c.l.b16 %v256
      %v829 = vunpack.c.h.b16 %v256
      %v830 = vunpack.c.l.b16 %v257
      %v831 = vunpack.c.h.b16 %v257
      %v832 = vunpack.c.l.b16 %v258
      %v833 = vunpack.c.h.b16 %v258
      %v834 = vunpack.c.l.b16 %v259
      %v835 = vunpack.c.h.b16 %v259
      %v836 = vunpack.c.l.b16 %v260
      %v837 = vunpack.c.h.b16 %v260
      %v838 = vunpack.c.l.b16 %v261
      %v839 = vunpack.c.h.b16 %v261
      %v840 = vunpack.c.l.b16 %v262
      %v841 = vunpack.c.h.b16 %v262
      %v842 = vunpack.c.l.b16 %v263
      %v843 = vunpack.c.h.b16 %v263
      %v844 = vunpack.c.l.b16 %v264
      %v845 = vunpack.c.h.b16 %v264
      %v846 = vunpack.c.l.b16 %v265
      %v847 = vunpack.c.h.b16 %v265
      %v848 = vunpack.c.l.b16 %v266
      %v849 = vunpack.c.h.b16 %v266
      %v850 = vunpack.c.l.b16 %v267
      %v851 = vunpack.c.h.b16 %v267
      %v852 = vunpack.c.l.b16 %v268
      %v853 = vunpack.c.h.b16 %v268
      %v854 = vunpack.c.l.b16 %v269
      %v855 = vunpack.c.h.b16 %v269
      %v856 = vunpack.c.l.b16 %v270
      %v857 = vunpack.c.h.b16 %v270
      %v858 = vunpack.c.l.b16 %v271
      %v859 = vunpack.c.h.b16 %v271
      %v860 = vunpack.c.l.b16 %v272
      %v861 = vunpack.c.h.b16 %v272
      %v862 = vunpack.c.l.b16 %v273
      %v863 = vunpack.c.h.b16 %v273
      %v864 = vunpack.c.l.b16 %v274
      %v865 = vunpack.c.h.b16 %v274
      %v866 = vunpack.c.l.b16 %v275
      %v867 = vunpack.c.h.b16 %v275
      %v868 = vunpack.c.l.b16 %v276
      %v869 = vunpack.c.h.b16 %v276
      %v870 = vunpack.c.l.b16 %v277
      %v871 = vunpack.c.h.b16 %v277
      %v872 = vunpack.c.l.b16 %v278
      %v873 = vunpack.c.h.b16 %v278
      %v874 = vunpack.c.l.b16 %v279
      %v875 = vunpack.c.h.b16 %v279
      %v876 = vunpack.c.l.b16 %v280
      %v877 = vunpack.c.h.b16 %v280
      %v878 = vunpack.c.l.b16 %v281
      %v879 = vunpack.c.h.b16 %v281
      %v880 = vunpack.c.l.b16 %v282
      %v881 = vunpack.c.h.b16 %v282
      %v882 = vunpack.c.l.b16 %v283
      %v883 = vunpack.c.h.b16 %v283
      %v884 = vunpack.c.l.b16 %v284
      %v885 = vunpack.c.h.b16 %v284
      %v886 = vunpack.c.l.b16 %v285
      %v887 = vunpack.c.h.b16 %v285
      %v888 = vunpack.c.l.b16 %v286
      %v889 = vunpack.c.h.b16 %v286
      %v890 = vunpack.c.l.b16 %v287
      %v891 = vunpack.c.h.b16 %v287
      %v892 = vunpack.c.l.b16 %v288
      %v893 = vunpack.c.h.b16 %v288
      %v894 = vunpack.c.l.b16 %v289
      %v895 = vunpack.c.h.b16 %v289
      %v896 = vunpack.c.l.b16 %v290
      %v897 = vunpack.c.h.b16 %v290
      %v898 = vunpack.c.l.b16 %v291
      %v899 = vunpack.c.h.b16 %v291
      %v900 = vunpack.c.l.b16 %v292
      %v901 = vunpack.c.h.b16 %v292
      %v902 = vunpack.c.l.b16 %v293
      %v903 = vunpack.c.h.b16 %v293
      %v904 = vunpack.c.l.b16 %v294
      %v905 = vunpack.c.h.b16 %v294
      %v906 = vunpack.c.l.b16 %v295
      %v907 = vunpack.c.h.b16 %v295
      %v908 = vunpack.c.l.b16 %v296
      %v909 = vunpack.c.h.b16 %v296
      %v910 = vunpack.c.l.b16 %v297
      %v911 = vunpack.c.h.b16 %v297
      %v912 = vunpack.c.l.b16 %v298
      %v913 = vunpack.c.h.b16 %v298
      %v914 = vunpack.c.l.b16 %v299
      %v915 = vunpack.c.h.b16 %v299
      %v916 = vunpack.c.l.b16 %v300
      %v917 = vunpack.c.h.b16 %v300
      %v918 = vunpack.c.l.b16 %v301
      %v919 = vunpack.c.h.b16 %v301
      %v920 = vunpack.c.l.b16 %v302
      %v921 = vunpack.c.h.b16 %v302
      %v922 = vunpack.c.l.b16 %v303
      %v923 = vunpack.c.h.b16 %v303
      %v924 = vunpack.c.l.b16 %v304
      %v925 = vunpack.c.h.b16 %v304
      %v926 = vunpack.c.l.b16 %v305
      %v927 = vunpack.c.h.b16 %v305
      %v928 = vunpack.c.l.b16 %v306
      %v929 = vunpack.c.h.b16 %v306
      %v930 = vunpack.c.l.b16 %v307
      %v931 = vunpack.c.h.b16 %v307
      %v932 = vunpack.c.l.b16 %v308
      %v933 = vunpack.c.h.b16 %v308
      %v934 = vunpack.c.l.b16 %v309
      %v935 = vunpack.c.h.b16 %v309
      %v936 = vunpack.c.l.b16 %v310
      %v937 = vunpack.c.h.b16 %v310
      %v938 = vunpack.c.l.b16 %v311
      %v939 = vunpack.c.h.b16 %v311
      %v940 = vunpack.c.l.b16 %v312
      %v941 = vunpack.c.h.b16 %v312
      %v942 = vunpack.c.l.b16 %v313
      %v943 = vunpack.c.h.b16 %v313
      %v944 = vunpack.c.l.b16 %v314
      %v945 = vunpack.c.h.b16 %v314
      %v946 = vunpack.c.l.b16 %v315
      %v947 = vunpack.c.h.b16 %v315
      %v948 = vunpack.c.l.b16 %v316
      %v949 = vunpack.c.h.b16 %v316
      %v950 = vunpack.c.l.b16 %v317
      %v951 = vunpack.c.h.b16 %v317
      %v952 = vunpack.c.l.b16 %v318
      %v953 = vunpack.c.h.b16 %v318
      %v954 = vunpack.c.l.b16 %v319
      %v955 = vunpack.c.h.b16 %v319
      %v956 = vunpack.c.l.b16 %v320
      %v957 = vunpack.c.h.b16 %v320
      %v958 = vunpack.c.l.b16 %v321
      %v959 = vunpack.c.h.b16 %v321
      %v960 = vunpack.c.l.b16 %v322
      %v961 = vunpack.c.h.b16 %v322
      %v962 = vunpack.c.l.b16 %v323
      %v963 = vunpack.c.h.b16 %v323
      %v964 = vunpack.c.l.b16 %v324
      %v965 = vunpack.c.h.b16 %v324
      %v966 = vunpack.c.l.b16 %v325
      %v967 = vunpack.c.h.b16 %v325
      %v968 = vunpack.c.l.b16 %v326
      %v969 = vunpack.c.h.b16 %v326
      %v970 = vunpack.c.l.b16 %v327
      %v971 = vunpack.c.h.b16 %v327
      %v972 = vunpack.c.l.b16 %v328
      %v973 = vunpack.c.h.b16 %v328
      %v974 = vunpack.c.l.b16 %v329
      %v975 = vunpack.c.h.b16 %v329
      %v976 = vunpack.c.l.b16 %v330
      %v977 = vunpack.c.h.b16 %v330
      %v978 = vunpack.c.l.b16 %v331
      %v979 = vunpack.c.h.b16 %v331
      %v980 = vunpack.c.l.b16 %v332
      %v981 = vunpack.c.h.b16 %v332
      %v982 = vunpack.c.l.b16 %v333
      %v983 = vunpack.c.h.b16 %v333
      %v984 = vunpack.c.l.b16 %v334
      %v985 = vunpack.c.h.b16 %v334
      %v986 = vunpack.c.l.b16 %v335
      %v987 = vunpack.c.h.b16 %v335
      %v988 = vunpack.c.l.b16 %v336
      %v989 = vunpack.c.h.b16 %v336
      %v990 = vunpack.c.l.b16 %v337
      %v991 = vunpack.c.h.b16 %v337
      %v992 = vunpack.c.l.b16 %v338
      %v993 = vunpack.c.h.b16 %v338
      %v994 = vunpack.c.l.b16 %v339
      %v995 = vunpack.c.h.b16 %v339
      %v996 = vunpack.c.l.b16 %v340
      %v997 = vunpack.c.h.b16 %v340
      %v998 = vunpack.c.l.b16 %v341
      %v999 = vunpack.c.h.b16 %v341
      %v1000 = vunpack.c.l.b16 %v342
      %v1001 = vunpack.c.h.b16 %v342
      %v1002 = vunpack.c.l.b16 %v343
      %v1003 = vunpack.c.h.b16 %v343
      %v1004 = vunpack.c.l.b16 %v344
      %v1005 = vunpack.c.h.b16 %v344
      %v1006 = vunpack.c.l.b16 %v345
      %v1007 = vunpack.c.h.b16 %v345
      %v1008 = vunpack.c.l.b16 %v346
      %v1009 = vunpack.c.h.b16 %v346
      %v1010 = vunpack.c.l.b16 %v347
      %v1011 = vunpack.c.h.b16 %v347
      %v1012 = vunpack.c.l.b16 %v348
      %v1013 = vunpack.c.h.b16 %v348
      %v1014 = vunpack.c.l.b16 %v349
      %v1015 = vunpack.c.h.b16 %v349
      %v1016 = vunpack.c.l.b16 %v350
      %v1017 = vunpack.c.h.b16 %v350
      %v1018 = vunpack.c.l.b16 %v351
      %v1019 = vunpack.c.h.b16 %v351
      %v1020 = vunpack.c.l.b16 %v352
      %v1021 = vunpack.c.h.b16 %v352
      %v1022 = vunpack.c.l.b16 %v353
      %v1023 = vunpack.c.h.b16 %v353
      %v1024 = vunpack.c.l.b16 %v354
      %v1025 = vunpack.c.h.b16 %v354
      %v1026 = vunpack.c.l.b16 %v355
      %v1027 = vunpack.c.h.b16 %v355
      %v1028 = vunpack.c.l.b16 %v356
      %v1029 = vunpack.c.h.b16 %v356
      %v1030 = vunpack.c.l.b16 %v357
      %v1031 = vunpack.c.h.b16 %v357
      %v1032 = vunpack.c.l.b16 %v358
      %v1033 = vunpack.c.h.b16 %v358
      %v1034 = vunpack.c.l.b16 %v359
      %v1035 = vunpack.c.h.b16 %v359
      %v1036 = vunpack.c.l.b16 %v360
      %v1037 = vunpack.c.h.b16 %v360
      %v1038 = vunpack.c.l.b16 %v361
      %v1039 = vunpack.c.h.b16 %v361
      %v1040 = vunpack.c.l.b16 %v362
      %v1041 = vunpack.c.h.b16 %v362
      %v1042 = vunpack.c.l.b16 %v363
      %v1043 = vunpack.c.h.b16 %v363
      %v1044 = vunpack.c.l.b16 %v364
      %v1045 = vunpack.c.h.b16 %v364
      %v1046 = vunpack.c.l.b16 %v365
      %v1047 = vunpack.c.h.b16 %v365
      %v1048 = vunpack.c.l.b16 %v366
      %v1049 = vunpack.c.h.b16 %v366
      %v1050 = vunpack.c.l.b16 %v367
      %v1051 = vunpack.c.h.b16 %v367
      %v1052 = vunpack.c.l.b16 %v368
      %v1053 = vunpack.c.h.b16 %v368
      %v1054 = vunpack.c.l.b16 %v369
      %v1055 = vunpack.c.h.b16 %v369
      %v1056 = vunpack.c.l.b16 %v370
      %v1057 = vunpack.c.h.b16 %v370
      %v1058 = vunpack.c.l.b16 %v371
      %v1059 = vunpack.c.h.b16 %v371
      %v1060 = vunpack.c.l.b16 %v372
      %v1061 = vunpack.c.h.b16 %v372
      %v1062 = vunpack.c.l.b16 %v373
      %v1063 = vunpack.c.h.b16 %v373
      %v1064 = vunpack.c.l.b16 %v374
      %v1065 = vunpack.c.h.b16 %v374
      %v1066 = vunpack.c.l.b16 %v375
      %v1067 = vunpack.c.h.b16 %v375
      %v1068 = vunpack.c.l.b16 %v376
      %v1069 = vunpack.c.h.b16 %v376
      %v1070 = vunpack.c.l.b16 %v377
      %v1071 = vunpack.c.h.b16 %v377
      %v1072 = vunpack.c.l.b16 %v378
      %v1073 = vunpack.c.h.b16 %v378
      %v1074 = vunpack.c.l.b16 %v379
      %v1075 = vunpack.c.h.b16 %v379
      %v1076 = vunpack.c.l.b16 %v380
      %v1077 = vunpack.c.h.b16 %v380
      %v1078 = vunpack.c.l.b16 %v381
      %v1079 = vunpack.c.h.b16 %v381
      %v1080 = vunpack.c.l.b16 %v382
      %v1081 = vunpack.c.h.b16 %v382
      %v1082 = vunpack.c.l.b16 %v383
      %v1083 = vunpack.c.h.b16 %v383
      %v1084 = vunpack.c.l.b16 %v384
      %v1085 = vunpack.c.h.b16 %v384
      %v1086 = vunpack.c.l.b16 %v385
      %v1087 = vunpack.c.h.b16 %v385
      %v1088 = vunpack.c.l.b16 %v386
      %v1089 = vunpack.c.h.b16 %v386
      %v1090 = vunpack.c.l.b16 %v387
      %v1091 = vunpack.c.h.b16 %v387
      %v1092 = vunpack.c.l.b16 %v388
      %v1093 = vunpack.c.h.b16 %v388
      %v1094 = vunpack.c.l.b16 %v389
      %v1095 = vunpack.c.h.b16 %v389
      %v1096 = vunpack.c.l.b16 %v390
      %v1097 = vunpack.c.h.b16 %v390
      %v1098 = vunpack.c.l.b16 %v391
      %v1099 = vunpack.c.h.b16 %v391
      %v1100 = vunpack.c.l.b16 %v392
      %v1101 = vunpack.c.h.b16 %v392
      %v1102 = vunpack.c.l.b16 %v393
      %v1103 = vunpack.c.h.b16 %v393
      %v1104 = vunpack.c.l.b16 %v394
      %v1105 = vunpack.c.h.b16 %v394
      %v1106 = vunpack.c.l.b16 %v395
      %v1107 = vunpack.c.h.b16 %v395
      %v1108 = vunpack.c.l.b16 %v396
      %v1109 = vunpack.c.h.b16 %v396
      %v1110 = vunpack.c.l.b16 %v397
      %v1111 = vunpack.c.h.b16 %v397
      %v1112 = vunpack.c.l.b16 %v398
      %v1113 = vunpack.c.h.b16 %v398
      %v1114 = vunpack.c.l.b16 %v399
      %v1115 = vunpack.c.h.b16 %v399
      %v1116 = vunpack.c.l.b16 %v400
      %v1117 = vunpack.c.h.b16 %v400
      %v1118 = vunpack.c.l.b16 %v401
      %v1119 = vunpack.c.h.b16 %v401
      %v1120 = vunpack.c.l.b16 %v402
      %v1121 = vunpack.c.h.b16 %v402
      %v1122 = vunpack.c.l.b16 %v403
      %v1123 = vunpack.c.h.b16 %v403
      %v1124 = vunpack.c.l.b16 %v404
      %v1125 = vunpack.c.h.b16 %v404
      %v1126 = vunpack.c.l.b16 %v405
      %v1127 = vunpack.c.h.b16 %v405
      %v1128 = vunpack.c.l.b16 %v406
      %v1129 = vunpack.c.h.b16 %v406
      %v1130 = vunpack.c.l.b16 %v407
      %v1131 = vunpack.c.h.b16 %v407
      %v1132 = vunpack.c.l.b16 %v408
      %v1133 = vunpack.c.h.b16 %v408
      %v1134 = vunpack.c.l.b16 %v409
      %v1135 = vunpack.c.h.b16 %v409
      %v1136 = vunpack.c.l.b16 %v410
      %v1137 = vunpack.c.h.b16 %v410
      %v1138 = vunpack.c.l.b16 %v411
      %v1139 = vunpack.c.h.b16 %v411
      %v1140 = vunpack.c.l.b16 %v412
      %v1141 = vunpack.c.h.b16 %v412
      %v1142 = vunpack.c.l.b16 %v413
      %v1143 = vunpack.c.h.b16 %v413
      %v1144 = vunpack.c.l.b16 %v414
      %v1145 = vunpack.c.h.b16 %v414
      %v1146 = vunpack.c.l.b16 %v415
      %v1147 = vunpack.c.h.b16 %v415
      %v1148 = vunpack.c.l.b16 %v416
      %v1149 = vunpack.c.h.b16 %v416
      %v1150 = vunpack.c.l.b16 %v417
      %v1151 = vunpack.c.h.b16 %v417
      %v1152 = vunpack.c.l.b16 %v418
      %v1153 = vunpack.c.h.b16 %v418
      %v1154 = vunpack.c.l.b16 %v419
      %v1155 = vunpack.c.h.b16 %v419
      %v1156 = vpack.c.b16 %v778, %v772
      %v1157 = vpack.c.b16 %v779, %v773
      %v1158 = vpack.c.b16 %v780, %v774
      %v1159 = vpack.c.b16 %v781, %v775
      %v1160 = vpack.c.b16 %v782, %v776
      %v1161 = vpack.c.b16 %v783, %v777
      %v1162 = vpack.c.b16 %v790, %v784
      %v1163 = vpack.c.b16 %v791, %v785
      %v1164 = vpack.c.b16 %v792, %v786
      %v1165 = vpack.c.b16 %v793, %v787
      %v1166 = vpack.c.b16 %v794, %v788
      %v1167 = vpack.c.b16 %v795, %v789
      %v1168 = vpack.c.b16 %v802, %v796
      %v1169 = vpack.c.b16 %v803, %v797
      %v1170 = vpack.c.b16 %v804, %v798
      %v1171 = vpack.c.b16 %v805, %v799
      %v1172 = vpack.c.b16 %v806, %v800
      %v1173 = vpack.c.b16 %v807, %v801
      %v1174 = vpack.c.b16 %v814, %v808
      %v1175 = vpack.c.b16 %v815, %v809
      %v1176 = vpack.c.b16 %v816, %v810
      %v1177 = vpack.c.b16 %v817, %v811
      %v1178 = vpack.c.b16 %v818, %v812
      %v1179 = vpack.c.b16 %v819, %v813
      %v1180 = vpack.c.b16 %v826, %v820
      %v1181 = vpack.c.b16 %v827, %v821
      %v1182 = vpack.c.b16 %v828, %v822
      %v1183 = vpack.c.b16 %v829, %v823
      %v1184 = vpack.c.b16 %v830, %v824
      %v1185 = vpack.c.b16 %v831, %v825
      %v1186 = vpack.c.b16 %v838, %v832
      %v1187 = vpack.c.b16 %v839, %v833
      %v1188 = vpack.c.b16 %v840, %v834
      %v1189 = vpack.c.b16 %v841, %v835
      %v1190 = vpack.c.b16 %v842, %v836
      %v1191 = vpack.c.b16 %v843, %v837
      %v1192 = vpack.c.b16 %v850, %v844
      %v1193 = vpack.c.b16 %v851, %v845
      %v1194 = vpack.c.b16 %v852, %v846
      %v1195 = vpack.c.b16 %v853, %v847
      %v1196 = vpack.c.b16 %v854, %v848
      %v1197 = vpack.c.b16 %v855, %v849
      %v1198 = vpack.c.b16 %v862, %v856
      %v1199 = vpack.c.b16 %v863, %v857
      %v1200 = vpack.c.b16 %v864, %v858
      %v1201 = vpack.c.b16 %v865, %v859
      %v1202 = vpack.c.b16 %v866, %v860
      %v1203 = vpack.c.b16 %v867, %v861
      %v1204 = vpack.c.b16 %v874, %v868
      %v1205 = vpack.c.b16 %v875, %v869
      %v1206 = vpack.c.b16 %v876, %v870
      %v1207 = vpack.c.b16 %v877, %v871
      %v1208 = vpack.c.b16 %v878, %v872
      %v1209 = vpack.c.b16 %v879, %v873
      %v1210 = vpack.c.b16 %v886, %v880
      %v1211 = vpack.c.b16 %v887, %v881
      %v1212 = vpack.c.b16 %v888, %v882
      %v1213 = vpack.c.b16 %v889, %v883
      %v1214 = vpack.c.b16 %v890, %v884
      %v1215 = vpack.c.b16 %v891, %v885
      %v1216 = vpack.c.b16 %v898, %v892
      %v1217 = vpack.c.b16 %v899, %v893
      %v1218 = vpack.c.b16 %v900, %v894
      %v1219 = vpack.c.b16 %v901, %v895
      %v1220 = vpack.c.b16 %v902, %v896
      %v1221 = vpack.c.b16 %v903, %v897
      %v1222 = vpack.c.b16 %v910, %v904
      %v1223 = vpack.c.b16 %v911, %v905
      %v1224 = vpack.c.b16 %v912, %v906
      %v1225 = vpack.c.b16 %v913, %v907
      %v1226 = vpack.c.b16 %v914, %v908
      %v1227 = vpack.c.b16 %v915, %v909
      %v1228 = vpack.c.b16 %v922, %v916
      %v1229 = vpack.c.b16 %v923, %v917
      %v1230 = vpack.c.b16 %v924, %v918
      %v1231 = vpack.c.b16 %v925, %v919
      %v1232 = vpack.c.b16 %v926, %v920
      %v1233 = vpack.c.b16 %v927, %v921
      %v1234 = vpack.c.b16 %v934, %v928
      %v1235 = vpack.c.b16 %v935, %v929
      %v1236 = vpack.c.b16 %v936, %v930
      %v1237 = vpack.c.b16 %v937, %v931
      %v1238 = vpack.c.b16 %v938, %v932
      %v1239 = vpack.c.b16 %v939, %v933
      %v1240 = vpack.c.b16 %v946, %v940
      %v1241 = vpack.c.b16 %v947, %v941
      %v1242 = vpack.c.b16 %v948, %v942
      %v1243 = vpack.c.b16 %v949, %v943
      %v1244 = vpack.c.b16 %v950, %v944
      %v1245 = vpack.c.b16 %v951, %v945
      %v1246 = vpack.c.b16 %v958, %v952
      %v1247 = vpack.c.b16 %v959, %v953
      %v1248 = vpack.c.b16 %v960, %v954
      %v1249 = vpack.c.b16 %v961, %v955
      %v1250 = vpack.c.b16 %v962, %v956
      %v1251 = vpack.c.b16 %v963, %v957
      %v1252 = vpack.c.b16 %v970, %v964
      %v1253 = vpack.c.b16 %v971, %v965
      %v1254 = vpack.c.b16 %v972, %v966
      %v1255 = vpack.c.b16 %v973, %v967
      %v1256 = vpack.c.b16 %v974, %v968
      %v1257 = vpack.c.b16 %v975, %v969
      %v1258 = vpack.c.b16 %v982, %v976
      %v1259 = vpack.c.b16 %v983, %v977
      %v1260 = vpack.c.b16 %v984, %v978
      %v1261 = vpack.c.b16 %v985, %v979
      %v1262 = vpack.c.b16 %v986, %v980
      %v1263 = vpack.c.b16 %v987, %v981
      %v1264 = vpack.c.b16 %v994, %v988
      %v1265 = vpack.c.b16 %v995, %v989
      %v1266 = vpack.c.b16 %v996, %v990
      %v1267 = vpack.c.b16 %v997, %v991
      %v1268 = vpack.c.b16 %v998, %v992
      %v1269 = vpack.c.b16 %v999, %v993
      %v1270 = vpack.c.b16 %v1006, %v1000
      %v1271 = vpack.c.b16 %v1007, %v1001
      %v1272 = vpack.c.b16 %v1008, %v1002
      %v1273 = vpack.c.b16 %v1009, %v1003
      %v1274 = vpack.c.b16 %v1010, %v1004
      %v1275 = vpack.c.b16 %v1011, %v1005
      %v1276 = vpack.c.b16 %v1018, %v1012
      %v1277 = vpack.c.b16 %v1019, %v1013
      %v1278 = vpack.c.b16 %v1020, %v1014
      %v1279 = vpack.c.b16 %v1021, %v1015
      %v1280 = vpack.c.b16 %v1022, %v1016
      %v1281 = vpack.c.b16 %v1023, %v1017
      %v1282 = vpack.c.b16 %v1030, %v1024
      %v1283 = vpack.c.b16 %v1031, %v1025
      %v1284 = vpack.c.b16 %v1032, %v1026
      %v1285 = vpack.c.b16 %v1033, %v1027
      %v1286 = vpack.c.b16 %v1034, %v1028
      %v1287 = vpack.c.b16 %v1035, %v1029
      %v1288 = vpack.c.b16 %v1042, %v1036
      %v1289 = vpack.c.b16 %v1043, %v1037
      %v1290 = vpack.c.b16 %v1044, %v1038
      %v1291 = vpack.c.b16 %v1045, %v1039
      %v1292 = vpack.c.b16 %v1046, %v1040
      %v1293 = vpack.c.b16 %v1047, %v1041
      %v1294 = vpack.c.b16 %v1054, %v1048
      %v1295 = vpack.c.b16 %v1055, %v1049
      %v1296 = vpack.c.b16 %v1056, %v1050
      %v1297 = vpack.c.b16 %v1057, %v1051
      %v1298 = vpack.c.b16 %v1058, %v1052
      %v1299 = vpack.c.b16 %v1059, %v1053
      %v1300 = vpack.c.b16 %v1066, %v1060
      %v1301 = vpack.c.b16 %v1067, %v1061
      %v1302 = vpack.c.b16 %v1068, %v1062
      %v1303 = vpack.c.b16 %v1069, %v1063
      %v1304 = vpack.c.b16 %v1070, %v1064
      %v1305 = vpack.c.b16 %v1071, %v1065
      %v1306 = vpack.c.b16 %v1078, %v1072
      %v1307 = vpack.c.b16 %v1079, %v1073
      %v1308 = vpack.c.b16 %v1080, %v1074
      %v1309 = vpack.c.b16 %v1081, %v1075
      %v1310 = vpack.c.b16 %v1082, %v1076
      %v1311 = vpack.c.b16 %v1083, %v1077
      %v1312 = vpack.c.b16 %v1090, %v1084
      %v1313 = vpack.c.b16 %v1091, %v1085
      %v1314 = vpack.c.b16 %v1092, %v1086
      %v1315 = vpack.c.b16 %v1093, %v1087
      %v1316 = vpack.c.b16 %v1094, %v1088
      %v1317 = vpack.c.b16 %v1095, %v1089
      %v1318 = vpack.c.b16 %v1102, %v1096
      %v1319 = vpack.c.b16 %v1103, %v1097
      %v1320 = vpack.c.b16 %v1104, %v1098
      %v1321 = vpack.c.b16 %v1105, %v1099
      %v1322 = vpack.c.b16 %v1106, %v1100
      %v1323 = vpack.c.b16 %v1107, %v1101
      %v1324 = vpack.c.b16 %v1114, %v1108
      %v1325 = vpack.c.b16 %v1115, %v1109
      %v1326 = vpack.c.b16 %v1116, %v1110
      %v1327 = vpack.c.b16 %v1117, %v1111
      %v1328 = vpack.c.b16 %v1118, %v1112
      %v1329 = vpack.c.b16 %v1119, %v1113
      %v1330 = vpack.c.b16 %v1126, %v1120
      %v1331 = vpack.c.b16 %v1127, %v1121
      %v1332 = vpack.c.b16 %v1128, %v1122
      %v1333 = vpack.c.b16 %v1129, %v1123
      %v1334 = vpack.c.b16 %v1130, %v1124
      %v1335 = vpack.c.b16 %v1131, %v1125
      %v1336 = vpack.c.b16 %v1138, %v1132
      %v1337 = vpack.c.b16 %v1139, %v1133
      %v1338 = vpack.c.b16 %v1140, %v1134
      %v1339 = vpack.c.b16 %v1141, %v1135
      %v1340 = vpack.c.b16 %v1142, %v1136
      %v1341 = vpack.c.b16 %v1143, %v1137
      %v1342 = vpack.c.b16 %v1150, %v1144
      %v1343 = vpack.c.b16 %v1151, %v1145
      %v1344 = vpack.c.b16 %v1152, %v1146
      %v1345 = vpack.c.b16 %v1153, %v1147
      %v1346 = vpack.c.b16 %v1154, %v1148
      %v1347 = vpack.c.b16 %v1155, %v1149
      %1540 = vmatprep.subr.bf16.mxu0 %v1199
      %1541 = vmatpush1.bf16.msra.mxu0 %v1198
      %1542 = vmatprep.subr.bf16.mxu0 %v1193
      %1543 = vmatpush1.bf16.msra.mxu0 %v1192
      %1544 = vmatprep.subr.bf16.mxu0 %v1187
      %1545 = vmatpush1.bf16.msra.mxu0 %v1186
      %1546 = vmatprep.subr.bf16.mxu0 %v1181
      %1547 = vmatpush1.bf16.msra.mxu0 %v1180
      %1548 = vmatprep.subr.bf16.mxu0 %v1175
      %1549 = vmatpush1.bf16.msra.mxu0 %v1174
      %1550 = vmatprep.subr.bf16.mxu0 %v1169
      %1551 = vmatpush1.bf16.msra.mxu0 %v1168
      %1552 = vmatprep.subr.bf16.mxu0 %v1163
      %1553 = vmatpush1.bf16.msra.mxu0 %v1162
      %1554 = vmatprep.subr.bf16.mxu0 %v1157
      %1555 = vmatpush1.bf16.msra.mxu0 %v1156
      %1556 = vmatprep.subr.bf16.mxu0 %v1247
      %1557 = vmatpush2.bf16.msra.mxu0 %v1246
      %1558 = vmatprep.subr.bf16.mxu0 %v1241
      %1559 = vmatpush2.bf16.msra.mxu0 %v1240
      %1560 = vmatprep.subr.bf16.mxu0 %v1235
      %1561 = vmatpush2.bf16.msra.mxu0 %v1234
      %1562 = vmatprep.subr.bf16.mxu0 %v1229
      %1563 = vmatpush2.bf16.msra.mxu0 %v1228
      %1564 = vmatprep.subr.bf16.mxu0 %v1223
      %1565 = vmatpush2.bf16.msra.mxu0 %v1222
      %1566 = vmatprep.subr.bf16.mxu0 %v1217
      %1567 = vmatpush2.bf16.msra.mxu0 %v1216
      %1568 = vmatprep.subr.bf16.mxu0 %v1211
      %1569 = vmatpush2.bf16.msra.mxu0 %v1210
      %1570 = vmatprep.subr.bf16.mxu0 %v1205
      %1571 = vmatpush2.bf16.msra.mxu0 %v1204
      %1572 = vmatprep.mubr.bf16.mxu0 %v517
      %1573 = vmatmul.mubr.bf16.gmra.mxu0 %v516
      %v1574 = vpop.f32.mrf.mxu0
      %v1575 = vadd.f32 0.0, %v1574
      %v1576 = vpop.f32.mrf.mxu0
      %v1577 = vadd.f32 0.0, %v1576
      %v1578 = vpop.f32.mrf.mxu0
      %v1579 = vadd.f32 0.0, %v1578
      %v1580 = vpop.f32.mrf.mxu0
      %v1581 = vadd.f32 0.0, %v1580
      %1582 = vmatprep.mubr.bf16.mxu0 %v521
      %1583 = vmatmul.mubr.bf16.gmra.mxu0 %v520
      %v1584 = vpop.f32.mrf.mxu0
      %v1585 = vadd.f32 0.0, %v1584
      %v1586 = vpop.f32.mrf.mxu0
      %v1587 = vadd.f32 0.0, %v1586
      %v1588 = vpop.f32.mrf.mxu0
      %v1589 = vadd.f32 0.0, %v1588
      %v1590 = vpop.f32.mrf.mxu0
      %v1591 = vadd.f32 0.0, %v1590
      %1592 = vmatprep.mubr.bf16.mxu0 %v525
      %1593 = vmatmul.mubr.bf16.gmra.mxu0 %v524
      %v1594 = vpop.f32.mrf.mxu0
      %v1595 = vadd.f32 0.0, %v1594
      %v1596 = vpop.f32.mrf.mxu0
      %v1597 = vadd.f32 0.0, %v1596
      %v1598 = vpop.f32.mrf.mxu0
      %v1599 = vadd.f32 0.0, %v1598
      %v1600 = vpop.f32.mrf.mxu0
      %v1601 = vadd.f32 0.0, %v1600
      %1602 = vmatprep.mubr.bf16.mxu0 %v529
      %1603 = vmatmul.mubr.bf16.gmra.mxu0 %v528
      %v1604 = vpop.f32.mrf.mxu0
      %v1605 = vadd.f32 0.0, %v1604
      %v1606 = vpop.f32.mrf.mxu0
      %v1607 = vadd.f32 0.0, %v1606
      %v1608 = vpop.f32.mrf.mxu0
      %v1609 = vadd.f32 0.0, %v1608
      %v1610 = vpop.f32.mrf.mxu0
      %v1611 = vadd.f32 0.0, %v1610
      %1612 = vmatprep.mubr.bf16.mxu0 %v533
      %1613 = vmatmul.mubr.bf16.gmra.mxu0 %v532
      %v1614 = vpop.f32.mrf.mxu0
      %v1615 = vadd.f32 0.0, %v1614
      %v1616 = vpop.f32.mrf.mxu0
      %v1617 = vadd.f32 0.0, %v1616
      %v1618 = vpop.f32.mrf.mxu0
      %v1619 = vadd.f32 0.0, %v1618
      %v1620 = vpop.f32.mrf.mxu0
      %v1621 = vadd.f32 0.0, %v1620
      %1622 = vmatprep.mubr.bf16.mxu0 %v537
      %1623 = vmatmul.mubr.bf16.gmra.mxu0 %v536
      %v1624 = vpop.f32.mrf.mxu0
      %v1625 = vadd.f32 0.0, %v1624
      %v1626 = vpop.f32.mrf.mxu0
      %v1627 = vadd.f32 0.0, %v1626
      %v1628 = vpop.f32.mrf.mxu0
      %v1629 = vadd.f32 0.0, %v1628
      %v1630 = vpop.f32.mrf.mxu0
      %v1631 = vadd.f32 0.0, %v1630
      %1632 = vmatprep.mubr.bf16.mxu0 %v541
      %1633 = vmatmul.mubr.bf16.gmra.mxu0 %v540
      %v1634 = vpop.f32.mrf.mxu0
      %v1635 = vadd.f32 0.0, %v1634
      %v1636 = vpop.f32.mrf.mxu0
      %v1637 = vadd.f32 0.0, %v1636
      %v1638 = vpop.f32.mrf.mxu0
      %v1639 = vadd.f32 0.0, %v1638
      %v1640 = vpop.f32.mrf.mxu0
      %v1641 = vadd.f32 0.0, %v1640
      %1642 = vmatprep.mubr.bf16.mxu0 %v545
      %1643 = vmatmul.mubr.bf16.gmra.mxu0 %v544
      %v1644 = vpop.f32.mrf.mxu0
      %v1645 = vadd.f32 0.0, %v1644
      %v1646 = vpop.f32.mrf.mxu0
      %v1647 = vadd.f32 0.0, %v1646
      %v1648 = vpop.f32.mrf.mxu0
      %v1649 = vadd.f32 0.0, %v1648
      %v1650 = vpop.f32.mrf.mxu0
      %v1651 = vadd.f32 0.0, %v1650
      %1652 = vdwg.mxu0
      %1653 = vmatprep.subr.bf16.mxu0 %v1295
      %1654 = vmatpush1.bf16.msra.mxu0 %v1294
      %1655 = vmatprep.subr.bf16.mxu0 %v1289
      %1656 = vmatpush1.bf16.msra.mxu0 %v1288
      %1657 = vmatprep.subr.bf16.mxu0 %v1283
      %1658 = vmatpush1.bf16.msra.mxu0 %v1282
      %1659 = vmatprep.subr.bf16.mxu0 %v1277
      %1660 = vmatpush1.bf16.msra.mxu0 %v1276
      %1661 = vmatprep.subr.bf16.mxu0 %v1271
      %1662 = vmatpush1.bf16.msra.mxu0 %v1270
      %1663 = vmatprep.subr.bf16.mxu0 %v1265
      %1664 = vmatpush1.bf16.msra.mxu0 %v1264
      %1665 = vmatprep.subr.bf16.mxu0 %v1259
      %1666 = vmatpush1.bf16.msra.mxu0 %v1258
      %1667 = vmatprep.subr.bf16.mxu0 %v1253
      %1668 = vmatpush1.bf16.msra.mxu0 %v1252
      %1669 = vmatprep.subr.bf16.mxu0 %v1343
      %1670 = vmatpush2.bf16.msra.mxu0 %v1342
      %1671 = vmatprep.subr.bf16.mxu0 %v1337
      %1672 = vmatpush2.bf16.msra.mxu0 %v1336
      %1673 = vmatprep.subr.bf16.mxu0 %v1331
      %1674 = vmatpush2.bf16.msra.mxu0 %v1330
      %1675 = vmatprep.subr.bf16.mxu0 %v1325
      %1676 = vmatpush2.bf16.msra.mxu0 %v1324
      %1677 = vmatprep.subr.bf16.mxu0 %v1319
      %1678 = vmatpush2.bf16.msra.mxu0 %v1318
      %1679 = vmatprep.subr.bf16.mxu0 %v1313
      %1680 = vmatpush2.bf16.msra.mxu0 %v1312
      %1681 = vmatprep.subr.bf16.mxu0 %v1307
      %1682 = vmatpush2.bf16.msra.mxu0 %v1306
      %1683 = vmatprep.subr.bf16.mxu0 %v1301
      %1684 = vmatpush2.bf16.msra.mxu0 %v1300
      %1685 = vmatprep.mubr.bf16.mxu0 %v519
      %1686 = vmatmul.mubr.bf16.gmra.mxu0 %v518
      %v1687 = vpop.f32.mrf.mxu0
      %v1688 = vadd.f32 %v1575, %v1687
      %v1689 = vpop.f32.mrf.mxu0
      %v1690 = vadd.f32 %v1577, %v1689
      %v1691 = vpop.f32.mrf.mxu0
      %v1692 = vadd.f32 %v1579, %v1691
      %v1693 = vpop.f32.mrf.mxu0
      %v1694 = vadd.f32 %v1581, %v1693
      %1695 = vmatprep.mubr.bf16.mxu0 %v523
      %1696 = vmatmul.mubr.bf16.gmra.mxu0 %v522
      %v1697 = vpop.f32.mrf.mxu0
      %v1698 = vadd.f32 %v1585, %v1697
      %v1699 = vpop.f32.mrf.mxu0
      %v1700 = vadd.f32 %v1587, %v1699
      %v1701 = vpop.f32.mrf.mxu0
      %v1702 = vadd.f32 %v1589, %v1701
      %v1703 = vpop.f32.mrf.mxu0
      %v1704 = vadd.f32 %v1591, %v1703
      %1705 = vmatprep.mubr.bf16.mxu0 %v527
      %1706 = vmatmul.mubr.bf16.gmra.mxu0 %v526
      %v1707 = vpop.f32.mrf.mxu0
      %v1708 = vadd.f32 %v1595, %v1707
      %v1709 = vpop.f32.mrf.mxu0
      %v1710 = vadd.f32 %v1597, %v1709
      %v1711 = vpop.f32.mrf.mxu0
      %v1712 = vadd.f32 %v1599, %v1711
      %v1713 = vpop.f32.mrf.mxu0
      %v1714 = vadd.f32 %v1601, %v1713
      %1715 = vmatprep.mubr.bf16.mxu0 %v531
      %1716 = vmatmul.mubr.bf16.gmra.mxu0 %v530
      %v1717 = vpop.f32.mrf.mxu0
      %v1718 = vadd.f32 %v1605, %v1717
      %v1719 = vpop.f32.mrf.mxu0
      %v1720 = vadd.f32 %v1607, %v1719
      %v1721 = vpop.f32.mrf.mxu0
      %v1722 = vadd.f32 %v1609, %v1721
      %v1723 = vpop.f32.mrf.mxu0
      %v1724 = vadd.f32 %v1611, %v1723
      %1725 = vmatprep.mubr.bf16.mxu0 %v535
      %1726 = vmatmul.mubr.bf16.gmra.mxu0 %v534
      %v1727 = vpop.f32.mrf.mxu0
      %v1728 = vadd.f32 %v1615, %v1727
      %v1729 = vpop.f32.mrf.mxu0
      %v1730 = vadd.f32 %v1617, %v1729
      %v1731 = vpop.f32.mrf.mxu0
      %v1732 = vadd.f32 %v1619, %v1731
      %v1733 = vpop.f32.mrf.mxu0
      %v1734 = vadd.f32 %v1621, %v1733
      %1735 = vmatprep.mubr.bf16.mxu0 %v539
      %1736 = vmatmul.mubr.bf16.gmra.mxu0 %v538
      %v1737 = vpop.f32.mrf.mxu0
      %v1738 = vadd.f32 %v1625, %v1737
      %v1739 = vpop.f32.mrf.mxu0
      %v1740 = vadd.f32 %v1627, %v1739
      %v1741 = vpop.f32.mrf.mxu0
      %v1742 = vadd.f32 %v1629, %v1741
      %v1743 = vpop.f32.mrf.mxu0
      %v1744 = vadd.f32 %v1631, %v1743
      %1745 = vmatprep.mubr.bf16.mxu0 %v543
      %1746 = vmatmul.mubr.bf16.gmra.mxu0 %v542
      %v1747 = vpop.f32.mrf.mxu0
      %v1748 = vadd.f32 %v1635, %v1747
      %v1749 = vpop.f32.mrf.mxu0
      %v1750 = vadd.f32 %v1637, %v1749
      %v1751 = vpop.f32.mrf.mxu0
      %v1752 = vadd.f32 %v1639, %v1751
      %v1753 = vpop.f32.mrf.mxu0
      %v1754 = vadd.f32 %v1641, %v1753
      %1755 = vmatprep.mubr.bf16.mxu0 %v547
      %1756 = vmatmul.mubr.bf16.gmra.mxu0 %v546
      %v1757 = vpop.f32.mrf.mxu0
      %v1758 = vadd.f32 %v1645, %v1757
      %v1759 = vpop.f32.mrf.mxu0
      %v1760 = vadd.f32 %v1647, %v1759
      %v1761 = vpop.f32.mrf.mxu0
      %v1762 = vadd.f32 %v1649, %v1761
      %v1763 = vpop.f32.mrf.mxu0
      %v1764 = vadd.f32 %v1651, %v1763
      %1765 = vdwg.mxu0
      %1766 = vmatprep.subr.bf16.mxu0 %v1201
      %1767 = vmatpush1.bf16.msra.mxu0 %v1200
      %1768 = vmatprep.subr.bf16.mxu0 %v1195
      %1769 = vmatpush1.bf16.msra.mxu0 %v1194
      %1770 = vmatprep.subr.bf16.mxu0 %v1189
      %1771 = vmatpush1.bf16.msra.mxu0 %v1188
      %1772 = vmatprep.subr.bf16.mxu0 %v1183
      %1773 = vmatpush1.bf16.msra.mxu0 %v1182
      %1774 = vmatprep.subr.bf16.mxu0 %v1177
      %1775 = vmatpush1.bf16.msra.mxu0 %v1176
      %1776 = vmatprep.subr.bf16.mxu0 %v1171
      %1777 = vmatpush1.bf16.msra.mxu0 %v1170
      %1778 = vmatprep.subr.bf16.mxu0 %v1165
      %1779 = vmatpush1.bf16.msra.mxu0 %v1164
      %1780 = vmatprep.subr.bf16.mxu0 %v1159
      %1781 = vmatpush1.bf16.msra.mxu0 %v1158
      %1782 = vmatprep.subr.bf16.mxu0 %v1249
      %1783 = vmatpush2.bf16.msra.mxu0 %v1248
      %1784 = vmatprep.subr.bf16.mxu0 %v1243
      %1785 = vmatpush2.bf16.msra.mxu0 %v1242
      %1786 = vmatprep.subr.bf16.mxu0 %v1237
      %1787 = vmatpush2.bf16.msra.mxu0 %v1236
      %1788 = vmatprep.subr.bf16.mxu0 %v1231
      %1789 = vmatpush2.bf16.msra.mxu0 %v1230
      %1790 = vmatprep.subr.bf16.mxu0 %v1225
      %1791 = vmatpush2.bf16.msra.mxu0 %v1224
      %1792 = vmatprep.subr.bf16.mxu0 %v1219
      %1793 = vmatpush2.bf16.msra.mxu0 %v1218
      %1794 = vmatprep.subr.bf16.mxu0 %v1213
      %1795 = vmatpush2.bf16.msra.mxu0 %v1212
      %1796 = vmatprep.subr.bf16.mxu0 %v1207
      %1797 = vmatpush2.bf16.msra.mxu0 %v1206
      %1798 = vmatprep.mubr.bf16.mxu0 %v517
      %1799 = vmatmul.mubr.bf16.gmra.mxu0 %v516
      %v1800 = vpop.f32.mrf.mxu0
      %v1801 = vadd.f32 0.0, %v1800
      %v1802 = vpop.f32.mrf.mxu0
      %v1803 = vadd.f32 0.0, %v1802
      %v1804 = vpop.f32.mrf.mxu0
      %v1805 = vadd.f32 0.0, %v1804
      %v1806 = vpop.f32.mrf.mxu0
      %v1807 = vadd.f32 0.0, %v1806
      %1808 = vmatprep.mubr.bf16.mxu0 %v521
      %1809 = vmatmul.mubr.bf16.gmra.mxu0 %v520
      %v1810 = vpop.f32.mrf.mxu0
      %v1811 = vadd.f32 0.0, %v1810
      %v1812 = vpop.f32.mrf.mxu0
      %v1813 = vadd.f32 0.0, %v1812
      %v1814 = vpop.f32.mrf.mxu0
      %v1815 = vadd.f32 0.0, %v1814
      %v1816 = vpop.f32.mrf.mxu0
      %v1817 = vadd.f32 0.0, %v1816
      %1818 = vmatprep.mubr.bf16.mxu0 %v525
      %1819 = vmatmul.mubr.bf16.gmra.mxu0 %v524
      %v1820 = vpop.f32.mrf.mxu0
      %v1821 = vadd.f32 0.0, %v1820
      %v1822 = vpop.f32.mrf.mxu0
      %v1823 = vadd.f32 0.0, %v1822
      %v1824 = vpop.f32.mrf.mxu0
      %v1825 = vadd.f32 0.0, %v1824
      %v1826 = vpop.f32.mrf.mxu0
      %v1827 = vadd.f32 0.0, %v1826
      %1828 = vmatprep.mubr.bf16.mxu0 %v529
      %1829 = vmatmul.mubr.bf16.gmra.mxu0 %v528
      %v1830 = vpop.f32.mrf.mxu0
      %v1831 = vadd.f32 0.0, %v1830
      %v1832 = vpop.f32.mrf.mxu0
      %v1833 = vadd.f32 0.0, %v1832
      %v1834 = vpop.f32.mrf.mxu0
      %v1835 = vadd.f32 0.0, %v1834
      %v1836 = vpop.f32.mrf.mxu0
      %v1837 = vadd.f32 0.0, %v1836
      %1838 = vmatprep.mubr.bf16.mxu0 %v533
      %1839 = vmatmul.mubr.bf16.gmra.mxu0 %v532
      %v1840 = vpop.f32.mrf.mxu0
      %v1841 = vadd.f32 0.0, %v1840
      %v1842 = vpop.f32.mrf.mxu0
      %v1843 = vadd.f32 0.0, %v1842
      %v1844 = vpop.f32.mrf.mxu0
      %v1845 = vadd.f32 0.0, %v1844
      %v1846 = vpop.f32.mrf.mxu0
      %v1847 = vadd.f32 0.0, %v1846
      %1848 = vmatprep.mubr.bf16.mxu0 %v537
      %1849 = vmatmul.mubr.bf16.gmra.mxu0 %v536
      %v1850 = vpop.f32.mrf.mxu0
      %v1851 = vadd.f32 0.0, %v1850
      %v1852 = vpop.f32.mrf.mxu0
      %v1853 = vadd.f32 0.0, %v1852
      %v1854 = vpop.f32.mrf.mxu0
      %v1855 = vadd.f32 0.0, %v1854
      %v1856 = vpop.f32.mrf.mxu0
      %v1857 = vadd.f32 0.0, %v1856
      %1858 = vmatprep.mubr.bf16.mxu0 %v541
      %1859 = vmatmul.mubr.bf16.gmra.mxu0 %v540
      %v1860 = vpop.f32.mrf.mxu0
      %v1861 = vadd.f32 0.0, %v1860
      %v1862 = vpop.f32.mrf.mxu0
      %v1863 = vadd.f32 0.0, %v1862
      %v1864 = vpop.f32.mrf.mxu0
      %v1865 = vadd.f32 0.0, %v1864
      %v1866 = vpop.f32.mrf.mxu0
      %v1867 = vadd.f32 0.0, %v1866
      %1868 = vmatprep.mubr.bf16.mxu0 %v545
      %1869 = vmatmul.mubr.bf16.gmra.mxu0 %v544
      %v1870 = vpop.f32.mrf.mxu0
      %v1871 = vadd.f32 0.0, %v1870
      %v1872 = vpop.f32.mrf.mxu0
      %v1873 = vadd.f32 0.0, %v1872
      %v1874 = vpop.f32.mrf.mxu0
      %v1875 = vadd.f32 0.0, %v1874
      %v1876 = vpop.f32.mrf.mxu0
      %v1877 = vadd.f32 0.0, %v1876
      %1878 = vdwg.mxu0
      %1879 = vmatprep.subr.bf16.mxu0 %v1297
      %1880 = vmatpush1.bf16.msra.mxu0 %v1296
      %1881 = vmatprep.subr.bf16.mxu0 %v1291
      %1882 = vmatpush1.bf16.msra.mxu0 %v1290
      %1883 = vmatprep.subr.bf16.mxu0 %v1285
      %1884 = vmatpush1.bf16.msra.mxu0 %v1284
      %1885 = vmatprep.subr.bf16.mxu0 %v1279
      %1886 = vmatpush1.bf16.msra.mxu0 %v1278
      %1887 = vmatprep.subr.bf16.mxu0 %v1273
      %1888 = vmatpush1.bf16.msra.mxu0 %v1272
      %1889 = vmatprep.subr.bf16.mxu0 %v1267
      %1890 = vmatpush1.bf16.msra.mxu0 %v1266
      %1891 = vmatprep.subr.bf16.mxu0 %v1261
      %1892 = vmatpush1.bf16.msra.mxu0 %v1260
      %1893 = vmatprep.subr.bf16.mxu0 %v1255
      %1894 = vmatpush1.bf16.msra.mxu0 %v1254
      %1895 = vmatprep.subr.bf16.mxu0 %v1345
      %1896 = vmatpush2.bf16.msra.mxu0 %v1344
      %1897 = vmatprep.subr.bf16.mxu0 %v1339
      %1898 = vmatpush2.bf16.msra.mxu0 %v1338
      %1899 = vmatprep.subr.bf16.mxu0 %v1333
      %1900 = vmatpush2.bf16.msra.mxu0 %v1332
      %1901 = vmatprep.subr.bf16.mxu0 %v1327
      %1902 = vmatpush2.bf16.msra.mxu0 %v1326
      %1903 = vmatprep.subr.bf16.mxu0 %v1321
      %1904 = vmatpush2.bf16.msra.mxu0 %v1320
      %1905 = vmatprep.subr.bf16.mxu0 %v1315
      %1906 = vmatpush2.bf16.msra.mxu0 %v1314
      %1907 = vmatprep.subr.bf16.mxu0 %v1309
      %1908 = vmatpush2.bf16.msra.mxu0 %v1308
      %1909 = vmatprep.subr.bf16.mxu0 %v1303
      %1910 = vmatpush2.bf16.msra.mxu0 %v1302
      %1911 = vmatprep.mubr.bf16.mxu0 %v519
      %1912 = vmatmul.mubr.bf16.gmra.mxu0 %v518
      %v1913 = vpop.f32.mrf.mxu0
      %v1914 = vadd.f32 %v1801, %v1913
      %v1915 = vpop.f32.mrf.mxu0
      %v1916 = vadd.f32 %v1803, %v1915
      %v1917 = vpop.f32.mrf.mxu0
      %v1918 = vadd.f32 %v1805, %v1917
      %v1919 = vpop.f32.mrf.mxu0
      %v1920 = vadd.f32 %v1807, %v1919
      %1921 = vmatprep.mubr.bf16.mxu0 %v523
      %1922 = vmatmul.mubr.bf16.gmra.mxu0 %v522
      %v1923 = vpop.f32.mrf.mxu0
      %v1924 = vadd.f32 %v1811, %v1923
      %v1925 = vpop.f32.mrf.mxu0
      %v1926 = vadd.f32 %v1813, %v1925
      %v1927 = vpop.f32.mrf.mxu0
      %v1928 = vadd.f32 %v1815, %v1927
      %v1929 = vpop.f32.mrf.mxu0
      %v1930 = vadd.f32 %v1817, %v1929
      %1931 = vmatprep.mubr.bf16.mxu0 %v527
      %1932 = vmatmul.mubr.bf16.gmra.mxu0 %v526
      %v1933 = vpop.f32.mrf.mxu0
      %v1934 = vadd.f32 %v1821, %v1933
      %v1935 = vpop.f32.mrf.mxu0
      %v1936 = vadd.f32 %v1823, %v1935
      %v1937 = vpop.f32.mrf.mxu0
      %v1938 = vadd.f32 %v1825, %v1937
      %v1939 = vpop.f32.mrf.mxu0
      %v1940 = vadd.f32 %v1827, %v1939
      %1941 = vmatprep.mubr.bf16.mxu0 %v531
      %1942 = vmatmul.mubr.bf16.gmra.mxu0 %v530
      %v1943 = vpop.f32.mrf.mxu0
      %v1944 = vadd.f32 %v1831, %v1943
      %v1945 = vpop.f32.mrf.mxu0
      %v1946 = vadd.f32 %v1833, %v1945
      %v1947 = vpop.f32.mrf.mxu0
      %v1948 = vadd.f32 %v1835, %v1947
      %v1949 = vpop.f32.mrf.mxu0
      %v1950 = vadd.f32 %v1837, %v1949
      %1951 = vmatprep.mubr.bf16.mxu0 %v535
      %1952 = vmatmul.mubr.bf16.gmra.mxu0 %v534
      %v1953 = vpop.f32.mrf.mxu0
      %v1954 = vadd.f32 %v1841, %v1953
      %v1955 = vpop.f32.mrf.mxu0
      %v1956 = vadd.f32 %v1843, %v1955
      %v1957 = vpop.f32.mrf.mxu0
      %v1958 = vadd.f32 %v1845, %v1957
      %v1959 = vpop.f32.mrf.mxu0
      %v1960 = vadd.f32 %v1847, %v1959
      %1961 = vmatprep.mubr.bf16.mxu0 %v539
      %1962 = vmatmul.mubr.bf16.gmra.mxu0 %v538
      %v1963 = vpop.f32.mrf.mxu0
      %v1964 = vadd.f32 %v1851, %v1963
      %v1965 = vpop.f32.mrf.mxu0
      %v1966 = vadd.f32 %v1853, %v1965
      %v1967 = vpop.f32.mrf.mxu0
      %v1968 = vadd.f32 %v1855, %v1967
      %v1969 = vpop.f32.mrf.mxu0
      %v1970 = vadd.f32 %v1857, %v1969
      %1971 = vmatprep.mubr.bf16.mxu0 %v543
      %1972 = vmatmul.mubr.bf16.gmra.mxu0 %v542
      %v1973 = vpop.f32.mrf.mxu0
      %v1974 = vadd.f32 %v1861, %v1973
      %v1975 = vpop.f32.mrf.mxu0
      %v1976 = vadd.f32 %v1863, %v1975
      %v1977 = vpop.f32.mrf.mxu0
      %v1978 = vadd.f32 %v1865, %v1977
      %v1979 = vpop.f32.mrf.mxu0
      %v1980 = vadd.f32 %v1867, %v1979
      %1981 = vmatprep.mubr.bf16.mxu0 %v547
      %1982 = vmatmul.mubr.bf16.gmra.mxu0 %v546
      %v1983 = vpop.f32.mrf.mxu0
      %v1984 = vadd.f32 %v1871, %v1983
      %v1985 = vpop.f32.mrf.mxu0
      %v1986 = vadd.f32 %v1873, %v1985
      %v1987 = vpop.f32.mrf.mxu0
      %v1988 = vadd.f32 %v1875, %v1987
      %v1989 = vpop.f32.mrf.mxu0
      %v1990 = vadd.f32 %v1877, %v1989
      %1991 = vdwg.mxu0
      %1992 = vmatprep.subr.bf16.mxu0 %v1203
      %1993 = vmatpush1.bf16.msra.mxu0 %v1202
      %1994 = vmatprep.subr.bf16.mxu0 %v1197
      %1995 = vmatpush1.bf16.msra.mxu0 %v1196
      %1996 = vmatprep.subr.bf16.mxu0 %v1191
      %1997 = vmatpush1.bf16.msra.mxu0 %v1190
      %1998 = vmatprep.subr.bf16.mxu0 %v1185
      %1999 = vmatpush1.bf16.msra.mxu0 %v1184
      %2000 = vmatprep.subr.bf16.mxu0 %v1179
      %2001 = vmatpush1.bf16.msra.mxu0 %v1178
      %2002 = vmatprep.subr.bf16.mxu0 %v1173
      %2003 = vmatpush1.bf16.msra.mxu0 %v1172
      %2004 = vmatprep.subr.bf16.mxu0 %v1167
      %2005 = vmatpush1.bf16.msra.mxu0 %v1166
      %2006 = vmatprep.subr.bf16.mxu0 %v1161
      %2007 = vmatpush1.bf16.msra.mxu0 %v1160
      %2008 = vmatprep.subr.bf16.mxu0 %v1251
      %2009 = vmatpush2.bf16.msra.mxu0 %v1250
      %2010 = vmatprep.subr.bf16.mxu0 %v1245
      %2011 = vmatpush2.bf16.msra.mxu0 %v1244
      %2012 = vmatprep.subr.bf16.mxu0 %v1239
      %2013 = vmatpush2.bf16.msra.mxu0 %v1238
      %2014 = vmatprep.subr.bf16.mxu0 %v1233
      %2015 = vmatpush2.bf16.msra.mxu0 %v1232
      %2016 = vmatprep.subr.bf16.mxu0 %v1227
      %2017 = vmatpush2.bf16.msra.mxu0 %v1226
      %2018 = vmatprep.subr.bf16.mxu0 %v1221
      %2019 = vmatpush2.bf16.msra.mxu0 %v1220
      %2020 = vmatprep.subr.bf16.mxu0 %v1215
      %2021 = vmatpush2.bf16.msra.mxu0 %v1214
      %2022 = vmatprep.subr.bf16.mxu0 %v1209
      %2023 = vmatpush2.bf16.msra.mxu0 %v1208
      %2024 = vmatprep.mubr.bf16.mxu0 %v517
      %2025 = vmatmul.mubr.bf16.gmra.mxu0 %v516
      %v2026 = vpop.f32.mrf.mxu0
      %v2027 = vadd.f32 0.0, %v2026
      %v2028 = vpop.f32.mrf.mxu0
      %v2029 = vadd.f32 0.0, %v2028
      %v2030 = vpop.f32.mrf.mxu0
      %v2031 = vadd.f32 0.0, %v2030
      %v2032 = vpop.f32.mrf.mxu0
      %v2033 = vadd.f32 0.0, %v2032
      %2034 = vmatprep.mubr.bf16.mxu0 %v521
      %2035 = vmatmul.mubr.bf16.gmra.mxu0 %v520
      %v2036 = vpop.f32.mrf.mxu0
      %v2037 = vadd.f32 0.0, %v2036
      %v2038 = vpop.f32.mrf.mxu0
      %v2039 = vadd.f32 0.0, %v2038
      %v2040 = vpop.f32.mrf.mxu0
      %v2041 = vadd.f32 0.0, %v2040
      %v2042 = vpop.f32.mrf.mxu0
      %v2043 = vadd.f32 0.0, %v2042
      %2044 = vmatprep.mubr.bf16.mxu0 %v525
      %2045 = vmatmul.mubr.bf16.gmra.mxu0 %v524
      %v2046 = vpop.f32.mrf.mxu0
      %v2047 = vadd.f32 0.0, %v2046
      %v2048 = vpop.f32.mrf.mxu0
      %v2049 = vadd.f32 0.0, %v2048
      %v2050 = vpop.f32.mrf.mxu0
      %v2051 = vadd.f32 0.0, %v2050
      %v2052 = vpop.f32.mrf.mxu0
      %v2053 = vadd.f32 0.0, %v2052
      %2054 = vmatprep.mubr.bf16.mxu0 %v529
      %2055 = vmatmul.mubr.bf16.gmra.mxu0 %v528
      %v2056 = vpop.f32.mrf.mxu0
      %v2057 = vadd.f32 0.0, %v2056
      %v2058 = vpop.f32.mrf.mxu0
      %v2059 = vadd.f32 0.0, %v2058
      %v2060 = vpop.f32.mrf.mxu0
      %v2061 = vadd.f32 0.0, %v2060
      %v2062 = vpop.f32.mrf.mxu0
      %v2063 = vadd.f32 0.0, %v2062
      %2064 = vmatprep.mubr.bf16.mxu0 %v533
      %2065 = vmatmul.mubr.bf16.gmra.mxu0 %v532
      %v2066 = vpop.f32.mrf.mxu0
      %v2067 = vadd.f32 0.0, %v2066
      %v2068 = vpop.f32.mrf.mxu0
      %v2069 = vadd.f32 0.0, %v2068
      %v2070 = vpop.f32.mrf.mxu0
      %v2071 = vadd.f32 0.0, %v2070
      %v2072 = vpop.f32.mrf.mxu0
      %v2073 = vadd.f32 0.0, %v2072
      %2074 = vmatprep.mubr.bf16.mxu0 %v537
      %2075 = vmatmul.mubr.bf16.gmra.mxu0 %v536
      %v2076 = vpop.f32.mrf.mxu0
      %v2077 = vadd.f32 0.0, %v2076
      %v2078 = vpop.f32.mrf.mxu0
      %v2079 = vadd.f32 0.0, %v2078
      %v2080 = vpop.f32.mrf.mxu0
      %v2081 = vadd.f32 0.0, %v2080
      %v2082 = vpop.f32.mrf.mxu0
      %v2083 = vadd.f32 0.0, %v2082
      %2084 = vmatprep.mubr.bf16.mxu0 %v541
      %2085 = vmatmul.mubr.bf16.gmra.mxu0 %v540
      %v2086 = vpop.f32.mrf.mxu0
      %v2087 = vadd.f32 0.0, %v2086
      %v2088 = vpop.f32.mrf.mxu0
      %v2089 = vadd.f32 0.0, %v2088
      %v2090 = vpop.f32.mrf.mxu0
      %v2091 = vadd.f32 0.0, %v2090
      %v2092 = vpop.f32.mrf.mxu0
      %v2093 = vadd.f32 0.0, %v2092
      %2094 = vmatprep.mubr.bf16.mxu0 %v545
      %2095 = vmatmul.mubr.bf16.gmra.mxu0 %v544
      %v2096 = vpop.f32.mrf.mxu0
      %v2097 = vadd.f32 0.0, %v2096
      %v2098 = vpop.f32.mrf.mxu0
      %v2099 = vadd.f32 0.0, %v2098
      %v2100 = vpop.f32.mrf.mxu0
      %v2101 = vadd.f32 0.0, %v2100
      %v2102 = vpop.f32.mrf.mxu0
      %v2103 = vadd.f32 0.0, %v2102
      %2104 = vdwg.mxu0
      %2105 = vmatprep.subr.bf16.mxu0 %v1299
      %2106 = vmatpush1.bf16.msra.mxu0 %v1298
      %2107 = vmatprep.subr.bf16.mxu0 %v1293
      %2108 = vmatpush1.bf16.msra.mxu0 %v1292
      %2109 = vmatprep.subr.bf16.mxu0 %v1287
      %2110 = vmatpush1.bf16.msra.mxu0 %v1286
      %2111 = vmatprep.subr.bf16.mxu0 %v1281
      %2112 = vmatpush1.bf16.msra.mxu0 %v1280
      %2113 = vmatprep.subr.bf16.mxu0 %v1275
      %2114 = vmatpush1.bf16.msra.mxu0 %v1274
      %2115 = vmatprep.subr.bf16.mxu0 %v1269
      %2116 = vmatpush1.bf16.msra.mxu0 %v1268
      %2117 = vmatprep.subr.bf16.mxu0 %v1263
      %2118 = vmatpush1.bf16.msra.mxu0 %v1262
      %2119 = vmatprep.subr.bf16.mxu0 %v1257
      %2120 = vmatpush1.bf16.msra.mxu0 %v1256
      %2121 = vmatprep.subr.bf16.mxu0 %v1347
      %2122 = vmatpush2.bf16.msra.mxu0 %v1346
      %2123 = vmatprep.subr.bf16.mxu0 %v1341
      %2124 = vmatpush2.bf16.msra.mxu0 %v1340
      %2125 = vmatprep.subr.bf16.mxu0 %v1335
      %2126 = vmatpush2.bf16.msra.mxu0 %v1334
      %2127 = vmatprep.subr.bf16.mxu0 %v1329
      %2128 = vmatpush2.bf16.msra.mxu0 %v1328
      %2129 = vmatprep.subr.bf16.mxu0 %v1323
      %2130 = vmatpush2.bf16.msra.mxu0 %v1322
      %2131 = vmatprep.subr.bf16.mxu0 %v1317
      %2132 = vmatpush2.bf16.msra.mxu0 %v1316
      %2133 = vmatprep.subr.bf16.mxu0 %v1311
      %2134 = vmatpush2.bf16.msra.mxu0 %v1310
      %2135 = vmatprep.subr.bf16.mxu0 %v1305
      %2136 = vmatpush2.bf16.msra.mxu0 %v1304
      %2137 = vmatprep.mubr.bf16.mxu0 %v519
      %2138 = vmatmul.mubr.bf16.gmra.mxu0 %v518
      %v2139 = vpop.f32.mrf.mxu0
      %v2140 = vadd.f32 %v2027, %v2139
      %v2141 = vpop.f32.mrf.mxu0
      %v2142 = vadd.f32 %v2029, %v2141
      %v2143 = vpop.f32.mrf.mxu0
      %v2144 = vadd.f32 %v2031, %v2143
      %v2145 = vpop.f32.mrf.mxu0
      %v2146 = vadd.f32 %v2033, %v2145
      %2147 = vmatprep.mubr.bf16.mxu0 %v523
      %2148 = vmatmul.mubr.bf16.gmra.mxu0 %v522
      %v2149 = vpop.f32.mrf.mxu0
      %v2150 = vadd.f32 %v2037, %v2149
      %v2151 = vpop.f32.mrf.mxu0
      %v2152 = vadd.f32 %v2039, %v2151
      %v2153 = vpop.f32.mrf.mxu0
      %v2154 = vadd.f32 %v2041, %v2153
      %v2155 = vpop.f32.mrf.mxu0
      %v2156 = vadd.f32 %v2043, %v2155
      %2157 = vmatprep.mubr.bf16.mxu0 %v527
      %2158 = vmatmul.mubr.bf16.gmra.mxu0 %v526
      %v2159 = vpop.f32.mrf.mxu0
      %v2160 = vadd.f32 %v2047, %v2159
      %v2161 = vpop.f32.mrf.mxu0
      %v2162 = vadd.f32 %v2049, %v2161
      %v2163 = vpop.f32.mrf.mxu0
      %v2164 = vadd.f32 %v2051, %v2163
      %v2165 = vpop.f32.mrf.mxu0
      %v2166 = vadd.f32 %v2053, %v2165
      %2167 = vmatprep.mubr.bf16.mxu0 %v531
      %2168 = vmatmul.mubr.bf16.gmra.mxu0 %v530
      %v2169 = vpop.f32.mrf.mxu0
      %v2170 = vadd.f32 %v2057, %v2169
      %v2171 = vpop.f32.mrf.mxu0
      %v2172 = vadd.f32 %v2059, %v2171
      %v2173 = vpop.f32.mrf.mxu0
      %v2174 = vadd.f32 %v2061, %v2173
      %v2175 = vpop.f32.mrf.mxu0
      %v2176 = vadd.f32 %v2063, %v2175
      %2177 = vmatprep.mubr.bf16.mxu0 %v535
      %2178 = vmatmul.mubr.bf16.gmra.mxu0 %v534
      %v2179 = vpop.f32.mrf.mxu0
      %v2180 = vadd.f32 %v2067, %v2179
      %v2181 = vpop.f32.mrf.mxu0
      %v2182 = vadd.f32 %v2069, %v2181
      %v2183 = vpop.f32.mrf.mxu0
      %v2184 = vadd.f32 %v2071, %v2183
      %v2185 = vpop.f32.mrf.mxu0
      %v2186 = vadd.f32 %v2073, %v2185
      %2187 = vmatprep.mubr.bf16.mxu0 %v539
      %2188 = vmatmul.mubr.bf16.gmra.mxu0 %v538
      %v2189 = vpop.f32.mrf.mxu0
      %v2190 = vadd.f32 %v2077, %v2189
      %v2191 = vpop.f32.mrf.mxu0
      %v2192 = vadd.f32 %v2079, %v2191
      %v2193 = vpop.f32.mrf.mxu0
      %v2194 = vadd.f32 %v2081, %v2193
      %v2195 = vpop.f32.mrf.mxu0
      %v2196 = vadd.f32 %v2083, %v2195
      %2197 = vmatprep.mubr.bf16.mxu0 %v543
      %2198 = vmatmul.mubr.bf16.gmra.mxu0 %v542
      %v2199 = vpop.f32.mrf.mxu0
      %v2200 = vadd.f32 %v2087, %v2199
      %v2201 = vpop.f32.mrf.mxu0
      %v2202 = vadd.f32 %v2089, %v2201
      %v2203 = vpop.f32.mrf.mxu0
      %v2204 = vadd.f32 %v2091, %v2203
      %v2205 = vpop.f32.mrf.mxu0
      %v2206 = vadd.f32 %v2093, %v2205
      %2207 = vmatprep.mubr.bf16.mxu0 %v547
      %2208 = vmatmul.mubr.bf16.gmra.mxu0 %v546
      %v2209 = vpop.f32.mrf.mxu0
      %v2210 = vadd.f32 %v2097, %v2209
      %v2211 = vpop.f32.mrf.mxu0
      %v2212 = vadd.f32 %v2099, %v2211
      %v2213 = vpop.f32.mrf.mxu0
      %v2214 = vadd.f32 %v2101, %v2213
      %v2215 = vpop.f32.mrf.mxu0
      %v2216 = vadd.f32 %v2103, %v2215
      %2217 = vdwg.mxu0
      %v2218 = vmul.f32 %v1688, %v1688
      %v2219 = vmul.f32 %v1690, %v1690
      %v2220 = vmul.f32 %v1914, %v1914
      %v2221 = vmul.f32 %v1692, %v1692
      %v2222 = vmul.f32 %v1694, %v1694
      %v2223 = vmul.f32 %v1918, %v1918
      %v2224 = vmul.f32 %v1698, %v1698
      %v2225 = vmul.f32 %v1700, %v1700
      %v2226 = vmul.f32 %v1924, %v1924
      %v2227 = vmul.f32 %v1702, %v1702
      %v2228 = vmul.f32 %v1704, %v1704
      %v2229 = vmul.f32 %v1928, %v1928
      %v2230 = vmul.f32 %v1708, %v1708
      %v2231 = vmul.f32 %v1710, %v1710
      %v2232 = vmul.f32 %v1934, %v1934
      %v2233 = vmul.f32 %v1712, %v1712
      %v2234 = vmul.f32 %v1714, %v1714
      %v2235 = vmul.f32 %v1938, %v1938
      %v2236 = vmul.f32 %v1718, %v1718
      %v2237 = vmul.f32 %v1720, %v1720
      %v2238 = vmul.f32 %v1944, %v1944
      %v2239 = vmul.f32 %v1722, %v1722
      %v2240 = vmul.f32 %v1724, %v1724
      %v2241 = vmul.f32 %v1948, %v1948
      %v2242 = vmul.f32 %v1728, %v1728
      %v2243 = vmul.f32 %v1730, %v1730
      %v2244 = vmul.f32 %v1954, %v1954
      %v2245 = vmul.f32 %v1732, %v1732
      %v2246 = vmul.f32 %v1734, %v1734
      %v2247 = vmul.f32 %v1958, %v1958
      %v2248 = vmul.f32 %v1738, %v1738
      %v2249 = vmul.f32 %v1740, %v1740
      %v2250 = vmul.f32 %v1964, %v1964
      %v2251 = vmul.f32 %v1742, %v1742
      %v2252 = vmul.f32 %v1744, %v1744
      %v2253 = vmul.f32 %v1968, %v1968
      %v2254 = vmul.f32 %v1748, %v1748
      %v2255 = vmul.f32 %v1750, %v1750
      %v2256 = vmul.f32 %v1974, %v1974
      %v2257 = vmul.f32 %v1752, %v1752
      %v2258 = vmul.f32 %v1754, %v1754
      %v2259 = vmul.f32 %v1978, %v1978
      %v2260 = vmul.f32 %v1758, %v1758
      %v2261 = vmul.f32 %v1760, %v1760
      %v2262 = vmul.f32 %v1984, %v1984
      %v2263 = vmul.f32 %v1762, %v1762
      %v2264 = vmul.f32 %v1764, %v1764
      %v2265 = vmul.f32 %v1988, %v1988
      %v2266 = vmul.f32 %v1916, %v1916
      %v2267 = vmul.f32 %v2140, %v2140
      %v2268 = vmul.f32 %v2142, %v2142
      %v2269 = vmul.f32 %v1920, %v1920
      %v2270 = vmul.f32 %v2144, %v2144
      %v2271 = vmul.f32 %v2146, %v2146
      %v2272 = vmul.f32 %v1926, %v1926
      %v2273 = vmul.f32 %v2150, %v2150
      %v2274 = vmul.f32 %v2152, %v2152
      %v2275 = vmul.f32 %v1930, %v1930
      %v2276 = vmul.f32 %v2154, %v2154
      %v2277 = vmul.f32 %v2156, %v2156
      %v2278 = vmul.f32 %v1936, %v1936
      %v2279 = vmul.f32 %v2160, %v2160
      %v2280 = vmul.f32 %v2162, %v2162
      %v2281 = vmul.f32 %v1940, %v1940
      %v2282 = vmul.f32 %v2164, %v2164
      %v2283 = vmul.f32 %v2166, %v2166
      %v2284 = vmul.f32 %v1946, %v1946
      %v2285 = vmul.f32 %v2170, %v2170
      %v2286 = vmul.f32 %v2172, %v2172
      %v2287 = vmul.f32 %v1950, %v1950
      %v2288 = vmul.f32 %v2174, %v2174
      %v2289 = vmul.f32 %v2176, %v2176
      %v2290 = vmul.f32 %v1956, %v1956
      %v2291 = vmul.f32 %v2180, %v2180
      %v2292 = vmul.f32 %v2182, %v2182
      %v2293 = vmul.f32 %v1960, %v1960
      %v2294 = vmul.f32 %v2184, %v2184
      %v2295 = vmul.f32 %v2186, %v2186
      %v2296 = vmul.f32 %v1966, %v1966
      %v2297 = vmul.f32 %v2190, %v2190
      %v2298 = vmul.f32 %v2192, %v2192
      %v2299 = vmul.f32 %v1970, %v1970
      %v2300 = vmul.f32 %v2194, %v2194
      %v2301 = vmul.f32 %v2196, %v2196
      %v2302 = vmul.f32 %v1976, %v1976
      %v2303 = vmul.f32 %v2200, %v2200
      %v2304 = vmul.f32 %v2202, %v2202
      %v2305 = vmul.f32 %v1980, %v1980
      %v2306 = vmul.f32 %v2204, %v2204
      %v2307 = vmul.f32 %v2206, %v2206
      %v2308 = vmul.f32 %v1986, %v1986
      %v2309 = vmul.f32 %v2210, %v2210
      %v2310 = vmul.f32 %v2212, %v2212
      %v2311 = vmul.f32 %v1990, %v1990
      %v2312 = vmul.f32 %v2214, %v2214
      %v2313 = vmul.f32 %v2216, %v2216
      %v2314 = vadd.f32 %v2218, %v2266
      %v2315 = vadd.f32 %v2219, %v2267
      %v2316 = vadd.f32 %v2220, %v2268
      %v2317 = vadd.f32 %v2221, %v2269
      %v2318 = vadd.f32 %v2222, %v2270
      %v2319 = vadd.f32 %v2223, %v2271
      %v2320 = vadd.f32 %v2224, %v2272
      %v2321 = vadd.f32 %v2225, %v2273
      %v2322 = vadd.f32 %v2226, %v2274
      %v2323 = vadd.f32 %v2227, %v2275
      %v2324 = vadd.f32 %v2228, %v2276
      %v2325 = vadd.f32 %v2229, %v2277
      %v2326 = vadd.f32 %v2230, %v2278
      %v2327 = vadd.f32 %v2231, %v2279
      %v2328 = vadd.f32 %v2232, %v2280
      %v2329 = vadd.f32 %v2233, %v2281
      %v2330 = vadd.f32 %v2234, %v2282
      %v2331 = vadd.f32 %v2235, %v2283
      %v2332 = vadd.f32 %v2236, %v2284
      %v2333 = vadd.f32 %v2237, %v2285
      %v2334 = vadd.f32 %v2238, %v2286
      %v2335 = vadd.f32 %v2239, %v2287
      %v2336 = vadd.f32 %v2240, %v2288
      %v2337 = vadd.f32 %v2241, %v2289
      %v2338 = vadd.f32 %v2242, %v2290
      %v2339 = vadd.f32 %v2243, %v2291
      %v2340 = vadd.f32 %v2244, %v2292
      %v2341 = vadd.f32 %v2245, %v2293
      %v2342 = vadd.f32 %v2246, %v2294
      %v2343 = vadd.f32 %v2247, %v2295
      %v2344 = vadd.f32 %v2248, %v2296
      %v2345 = vadd.f32 %v2249, %v2297
      %v2346 = vadd.f32 %v2250, %v2298
      %v2347 = vadd.f32 %v2251, %v2299
      %v2348 = vadd.f32 %v2252, %v2300
      %v2349 = vadd.f32 %v2253, %v2301
      %v2350 = vadd.f32 %v2254, %v2302
      %v2351 = vadd.f32 %v2255, %v2303
      %v2352 = vadd.f32 %v2256, %v2304
      %v2353 = vadd.f32 %v2257, %v2305
      %v2354 = vadd.f32 %v2258, %v2306
      %v2355 = vadd.f32 %v2259, %v2307
      %v2356 = vadd.f32 %v2260, %v2308
      %v2357 = vadd.f32 %v2261, %v2309
      %v2358 = vadd.f32 %v2262, %v2310
      %v2359 = vadd.f32 %v2263, %v2311
      %v2360 = vadd.f32 %v2264, %v2312
      %v2361 = vadd.f32 %v2265, %v2313
      %v2362 = vmax.f32 %v2314, 1e-07
      %v2363 = vmax.f32 %v2315, 1e-07
      %v2364 = vmax.f32 %v2316, 1e-07
      %v2365 = vmax.f32 %v2317, 1e-07
      %v2366 = vmax.f32 %v2318, 1e-07
      %v2367 = vmax.f32 %v2319, 1e-07
      %v2368 = vmax.f32 %v2320, 1e-07
      %v2369 = vmax.f32 %v2321, 1e-07
      %v2370 = vmax.f32 %v2322, 1e-07
      %v2371 = vmax.f32 %v2323, 1e-07
      %v2372 = vmax.f32 %v2324, 1e-07
      %v2373 = vmax.f32 %v2325, 1e-07
      %v2374 = vmax.f32 %v2326, 1e-07
      %v2375 = vmax.f32 %v2327, 1e-07
      %v2376 = vmax.f32 %v2328, 1e-07
      %v2377 = vmax.f32 %v2329, 1e-07
      %v2378 = vmax.f32 %v2330, 1e-07
      %v2379 = vmax.f32 %v2331, 1e-07
      %v2380 = vmax.f32 %v2332, 1e-07
      %v2381 = vmax.f32 %v2333, 1e-07
      %v2382 = vmax.f32 %v2334, 1e-07
      %v2383 = vmax.f32 %v2335, 1e-07
      %v2384 = vmax.f32 %v2336, 1e-07
      %v2385 = vmax.f32 %v2337, 1e-07
      %v2386 = vmax.f32 %v2338, 1e-07
      %v2387 = vmax.f32 %v2339, 1e-07
      %v2388 = vmax.f32 %v2340, 1e-07
      %v2389 = vmax.f32 %v2341, 1e-07
      %v2390 = vmax.f32 %v2342, 1e-07
      %v2391 = vmax.f32 %v2343, 1e-07
      %v2392 = vmax.f32 %v2344, 1e-07
      %v2393 = vmax.f32 %v2345, 1e-07
      %v2394 = vmax.f32 %v2346, 1e-07
      %v2395 = vmax.f32 %v2347, 1e-07
      %v2396 = vmax.f32 %v2348, 1e-07
      %v2397 = vmax.f32 %v2349, 1e-07
      %v2398 = vmax.f32 %v2350, 1e-07
      %v2399 = vmax.f32 %v2351, 1e-07
      %v2400 = vmax.f32 %v2352, 1e-07
      %v2401 = vmax.f32 %v2353, 1e-07
      %v2402 = vmax.f32 %v2354, 1e-07
      %v2403 = vmax.f32 %v2355, 1e-07
      %v2404 = vmax.f32 %v2356, 1e-07
      %v2405 = vmax.f32 %v2357, 1e-07
      %v2406 = vmax.f32 %v2358, 1e-07
      %v2407 = vmax.f32 %v2359, 1e-07
      %v2408 = vmax.f32 %v2360, 1e-07
      %v2409 = vmax.f32 %v2361, 1e-07
      %v2410 = vrsqrt.pop %v2362
      %v2411 = vmul.f32 %v2362, %v2410
      %vm2412 = vcmp.eq.f32.partialorder %v2362, inf
      %v2413 = vsel %vm2412, %v2362, %v2411
      %vm2414 = vcmp.eq.f32.partialorder %v2362, 0.0
      %v2415 = vand.u32 %v2362, 2147483648
      %v2416 = vsel %vm2414, %v2415, %v2413
      %v2417 = vrsqrt.pop %v2363
      %v2418 = vmul.f32 %v2363, %v2417
      %vm2419 = vcmp.eq.f32.partialorder %v2363, inf
      %v2420 = vsel %vm2419, %v2363, %v2418
      %vm2421 = vcmp.eq.f32.partialorder %v2363, 0.0
      %v2422 = vand.u32 %v2363, 2147483648
      %v2423 = vsel %vm2421, %v2422, %v2420
      %v2424 = vrsqrt.pop %v2364
      %v2425 = vmul.f32 %v2364, %v2424
      %vm2426 = vcmp.eq.f32.partialorder %v2364, inf
      %v2427 = vsel %vm2426, %v2364, %v2425
      %vm2428 = vcmp.eq.f32.partialorder %v2364, 0.0
      %v2429 = vand.u32 %v2364, 2147483648
      %v2430 = vsel %vm2428, %v2429, %v2427
      %v2431 = vrsqrt.pop %v2365
      %v2432 = vmul.f32 %v2365, %v2431
      %vm2433 = vcmp.eq.f32.partialorder %v2365, inf
      %v2434 = vsel %vm2433, %v2365, %v2432
      %vm2435 = vcmp.eq.f32.partialorder %v2365, 0.0
      %v2436 = vand.u32 %v2365, 2147483648
      %v2437 = vsel %vm2435, %v2436, %v2434
      %v2438 = vrsqrt.pop %v2366
      %v2439 = vmul.f32 %v2366, %v2438
      %vm2440 = vcmp.eq.f32.partialorder %v2366, inf
      %v2441 = vsel %vm2440, %v2366, %v2439
      %vm2442 = vcmp.eq.f32.partialorder %v2366, 0.0
      %v2443 = vand.u32 %v2366, 2147483648
      %v2444 = vsel %vm2442, %v2443, %v2441
      %v2445 = vrsqrt.pop %v2367
      %v2446 = vmul.f32 %v2367, %v2445
      %vm2447 = vcmp.eq.f32.partialorder %v2367, inf
      %v2448 = vsel %vm2447, %v2367, %v2446
      %vm2449 = vcmp.eq.f32.partialorder %v2367, 0.0
      %v2450 = vand.u32 %v2367, 2147483648
      %v2451 = vsel %vm2449, %v2450, %v2448
      %v2452 = vrsqrt.pop %v2368
      %v2453 = vmul.f32 %v2368, %v2452
      %vm2454 = vcmp.eq.f32.partialorder %v2368, inf
      %v2455 = vsel %vm2454, %v2368, %v2453
      %vm2456 = vcmp.eq.f32.partialorder %v2368, 0.0
      %v2457 = vand.u32 %v2368, 2147483648
      %v2458 = vsel %vm2456, %v2457, %v2455
      %v2459 = vrsqrt.pop %v2369
      %v2460 = vmul.f32 %v2369, %v2459
      %vm2461 = vcmp.eq.f32.partialorder %v2369, inf
      %v2462 = vsel %vm2461, %v2369, %v2460
      %vm2463 = vcmp.eq.f32.partialorder %v2369, 0.0
      %v2464 = vand.u32 %v2369, 2147483648
      %v2465 = vsel %vm2463, %v2464, %v2462
      %v2466 = vrsqrt.pop %v2370
      %v2467 = vmul.f32 %v2370, %v2466
      %vm2468 = vcmp.eq.f32.partialorder %v2370, inf
      %v2469 = vsel %vm2468, %v2370, %v2467
      %vm2470 = vcmp.eq.f32.partialorder %v2370, 0.0
      %v2471 = vand.u32 %v2370, 2147483648
      %v2472 = vsel %vm2470, %v2471, %v2469
      %v2473 = vrsqrt.pop %v2371
      %v2474 = vmul.f32 %v2371, %v2473
      %vm2475 = vcmp.eq.f32.partialorder %v2371, inf
      %v2476 = vsel %vm2475, %v2371, %v2474
      %vm2477 = vcmp.eq.f32.partialorder %v2371, 0.0
      %v2478 = vand.u32 %v2371, 2147483648
      %v2479 = vsel %vm2477, %v2478, %v2476
      %v2480 = vrsqrt.pop %v2372
      %v2481 = vmul.f32 %v2372, %v2480
      %vm2482 = vcmp.eq.f32.partialorder %v2372, inf
      %v2483 = vsel %vm2482, %v2372, %v2481
      %vm2484 = vcmp.eq.f32.partialorder %v2372, 0.0
      %v2485 = vand.u32 %v2372, 2147483648
      %v2486 = vsel %vm2484, %v2485, %v2483
      %v2487 = vrsqrt.pop %v2373
      %v2488 = vmul.f32 %v2373, %v2487
      %vm2489 = vcmp.eq.f32.partialorder %v2373, inf
      %v2490 = vsel %vm2489, %v2373, %v2488
      %vm2491 = vcmp.eq.f32.partialorder %v2373, 0.0
      %v2492 = vand.u32 %v2373, 2147483648
      %v2493 = vsel %vm2491, %v2492, %v2490
      %v2494 = vrsqrt.pop %v2374
      %v2495 = vmul.f32 %v2374, %v2494
      %vm2496 = vcmp.eq.f32.partialorder %v2374, inf
      %v2497 = vsel %vm2496, %v2374, %v2495
      %vm2498 = vcmp.eq.f32.partialorder %v2374, 0.0
      %v2499 = vand.u32 %v2374, 2147483648
      %v2500 = vsel %vm2498, %v2499, %v2497
      %v2501 = vrsqrt.pop %v2375
      %v2502 = vmul.f32 %v2375, %v2501
      %vm2503 = vcmp.eq.f32.partialorder %v2375, inf
      %v2504 = vsel %vm2503, %v2375, %v2502
      %vm2505 = vcmp.eq.f32.partialorder %v2375, 0.0
      %v2506 = vand.u32 %v2375, 2147483648
      %v2507 = vsel %vm2505, %v2506, %v2504
      %v2508 = vrsqrt.pop %v2376
      %v2509 = vmul.f32 %v2376, %v2508
      %vm2510 = vcmp.eq.f32.partialorder %v2376, inf
      %v2511 = vsel %vm2510, %v2376, %v2509
      %vm2512 = vcmp.eq.f32.partialorder %v2376, 0.0
      %v2513 = vand.u32 %v2376, 2147483648
      %v2514 = vsel %vm2512, %v2513, %v2511
      %v2515 = vrsqrt.pop %v2377
      %v2516 = vmul.f32 %v2377, %v2515
      %vm2517 = vcmp.eq.f32.partialorder %v2377, inf
      %v2518 = vsel %vm2517, %v2377, %v2516
      %vm2519 = vcmp.eq.f32.partialorder %v2377, 0.0
      %v2520 = vand.u32 %v2377, 2147483648
      %v2521 = vsel %vm2519, %v2520, %v2518
      %v2522 = vrsqrt.pop %v2378
      %v2523 = vmul.f32 %v2378, %v2522
      %vm2524 = vcmp.eq.f32.partialorder %v2378, inf
      %v2525 = vsel %vm2524, %v2378, %v2523
      %vm2526 = vcmp.eq.f32.partialorder %v2378, 0.0
      %v2527 = vand.u32 %v2378, 2147483648
      %v2528 = vsel %vm2526, %v2527, %v2525
      %v2529 = vrsqrt.pop %v2379
      %v2530 = vmul.f32 %v2379, %v2529
      %vm2531 = vcmp.eq.f32.partialorder %v2379, inf
      %v2532 = vsel %vm2531, %v2379, %v2530
      %vm2533 = vcmp.eq.f32.partialorder %v2379, 0.0
      %v2534 = vand.u32 %v2379, 2147483648
      %v2535 = vsel %vm2533, %v2534, %v2532
      %v2536 = vrsqrt.pop %v2380
      %v2537 = vmul.f32 %v2380, %v2536
      %vm2538 = vcmp.eq.f32.partialorder %v2380, inf
      %v2539 = vsel %vm2538, %v2380, %v2537
      %vm2540 = vcmp.eq.f32.partialorder %v2380, 0.0
      %v2541 = vand.u32 %v2380, 2147483648
      %v2542 = vsel %vm2540, %v2541, %v2539
      %v2543 = vrsqrt.pop %v2381
      %v2544 = vmul.f32 %v2381, %v2543
      %vm2545 = vcmp.eq.f32.partialorder %v2381, inf
      %v2546 = vsel %vm2545, %v2381, %v2544
      %vm2547 = vcmp.eq.f32.partialorder %v2381, 0.0
      %v2548 = vand.u32 %v2381, 2147483648
      %v2549 = vsel %vm2547, %v2548, %v2546
      %v2550 = vrsqrt.pop %v2382
      %v2551 = vmul.f32 %v2382, %v2550
      %vm2552 = vcmp.eq.f32.partialorder %v2382, inf
      %v2553 = vsel %vm2552, %v2382, %v2551
      %vm2554 = vcmp.eq.f32.partialorder %v2382, 0.0
      %v2555 = vand.u32 %v2382, 2147483648
      %v2556 = vsel %vm2554, %v2555, %v2553
      %v2557 = vrsqrt.pop %v2383
      %v2558 = vmul.f32 %v2383, %v2557
      %vm2559 = vcmp.eq.f32.partialorder %v2383, inf
      %v2560 = vsel %vm2559, %v2383, %v2558
      %vm2561 = vcmp.eq.f32.partialorder %v2383, 0.0
      %v2562 = vand.u32 %v2383, 2147483648
      %v2563 = vsel %vm2561, %v2562, %v2560
      %v2564 = vrsqrt.pop %v2384
      %v2565 = vmul.f32 %v2384, %v2564
      %vm2566 = vcmp.eq.f32.partialorder %v2384, inf
      %v2567 = vsel %vm2566, %v2384, %v2565
      %vm2568 = vcmp.eq.f32.partialorder %v2384, 0.0
      %v2569 = vand.u32 %v2384, 2147483648
      %v2570 = vsel %vm2568, %v2569, %v2567
      %v2571 = vrsqrt.pop %v2385
      %v2572 = vmul.f32 %v2385, %v2571
      %vm2573 = vcmp.eq.f32.partialorder %v2385, inf
      %v2574 = vsel %vm2573, %v2385, %v2572
      %vm2575 = vcmp.eq.f32.partialorder %v2385, 0.0
      %v2576 = vand.u32 %v2385, 2147483648
      %v2577 = vsel %vm2575, %v2576, %v2574
      %v2578 = vrsqrt.pop %v2386
      %v2579 = vmul.f32 %v2386, %v2578
      %vm2580 = vcmp.eq.f32.partialorder %v2386, inf
      %v2581 = vsel %vm2580, %v2386, %v2579
      %vm2582 = vcmp.eq.f32.partialorder %v2386, 0.0
      %v2583 = vand.u32 %v2386, 2147483648
      %v2584 = vsel %vm2582, %v2583, %v2581
      %v2585 = vrsqrt.pop %v2387
      %v2586 = vmul.f32 %v2387, %v2585
      %vm2587 = vcmp.eq.f32.partialorder %v2387, inf
      %v2588 = vsel %vm2587, %v2387, %v2586
      %vm2589 = vcmp.eq.f32.partialorder %v2387, 0.0
      %v2590 = vand.u32 %v2387, 2147483648
      %v2591 = vsel %vm2589, %v2590, %v2588
      %v2592 = vrsqrt.pop %v2388
      %v2593 = vmul.f32 %v2388, %v2592
      %vm2594 = vcmp.eq.f32.partialorder %v2388, inf
      %v2595 = vsel %vm2594, %v2388, %v2593
      %vm2596 = vcmp.eq.f32.partialorder %v2388, 0.0
      %v2597 = vand.u32 %v2388, 2147483648
      %v2598 = vsel %vm2596, %v2597, %v2595
      %v2599 = vrsqrt.pop %v2389
      %v2600 = vmul.f32 %v2389, %v2599
      %vm2601 = vcmp.eq.f32.partialorder %v2389, inf
      %v2602 = vsel %vm2601, %v2389, %v2600
      %vm2603 = vcmp.eq.f32.partialorder %v2389, 0.0
      %v2604 = vand.u32 %v2389, 2147483648
      %v2605 = vsel %vm2603, %v2604, %v2602
      %v2606 = vrsqrt.pop %v2390
      %v2607 = vmul.f32 %v2390, %v2606
      %vm2608 = vcmp.eq.f32.partialorder %v2390, inf
      %v2609 = vsel %vm2608, %v2390, %v2607
      %vm2610 = vcmp.eq.f32.partialorder %v2390, 0.0
      %v2611 = vand.u32 %v2390, 2147483648
      %v2612 = vsel %vm2610, %v2611, %v2609
      %v2613 = vrsqrt.pop %v2391
      %v2614 = vmul.f32 %v2391, %v2613
      %vm2615 = vcmp.eq.f32.partialorder %v2391, inf
      %v2616 = vsel %vm2615, %v2391, %v2614
      %vm2617 = vcmp.eq.f32.partialorder %v2391, 0.0
      %v2618 = vand.u32 %v2391, 2147483648
      %v2619 = vsel %vm2617, %v2618, %v2616
      %v2620 = vrsqrt.pop %v2392
      %v2621 = vmul.f32 %v2392, %v2620
      %vm2622 = vcmp.eq.f32.partialorder %v2392, inf
      %v2623 = vsel %vm2622, %v2392, %v2621
      %vm2624 = vcmp.eq.f32.partialorder %v2392, 0.0
      %v2625 = vand.u32 %v2392, 2147483648
      %v2626 = vsel %vm2624, %v2625, %v2623
      %v2627 = vrsqrt.pop %v2393
      %v2628 = vmul.f32 %v2393, %v2627
      %vm2629 = vcmp.eq.f32.partialorder %v2393, inf
      %v2630 = vsel %vm2629, %v2393, %v2628
      %vm2631 = vcmp.eq.f32.partialorder %v2393, 0.0
      %v2632 = vand.u32 %v2393, 2147483648
      %v2633 = vsel %vm2631, %v2632, %v2630
      %v2634 = vrsqrt.pop %v2394
      %v2635 = vmul.f32 %v2394, %v2634
      %vm2636 = vcmp.eq.f32.partialorder %v2394, inf
      %v2637 = vsel %vm2636, %v2394, %v2635
      %vm2638 = vcmp.eq.f32.partialorder %v2394, 0.0
      %v2639 = vand.u32 %v2394, 2147483648
      %v2640 = vsel %vm2638, %v2639, %v2637
      %v2641 = vrsqrt.pop %v2395
      %v2642 = vmul.f32 %v2395, %v2641
      %vm2643 = vcmp.eq.f32.partialorder %v2395, inf
      %v2644 = vsel %vm2643, %v2395, %v2642
      %vm2645 = vcmp.eq.f32.partialorder %v2395, 0.0
      %v2646 = vand.u32 %v2395, 2147483648
      %v2647 = vsel %vm2645, %v2646, %v2644
      %v2648 = vrsqrt.pop %v2396
      %v2649 = vmul.f32 %v2396, %v2648
      %vm2650 = vcmp.eq.f32.partialorder %v2396, inf
      %v2651 = vsel %vm2650, %v2396, %v2649
      %vm2652 = vcmp.eq.f32.partialorder %v2396, 0.0
      %v2653 = vand.u32 %v2396, 2147483648
      %v2654 = vsel %vm2652, %v2653, %v2651
      %v2655 = vrsqrt.pop %v2397
      %v2656 = vmul.f32 %v2397, %v2655
      %vm2657 = vcmp.eq.f32.partialorder %v2397, inf
      %v2658 = vsel %vm2657, %v2397, %v2656
      %vm2659 = vcmp.eq.f32.partialorder %v2397, 0.0
      %v2660 = vand.u32 %v2397, 2147483648
      %v2661 = vsel %vm2659, %v2660, %v2658
      %v2662 = vrsqrt.pop %v2398
      %v2663 = vmul.f32 %v2398, %v2662
      %vm2664 = vcmp.eq.f32.partialorder %v2398, inf
      %v2665 = vsel %vm2664, %v2398, %v2663
      %vm2666 = vcmp.eq.f32.partialorder %v2398, 0.0
      %v2667 = vand.u32 %v2398, 2147483648
      %v2668 = vsel %vm2666, %v2667, %v2665
      %v2669 = vrsqrt.pop %v2399
      %v2670 = vmul.f32 %v2399, %v2669
      %vm2671 = vcmp.eq.f32.partialorder %v2399, inf
      %v2672 = vsel %vm2671, %v2399, %v2670
      %vm2673 = vcmp.eq.f32.partialorder %v2399, 0.0
      %v2674 = vand.u32 %v2399, 2147483648
      %v2675 = vsel %vm2673, %v2674, %v2672
      %v2676 = vrsqrt.pop %v2400
      %v2677 = vmul.f32 %v2400, %v2676
      %vm2678 = vcmp.eq.f32.partialorder %v2400, inf
      %v2679 = vsel %vm2678, %v2400, %v2677
      %vm2680 = vcmp.eq.f32.partialorder %v2400, 0.0
      %v2681 = vand.u32 %v2400, 2147483648
      %v2682 = vsel %vm2680, %v2681, %v2679
      %v2683 = vrsqrt.pop %v2401
      %v2684 = vmul.f32 %v2401, %v2683
      %vm2685 = vcmp.eq.f32.partialorder %v2401, inf
      %v2686 = vsel %vm2685, %v2401, %v2684
      %vm2687 = vcmp.eq.f32.partialorder %v2401, 0.0
      %v2688 = vand.u32 %v2401, 2147483648
      %v2689 = vsel %vm2687, %v2688, %v2686
      %v2690 = vrsqrt.pop %v2402
      %v2691 = vmul.f32 %v2402, %v2690
      %vm2692 = vcmp.eq.f32.partialorder %v2402, inf
      %v2693 = vsel %vm2692, %v2402, %v2691
      %vm2694 = vcmp.eq.f32.partialorder %v2402, 0.0
      %v2695 = vand.u32 %v2402, 2147483648
      %v2696 = vsel %vm2694, %v2695, %v2693
      %v2697 = vrsqrt.pop %v2403
      %v2698 = vmul.f32 %v2403, %v2697
      %vm2699 = vcmp.eq.f32.partialorder %v2403, inf
      %v2700 = vsel %vm2699, %v2403, %v2698
      %vm2701 = vcmp.eq.f32.partialorder %v2403, 0.0
      %v2702 = vand.u32 %v2403, 2147483648
      %v2703 = vsel %vm2701, %v2702, %v2700
      %v2704 = vrsqrt.pop %v2404
      %v2705 = vmul.f32 %v2404, %v2704
      %vm2706 = vcmp.eq.f32.partialorder %v2404, inf
      %v2707 = vsel %vm2706, %v2404, %v2705
      %vm2708 = vcmp.eq.f32.partialorder %v2404, 0.0
      %v2709 = vand.u32 %v2404, 2147483648
      %v2710 = vsel %vm2708, %v2709, %v2707
      %v2711 = vrsqrt.pop %v2405
      %v2712 = vmul.f32 %v2405, %v2711
      %vm2713 = vcmp.eq.f32.partialorder %v2405, inf
      %v2714 = vsel %vm2713, %v2405, %v2712
      %vm2715 = vcmp.eq.f32.partialorder %v2405, 0.0
      %v2716 = vand.u32 %v2405, 2147483648
      %v2717 = vsel %vm2715, %v2716, %v2714
      %v2718 = vrsqrt.pop %v2406
      %v2719 = vmul.f32 %v2406, %v2718
      %vm2720 = vcmp.eq.f32.partialorder %v2406, inf
      %v2721 = vsel %vm2720, %v2406, %v2719
      %vm2722 = vcmp.eq.f32.partialorder %v2406, 0.0
      %v2723 = vand.u32 %v2406, 2147483648
      %v2724 = vsel %vm2722, %v2723, %v2721
      %v2725 = vrsqrt.pop %v2407
      %v2726 = vmul.f32 %v2407, %v2725
      %vm2727 = vcmp.eq.f32.partialorder %v2407, inf
      %v2728 = vsel %vm2727, %v2407, %v2726
      %vm2729 = vcmp.eq.f32.partialorder %v2407, 0.0
      %v2730 = vand.u32 %v2407, 2147483648
      %v2731 = vsel %vm2729, %v2730, %v2728
      %v2732 = vrsqrt.pop %v2408
      %v2733 = vmul.f32 %v2408, %v2732
      %vm2734 = vcmp.eq.f32.partialorder %v2408, inf
      %v2735 = vsel %vm2734, %v2408, %v2733
      %vm2736 = vcmp.eq.f32.partialorder %v2408, 0.0
      %v2737 = vand.u32 %v2408, 2147483648
      %v2738 = vsel %vm2736, %v2737, %v2735
      %v2739 = vrsqrt.pop %v2409
      %v2740 = vmul.f32 %v2409, %v2739
      %vm2741 = vcmp.eq.f32.partialorder %v2409, inf
      %v2742 = vsel %vm2741, %v2409, %v2740
      %vm2743 = vcmp.eq.f32.partialorder %v2409, 0.0
      %v2744 = vand.u32 %v2409, 2147483648
      %v2745 = vsel %vm2743, %v2744, %v2742
      %v2746 = vsub.f32 %v2584, %v2416
      %v2747 = vsub.f32 %v2591, %v2423
      %v2748 = vsub.f32 %v2598, %v2430
      %v2749 = vsub.f32 %v2605, %v2437
      %v2750 = vsub.f32 %v2612, %v2444
      %v2751 = vsub.f32 %v2619, %v2451
      %v2752 = vsub.f32 %v2626, %v2458
      %v2753 = vsub.f32 %v2633, %v2465
      %v2754 = vsub.f32 %v2640, %v2472
      %v2755 = vsub.f32 %v2647, %v2479
      %v2756 = vsub.f32 %v2654, %v2486
      %v2757 = vsub.f32 %v2661, %v2493
      %v2758 = vsub.f32 %v2668, %v2500
      %v2759 = vsub.f32 %v2675, %v2507
      %v2760 = vsub.f32 %v2682, %v2514
      %v2761 = vsub.f32 %v2689, %v2521
      %v2762 = vsub.f32 %v2696, %v2528
      %v2763 = vsub.f32 %v2703, %v2535
      %v2764 = vsub.f32 %v2710, %v2542
      %v2765 = vsub.f32 %v2717, %v2549
      %v2766 = vsub.f32 %v2724, %v2556
      %v2767 = vsub.f32 %v2731, %v2563
      %v2768 = vsub.f32 %v2738, %v2570
      %v2769 = vsub.f32 %v2745, %v2577
      %v2770 = vmul.f32 %v2746, %v2746
      %v2771 = vmul.f32 %v2747, %v2747
      %v2772 = vmul.f32 %v2748, %v2748
      %v2773 = vmul.f32 %v2749, %v2749
      %v2774 = vmul.f32 %v2750, %v2750
      %v2775 = vmul.f32 %v2751, %v2751
      %v2776 = vmul.f32 %v2752, %v2752
      %v2777 = vmul.f32 %v2753, %v2753
      %v2778 = vmul.f32 %v2754, %v2754
      %v2779 = vmul.f32 %v2755, %v2755
      %v2780 = vmul.f32 %v2756, %v2756
      %v2781 = vmul.f32 %v2757, %v2757
      %v2782 = vmul.f32 %v2758, %v2758
      %v2783 = vmul.f32 %v2759, %v2759
      %v2784 = vmul.f32 %v2760, %v2760
      %v2785 = vmul.f32 %v2761, %v2761
      %v2786 = vmul.f32 %v2762, %v2762
      %v2787 = vmul.f32 %v2763, %v2763
      %v2788 = vmul.f32 %v2764, %v2764
      %v2789 = vmul.f32 %v2765, %v2765
      %v2790 = vmul.f32 %v2766, %v2766
      %v2791 = vmul.f32 %v2767, %v2767
      %v2792 = vmul.f32 %v2768, %v2768
      %v2793 = vmul.f32 %v2769, %v2769
      %v2794 = vadd.f32 %v2584, 1.1920929e-07
      %v2795 = vadd.f32 %v2591, 1.1920929e-07
      %v2796 = vadd.f32 %v2598, 1.1920929e-07
      %v2797 = vadd.f32 %v2605, 1.1920929e-07
      %v2798 = vadd.f32 %v2612, 1.1920929e-07
      %v2799 = vadd.f32 %v2619, 1.1920929e-07
      %v2800 = vadd.f32 %v2626, 1.1920929e-07
      %v2801 = vadd.f32 %v2633, 1.1920929e-07
      %v2802 = vadd.f32 %v2640, 1.1920929e-07
      %v2803 = vadd.f32 %v2647, 1.1920929e-07
      %v2804 = vadd.f32 %v2654, 1.1920929e-07
      %v2805 = vadd.f32 %v2661, 1.1920929e-07
      %v2806 = vadd.f32 %v2668, 1.1920929e-07
      %v2807 = vadd.f32 %v2675, 1.1920929e-07
      %v2808 = vadd.f32 %v2682, 1.1920929e-07
      %v2809 = vadd.f32 %v2689, 1.1920929e-07
      %v2810 = vadd.f32 %v2696, 1.1920929e-07
      %v2811 = vadd.f32 %v2703, 1.1920929e-07
      %v2812 = vadd.f32 %v2710, 1.1920929e-07
      %v2813 = vadd.f32 %v2717, 1.1920929e-07
      %v2814 = vadd.f32 %v2724, 1.1920929e-07
      %v2815 = vadd.f32 %v2731, 1.1920929e-07
      %v2816 = vadd.f32 %v2738, 1.1920929e-07
      %v2817 = vadd.f32 %v2745, 1.1920929e-07
      %v2818 = vlog2.pop %v2794
      %v2819 = vmul.f32 %v2818, 0.6931472
      %v2820 = vlog2.pop %v2795
      %v2821 = vmul.f32 %v2820, 0.6931472
      %v2822 = vlog2.pop %v2796
      %v2823 = vmul.f32 %v2822, 0.6931472
      %v2824 = vlog2.pop %v2797
      %v2825 = vmul.f32 %v2824, 0.6931472
      %v2826 = vlog2.pop %v2798
      %v2827 = vmul.f32 %v2826, 0.6931472
      %v2828 = vlog2.pop %v2799
      %v2829 = vmul.f32 %v2828, 0.6931472
      %v2830 = vlog2.pop %v2800
      %v2831 = vmul.f32 %v2830, 0.6931472
      %v2832 = vlog2.pop %v2801
      %v2833 = vmul.f32 %v2832, 0.6931472
      %v2834 = vlog2.pop %v2802
      %v2835 = vmul.f32 %v2834, 0.6931472
      %v2836 = vlog2.pop %v2803
      %v2837 = vmul.f32 %v2836, 0.6931472
      %v2838 = vlog2.pop %v2804
      %v2839 = vmul.f32 %v2838, 0.6931472
      %v2840 = vlog2.pop %v2805
      %v2841 = vmul.f32 %v2840, 0.6931472
      %v2842 = vlog2.pop %v2806
      %v2843 = vmul.f32 %v2842, 0.6931472
      %v2844 = vlog2.pop %v2807
      %v2845 = vmul.f32 %v2844, 0.6931472
      %v2846 = vlog2.pop %v2808
      %v2847 = vmul.f32 %v2846, 0.6931472
      %v2848 = vlog2.pop %v2809
      %v2849 = vmul.f32 %v2848, 0.6931472
      %v2850 = vlog2.pop %v2810
      %v2851 = vmul.f32 %v2850, 0.6931472
      %v2852 = vlog2.pop %v2811
      %v2853 = vmul.f32 %v2852, 0.6931472
      %v2854 = vlog2.pop %v2812
      %v2855 = vmul.f32 %v2854, 0.6931472
      %v2856 = vlog2.pop %v2813
      %v2857 = vmul.f32 %v2856, 0.6931472
      %v2858 = vlog2.pop %v2814
      %v2859 = vmul.f32 %v2858, 0.6931472
      %v2860 = vlog2.pop %v2815
      %v2861 = vmul.f32 %v2860, 0.6931472
      %v2862 = vlog2.pop %v2816
      %v2863 = vmul.f32 %v2862, 0.6931472
      %v2864 = vlog2.pop %v2817
      %v2865 = vmul.f32 %v2864, 0.6931472
      %v2866 = vadd.f32 %v2416, 1.1920929e-07
      %v2867 = vadd.f32 %v2423, 1.1920929e-07
      %v2868 = vadd.f32 %v2430, 1.1920929e-07
      %v2869 = vadd.f32 %v2437, 1.1920929e-07
      %v2870 = vadd.f32 %v2444, 1.1920929e-07
      %v2871 = vadd.f32 %v2451, 1.1920929e-07
      %v2872 = vadd.f32 %v2458, 1.1920929e-07
      %v2873 = vadd.f32 %v2465, 1.1920929e-07
      %v2874 = vadd.f32 %v2472, 1.1920929e-07
      %v2875 = vadd.f32 %v2479, 1.1920929e-07
      %v2876 = vadd.f32 %v2486, 1.1920929e-07
      %v2877 = vadd.f32 %v2493, 1.1920929e-07
      %v2878 = vadd.f32 %v2500, 1.1920929e-07
      %v2879 = vadd.f32 %v2507, 1.1920929e-07
      %v2880 = vadd.f32 %v2514, 1.1920929e-07
      %v2881 = vadd.f32 %v2521, 1.1920929e-07
      %v2882 = vadd.f32 %v2528, 1.1920929e-07
      %v2883 = vadd.f32 %v2535, 1.1920929e-07
      %v2884 = vadd.f32 %v2542, 1.1920929e-07
      %v2885 = vadd.f32 %v2549, 1.1920929e-07
      %v2886 = vadd.f32 %v2556, 1.1920929e-07
      %v2887 = vadd.f32 %v2563, 1.1920929e-07
      %v2888 = vadd.f32 %v2570, 1.1920929e-07
      %v2889 = vadd.f32 %v2577, 1.1920929e-07
      %v2890 = vlog2.pop %v2866
      %v2891 = vmul.f32 %v2890, 0.6931472
      %v2892 = vlog2.pop %v2867
      %v2893 = vmul.f32 %v2892, 0.6931472
      %v2894 = vlog2.pop %v2868
      %v2895 = vmul.f32 %v2894, 0.6931472
      %v2896 = vlog2.pop %v2869
      %v2897 = vmul.f32 %v2896, 0.6931472
      %v2898 = vlog2.pop %v2870
      %v2899 = vmul.f32 %v2898, 0.6931472
      %v2900 = vlog2.pop %v2871
      %v2901 = vmul.f32 %v2900, 0.6931472
      %v2902 = vlog2.pop %v2872
      %v2903 = vmul.f32 %v2902, 0.6931472
      %v2904 = vlog2.pop %v2873
      %v2905 = vmul.f32 %v2904, 0.6931472
      %v2906 = vlog2.pop %v2874
      %v2907 = vmul.f32 %v2906, 0.6931472
      %v2908 = vlog2.pop %v2875
      %v2909 = vmul.f32 %v2908, 0.6931472
      %v2910 = vlog2.pop %v2876
      %v2911 = vmul.f32 %v2910, 0.6931472
      %v2912 = vlog2.pop %v2877
      %v2913 = vmul.f32 %v2912, 0.6931472
      %v2914 = vlog2.pop %v2878
      %v2915 = vmul.f32 %v2914, 0.6931472
      %v2916 = vlog2.pop %v2879
      %v2917 = vmul.f32 %v2916, 0.6931472
      %v2918 = vlog2.pop %v2880
      %v2919 = vmul.f32 %v2918, 0.6931472
      %v2920 = vlog2.pop %v2881
      %v2921 = vmul.f32 %v2920, 0.6931472
      %v2922 = vlog2.pop %v2882
      %v2923 = vmul.f32 %v2922, 0.6931472
      %v2924 = vlog2.pop %v2883
      %v2925 = vmul.f32 %v2924, 0.6931472
      %v2926 = vlog2.pop %v2884
      %v2927 = vmul.f32 %v2926, 0.6931472
      %v2928 = vlog2.pop %v2885
      %v2929 = vmul.f32 %v2928, 0.6931472
      %v2930 = vlog2.pop %v2886
      %v2931 = vmul.f32 %v2930, 0.6931472
      %v2932 = vlog2.pop %v2887
      %v2933 = vmul.f32 %v2932, 0.6931472
      %v2934 = vlog2.pop %v2888
      %v2935 = vmul.f32 %v2934, 0.6931472
      %v2936 = vlog2.pop %v2889
      %v2937 = vmul.f32 %v2936, 0.6931472
      %v2938 = vsub.f32 %v2819, %v2891
      %v2939 = vsub.f32 %v2821, %v2893
      %v2940 = vsub.f32 %v2823, %v2895
      %v2941 = vsub.f32 %v2825, %v2897
      %v2942 = vsub.f32 %v2827, %v2899
      %v2943 = vsub.f32 %v2829, %v2901
      %v2944 = vsub.f32 %v2831, %v2903
      %v2945 = vsub.f32 %v2833, %v2905
      %v2946 = vsub.f32 %v2835, %v2907
      %v2947 = vsub.f32 %v2837, %v2909
      %v2948 = vsub.f32 %v2839, %v2911
      %v2949 = vsub.f32 %v2841, %v2913
      %v2950 = vsub.f32 %v2843, %v2915
      %v2951 = vsub.f32 %v2845, %v2917
      %v2952 = vsub.f32 %v2847, %v2919
      %v2953 = vsub.f32 %v2849, %v2921
      %v2954 = vsub.f32 %v2851, %v2923
      %v2955 = vsub.f32 %v2853, %v2925
      %v2956 = vsub.f32 %v2855, %v2927
      %v2957 = vsub.f32 %v2857, %v2929
      %v2958 = vsub.f32 %v2859, %v2931
      %v2959 = vsub.f32 %v2861, %v2933
      %v2960 = vsub.f32 %v2863, %v2935
      %v2961 = vsub.f32 %v2865, %v2937
      %v2962 = vand.u32 2147483647, %v2938
      %v2963 = vand.u32 2147483647, %v2939
      %v2964 = vand.u32 2147483647, %v2940
      %v2965 = vand.u32 2147483647, %v2941
      %v2966 = vand.u32 2147483647, %v2942
      %v2967 = vand.u32 2147483647, %v2943
      %v2968 = vand.u32 2147483647, %v2944
      %v2969 = vand.u32 2147483647, %v2945
      %v2970 = vand.u32 2147483647, %v2946
      %v2971 = vand.u32 2147483647, %v2947
      %v2972 = vand.u32 2147483647, %v2948
      %v2973 = vand.u32 2147483647, %v2949
      %v2974 = vand.u32 2147483647, %v2950
      %v2975 = vand.u32 2147483647, %v2951
      %v2976 = vand.u32 2147483647, %v2952
      %v2977 = vand.u32 2147483647, %v2953
      %v2978 = vand.u32 2147483647, %v2954
      %v2979 = vand.u32 2147483647, %v2955
      %v2980 = vand.u32 2147483647, %v2956
      %v2981 = vand.u32 2147483647, %v2957
      %v2982 = vand.u32 2147483647, %v2958
      %v2983 = vand.u32 2147483647, %v2959
      %v2984 = vand.u32 2147483647, %v2960
      %v2985 = vand.u32 2147483647, %v2961
      %v2986 = vld [vmem:[%s2] sm:$0xff]
      %v2987 = vld [vmem:[%s2 + $0x8] sm:$0xff]
      %v2988 = vld [vmem:[%s2 + $0x10] sm:$0xff]
      %v2989 = vadd.f32 %v2770, %v2773
      %v2990 = vadd.f32 %v2771, %v2774
      %v2991 = vadd.f32 %v2772, %v2775
      %v2992 = vadd.f32 %v2989, %v2776
      %v2993 = vadd.f32 %v2990, %v2777
      %v2994 = vadd.f32 %v2991, %v2778
      %v2995 = vadd.f32 %v2992, %v2779
      %v2996 = vadd.f32 %v2993, %v2780
      %v2997 = vadd.f32 %v2994, %v2781
      %v2998 = vadd.f32 %v2995, %v2782
      %v2999 = vadd.f32 %v2996, %v2783
      %v3000 = vadd.f32 %v2997, %v2784
      %v3001 = vadd.f32 %v2998, %v2785
      %v3002 = vadd.f32 %v2999, %v2786
      %v3003 = vadd.f32 %v3000, %v2787
      %v3004 = vadd.f32 %v3001, %v2788
      %v3005 = vadd.f32 %v3002, %v2789
      %v3006 = vadd.f32 %v3003, %v2790
      %v3007 = vadd.f32 %v3004, %v2791
      %v3008 = vadd.f32 %v3005, %v2792
      %v3009 = vadd.f32 %v3006, %v2793
      %v3010 = vadd.f32 %v2986, %v3007
      %v3011 = vadd.f32 %v2987, %v3008
      %v3012 = vadd.f32 %v2988, %v3009
      %3013 = vst [vmem:[%s2] sm:$0xff] %v3010
      %3014 = vst [vmem:[%s2 + $0x8] sm:$0xff] %v3011
      %3015 = vst [vmem:[%s2 + $0x10] sm:$0xff] %v3012
      %v3016 = vld [vmem:[%s3] sm:$0xff]
      %v3017 = vld [vmem:[%s3 + $0x8] sm:$0xff]
      %v3018 = vld [vmem:[%s3 + $0x10] sm:$0xff]
      %v3019 = vadd.f32 %v2386, %v2389
      %v3020 = vadd.f32 %v2387, %v2390
      %v3021 = vadd.f32 %v2388, %v2391
      %v3022 = vadd.f32 %v3019, %v2392
      %v3023 = vadd.f32 %v3020, %v2393
      %v3024 = vadd.f32 %v3021, %v2394
      %v3025 = vadd.f32 %v3022, %v2395
      %v3026 = vadd.f32 %v3023, %v2396
      %v3027 = vadd.f32 %v3024, %v2397
      %v3028 = vadd.f32 %v3025, %v2398
      %v3029 = vadd.f32 %v3026, %v2399
      %v3030 = vadd.f32 %v3027, %v2400
      %v3031 = vadd.f32 %v3028, %v2401
      %v3032 = vadd.f32 %v3029, %v2402
      %v3033 = vadd.f32 %v3030, %v2403
      %v3034 = vadd.f32 %v3031, %v2404
      %v3035 = vadd.f32 %v3032, %v2405
      %v3036 = vadd.f32 %v3033, %v2406
      %v3037 = vadd.f32 %v3034, %v2407
      %v3038 = vadd.f32 %v3035, %v2408
      %v3039 = vadd.f32 %v3036, %v2409
      %v3040 = vadd.f32 %v3016, %v3037
      %v3041 = vadd.f32 %v3017, %v3038
      %v3042 = vadd.f32 %v3018, %v3039
      %3043 = vst [vmem:[%s3] sm:$0xff] %v3040
      %3044 = vst [vmem:[%s3 + $0x8] sm:$0xff] %v3041
      %3045 = vst [vmem:[%s3 + $0x10] sm:$0xff] %v3042
      %v3046 = vld [vmem:[%s4] sm:$0xff]
      %v3047 = vld [vmem:[%s4 + $0x8] sm:$0xff]
      %v3048 = vld [vmem:[%s4 + $0x10] sm:$0xff]
      %v3049 = vadd.f32 %v2962, %v2965
      %v3050 = vadd.f32 %v2963, %v2966
      %v3051 = vadd.f32 %v2964, %v2967
      %v3052 = vadd.f32 %v3049, %v2968
      %v3053 = vadd.f32 %v3050, %v2969
      %v3054 = vadd.f32 %v3051, %v2970
      %v3055 = vadd.f32 %v3052, %v2971
      %v3056 = vadd.f32 %v3053, %v2972
      %v3057 = vadd.f32 %v3054, %v2973
      %v3058 = vadd.f32 %v3055, %v2974
      %v3059 = vadd.f32 %v3056, %v2975
      %v3060 = vadd.f32 %v3057, %v2976
      %v3061 = vadd.f32 %v3058, %v2977
      %v3062 = vadd.f32 %v3059, %v2978
      %v3063 = vadd.f32 %v3060, %v2979
      %v3064 = vadd.f32 %v3061, %v2980
      %v3065 = vadd.f32 %v3062, %v2981
      %v3066 = vadd.f32 %v3063, %v2982
      %v3067 = vadd.f32 %v3064, %v2983
      %v3068 = vadd.f32 %v3065, %v2984
      %v3069 = vadd.f32 %v3066, %v2985
      %v3070 = vadd.f32 %v3046, %v3067
      %v3071 = vadd.f32 %v3047, %v3068
      %v3072 = vadd.f32 %v3048, %v3069
      %3073 = vst [vmem:[%s4] sm:$0xff] %v3070
      %3074 = vst [vmem:[%s4 + $0x8] sm:$0xff] %v3071
      %3075 = vst [vmem:[%s4 + $0x10] sm:$0xff] %v3072
      // Predicated region
      $region33: #{_lambda_.4} parent=27 // pred_check
        %p3076 = pneg %p76
      $region34: #{_lambda_.4} parent=27 // pred_check_branch
        %3078 = sbr.rel (%p3076) target = $region36
      $region35: #{_lambda_.4} parent=27 // pred_region
        _
      $region36: #{_lambda_.4} parent=27 // pred_fallthru
        _
      // Predicated region
      $region37: #{_lambda_.4} parent=27 // pred_check
        %p3079 = pneg %p97
      $region38: #{_lambda_.4} parent=27 // pred_check_branch
        %3081 = sbr.rel (%p3079) target = $region40
      $region39: #{_lambda_.4} parent=27 // pred_region
        _
      $region40: #{_lambda_.4} parent=27 // pred_fallthru
        _
      // Predicated region
      $region41: #{_lambda_.4} parent=27 // pred_check
        %p3082 = pneg %p118
      $region42: #{_lambda_.4} parent=27 // pred_check_branch
        %3084 = sbr.rel (%p3082) target = $region44
      $region43: #{_lambda_.4} parent=27 // pred_region
        _
      $region44: #{_lambda_.4} parent=27 // pred_fallthru
        _
      // Predicated region
      $region45: #{_lambda_.4} parent=27 // pred_check
        %p3085 = pneg %p76
      $region46: #{_lambda_.4} parent=27 // pred_check_branch
        %3087 = sbr.rel (%p3085) target = $region48
      $region47: #{_lambda_.4} parent=27 // pred_region
        _
      $region48: #{_lambda_.4} parent=27 // pred_fallthru
        _
      // Predicated region
      $region49: #{_lambda_.4} parent=27 // pred_check
        %p3088 = pneg %p97
      $region50: #{_lambda_.4} parent=27 // pred_check_branch
        %3090 = sbr.rel (%p3088) target = $region52
      $region51: #{_lambda_.4} parent=27 // pred_region
        _
      $region52: #{_lambda_.4} parent=27 // pred_fallthru
        _
      // Predicated region
      $region53: #{_lambda_.4} parent=27 // pred_check
        %p3091 = pneg %p118
      $region54: #{_lambda_.4} parent=27 // pred_check_branch
        %3093 = sbr.rel (%p3091) target = $region56
      $region55: #{_lambda_.4} parent=27 // pred_region
        _
      $region56: #{_lambda_.4} parent=27 // pred_fallthru
        _
    $region28: #{_lambda_.4} parent=5 // pred_fallthru
      _
    %p3094 = scmp.le.s32.totalorder 2, %s11
    // Predicated region
    $region57: #{_lambda_.4} parent=5 // pred_check
      %p3095 = pneg %p3094
    $region58: #{_lambda_.4} parent=5 // pred_check_branch
      %3097 = sbr.rel (%p3095) target = $region60
    $region59: #{_lambda_.4} parent=5 // pred_region
      %s3098 = ssub.s32 %s11, 2
    $region60: #{_lambda_.4} parent=5 // pred_fallthru
      _
  $region6: #{_lambda_.4} parent=0 // loop_footer
    %s15 = sadd.s32 1, %s11
  $region7: #{_lambda_.4} parent=0 // loop_footer_branch
    %10 = sbr.rel target = $region3
  $region8: #{_lambda_.4} parent=0 // loop_exit
    _

// kernel: _lambda_.3
$region0: #{_lambda_.3}
  #allocation0 [shape = 'u32[]', space=smem, size = 0x4, offset = 0x4, fixed_abs, tag = 'smem constant byte address 0x4 - core index']
  #allocation1 [shape = 'u32[144,128]{1,0:T(1,128)}', space=vmem, size = 0x12000, scoped, tag = 'internal scratch']
  %s0 = inlined_call_operand.vmem [shape: bf16[384,256], index: 0, kind: input, shape index: {}]
  %s1 = inlined_call_operand.vmem [shape: bf16[256,512], index: 1, kind: input, shape index: {}]
  %s2 = inlined_call_operand.vmem [shape: f32[8,256], index: 2, kind: output, shape index: {0}]
  %s3 = inlined_call_operand.vmem [shape: f32[8,256], index: 3, kind: output, shape index: {1}]
  %s4 = inlined_call_operand.vmem [shape: f32[8,256], index: 4, kind: output, shape index: {2}]
  %5 = xla_tuple %s2, %s3, %s4
  %s6 = sld [smem:[#allocation0]]
  $region61: #{_lambda_.3} parent=0
    _
  %s8 = ssub.s32 1, %s6
  %s9 = scalar_select 0, %s8, %s6
  loop: start=0, step=1, limit=5
  $region2: #{_lambda_.3} parent=0 // loop_pre_header
    _
  $region3: #{_lambda_.3} parent=0 // loop_header
    %s11 = sphi 0, %s15
    %p12 = scmp.ge.s32.totalorder %s11, 5
    %s21 = sphi 0, %s23
    %s24 = sphi 0, %s21
    %s25 = sphi 0, %s24
    %s41 = sphi 0, %s25
    %s45 = sphi 0, %s45
    %s47 = sphi 0, %s45
    %s48 = sphi 0, %s47
    %s62 = sphi 0, %s48
    %s66 = sphi 0, %s66
    %s68 = sphi 0, %s66
    %s69 = sphi 0, %s68
    %s83 = sphi 0, %s69
    %s87 = sphi 0, %s87
    %s89 = sphi 0, %s87
    %s90 = sphi 0, %s89
    %s104 = sphi 0, %s90
    %s108 = sphi 0, %s108
    %s110 = sphi 0, %s108
    %s111 = sphi 0, %s110
    %s125 = sphi 0, %s111
  $region4: #{_lambda_.3} parent=0 // loop_header_branch
    %14 = sbr.rel (%p12) target = $region8
  $region5: #{_lambda_.3} parent=0 // loop_body
    %s16 = ssub.s32 %s11, 1
    %s17 = ssub.s32 %s11, 2
    %s18 = sadd.s32 %s11, 1
    %s19 = ssub.s32 %s11, %s18
    %p20 = scmp.eq.s32.totalorder %s19, 0
    %s22 = sadd.s32 %s21, 1
    %s23 = scalar_select %p20, %s21, %s22
    %p26 = pneg %p20
    %p27 = scmp.eq.s32.totalorder %s11, 2
    %p28 = por %p26, %p27
    %p29 = scmp.ne.s32.totalorder %s21, %s24
    %p30 = scmp.eq.s32.totalorder %s11, 0
    %p31 = por %p29, %p30
    %p32 = scmp.ne.s32.totalorder %s21, %s24
    %p33 = scmp.eq.s32.totalorder %s16, 2
    %p34 = por %p32, %p33
    %p35 = scmp.ne.s32.totalorder %s24, %s25
    %p36 = scmp.eq.s32.totalorder %s16, 0
    %p37 = por %p35, %p36
    %p38 = scmp.ne.s32.totalorder %s24, %s25
    %p39 = scmp.eq.s32.totalorder %s17, 2
    %p40 = por %p38, %p39
    %p42 = scmp.ne.s32.totalorder %s25, %s41
    %p43 = scmp.eq.s32.totalorder %s17, 0
    %p44 = por %p42, %p43
    %s46 = sadd.s32 %s45, 1
    %p49 = scmp.eq.s32.totalorder %s11, 2
    %p50 = scmp.ne.s32.totalorder %s45, %s47
    %p51 = scmp.eq.s32.totalorder %s11, 0
    %p52 = por %p50, %p51
    %p53 = scmp.ne.s32.totalorder %s45, %s47
    %p54 = scmp.eq.s32.totalorder %s16, 2
    %p55 = por %p53, %p54
    %p56 = scmp.ne.s32.totalorder %s47, %s48
    %p57 = scmp.eq.s32.totalorder %s16, 0
    %p58 = por %p56, %p57
    %p59 = scmp.ne.s32.totalorder %s47, %s48
    %p60 = scmp.eq.s32.totalorder %s17, 2
    %p61 = por %p59, %p60
    %p63 = scmp.ne.s32.totalorder %s48, %s62
    %p64 = scmp.eq.s32.totalorder %s17, 0
    %p65 = por %p63, %p64
    %s67 = sadd.s32 %s66, 1
    %p70 = scmp.eq.s32.totalorder %s11, 2
    %p71 = scmp.ne.s32.totalorder %s66, %s68
    %p72 = scmp.eq.s32.totalorder %s11, 0
    %p73 = por %p71, %p72
    %p74 = scmp.ne.s32.totalorder %s66, %s68
    %p75 = scmp.eq.s32.totalorder %s16, 2
    %p76 = por %p74, %p75
    %p77 = scmp.ne.s32.totalorder %s68, %s69
    %p78 = scmp.eq.s32.totalorder %s16, 0
    %p79 = por %p77, %p78
    %p80 = scmp.ne.s32.totalorder %s68, %s69
    %p81 = scmp.eq.s32.totalorder %s17, 2
    %p82 = por %p80, %p81
    %p84 = scmp.ne.s32.totalorder %s69, %s83
    %p85 = scmp.eq.s32.totalorder %s17, 0
    %p86 = por %p84, %p85
    %s88 = sadd.s32 %s87, 1
    %p91 = scmp.eq.s32.totalorder %s11, 2
    %p92 = scmp.ne.s32.totalorder %s87, %s89
    %p93 = scmp.eq.s32.totalorder %s11, 0
    %p94 = por %p92, %p93
    %p95 = scmp.ne.s32.totalorder %s87, %s89
    %p96 = scmp.eq.s32.totalorder %s16, 2
    %p97 = por %p95, %p96
    %p98 = scmp.ne.s32.totalorder %s89, %s90
    %p99 = scmp.eq.s32.totalorder %s16, 0
    %p100 = por %p98, %p99
    %p101 = scmp.ne.s32.totalorder %s89, %s90
    %p102 = scmp.eq.s32.totalorder %s17, 2
    %p103 = por %p101, %p102
    %p105 = scmp.ne.s32.totalorder %s90, %s104
    %p106 = scmp.eq.s32.totalorder %s17, 0
    %p107 = por %p105, %p106
    %s109 = sadd.s32 %s108, 1
    %p112 = scmp.eq.s32.totalorder %s11, 2
    %p113 = scmp.ne.s32.totalorder %s108, %s110
    %p114 = scmp.eq.s32.totalorder %s11, 0
    %p115 = por %p113, %p114
    %p116 = scmp.ne.s32.totalorder %s108, %s110
    %p117 = scmp.eq.s32.totalorder %s16, 2
    %p118 = por %p116, %p117
    %p119 = scmp.ne.s32.totalorder %s110, %s111
    %p120 = scmp.eq.s32.totalorder %s16, 0
    %p121 = por %p119, %p120
    %p122 = scmp.ne.s32.totalorder %s110, %s111
    %p123 = scmp.eq.s32.totalorder %s17, 2
    %p124 = por %p122, %p123
    %p126 = scmp.ne.s32.totalorder %s111, %s125
    %p127 = scmp.eq.s32.totalorder %s17, 0
    %p128 = por %p126, %p127
    %p129 = scmp.le.s32.totalorder 1, %s11
    %p130 = scmp.lt.s32.totalorder %s11, 4
    %p131 = pnand %p129, %p130
    %p132 = pneg %p131
    // Predicated region
    $region9: #{_lambda_.3} parent=5 // pred_check
      _
    $region10: #{_lambda_.3} parent=5 // pred_check_branch
      %134 = sbr.rel (%p131) target = $region12
    $region11: #{_lambda_.3} parent=5 // pred_region
      %s135 = ssub.s32 %s11, 1
      // Predicated region
      $region13: #{_lambda_.3} parent=11 // pred_check
        %p136 = pneg %p58
      $region14: #{_lambda_.3} parent=11 // pred_check_branch
        %138 = sbr.rel (%p136) target = $region16
      $region15: #{_lambda_.3} parent=11 // pred_region
        _
      $region16: #{_lambda_.3} parent=11 // pred_fallthru
        _
    $region12: #{_lambda_.3} parent=5 // pred_fallthru
      _
    %p139 = scmp.lt.s32.totalorder %s11, 3
    // Predicated region
    $region17: #{_lambda_.3} parent=5 // pred_check
      %p140 = pneg %p139
    $region18: #{_lambda_.3} parent=5 // pred_check_branch
      %142 = sbr.rel (%p140) target = $region20
    $region19: #{_lambda_.3} parent=5 // pred_region
      // Predicated region
      $region21: #{_lambda_.3} parent=19 // pred_check
        %p143 = pneg %p31
      $region22: #{_lambda_.3} parent=19 // pred_check_branch
        %145 = sbr.rel (%p143) target = $region24
      $region23: #{_lambda_.3} parent=19 // pred_region
        %s146 = smul.u32 16, %s11
        %p147 = scmp.lt.s32.totalorder %s146, 47
        %s148 = scalar_select %p147, %s146, 47
        %s149 = smul.addr %s148, 2
        %s150 = smul.addr %s149, 4
        %s151 = scalar_lea.vmem %s0, %s150
        %s152 = smul.u32 16, %s11
      $region24: #{_lambda_.3} parent=19 // pred_fallthru
        _
    $region20: #{_lambda_.3} parent=5 // pred_fallthru
      _
    %p153 = scmp.le.s32.totalorder 1, %s11
    %p154 = scmp.lt.s32.totalorder %s11, 4
    %p155 = pnand %p153, %p154
    %p156 = pneg %p155
    // Predicated region
    $region25: #{_lambda_.3} parent=5 // pred_check
      _
    $region26: #{_lambda_.3} parent=5 // pred_check_branch
      %158 = sbr.rel (%p155) target = $region28
    $region27: #{_lambda_.3} parent=5 // pred_region
      %s159 = ssub.s32 %s11, 1
      %s160 = smul.u32 16, %s16
      %p161 = scmp.lt.s32.totalorder %s160, 47
      %s162 = scalar_select %p161, %s160, 47
      %s163 = smul.addr %s162, 2
      %s164 = smul.addr %s163, 4
      %s165 = scalar_lea.vmem %s0, %s164
      %p166 = pneg %p37
      %p167 = pneg %p34
      %p168 = pneg %p58
      %p169 = pneg %p55
      %p170 = pneg %p79
      %p171 = pneg %p76
      %p172 = pneg %p100
      %p173 = pneg %p97
      %p174 = pneg %p121
      %p175 = pneg %p118
      %s176 = smul.u32 16, %s16
      %p177 = scmp.lt.s32.totalorder %s176, 47
      %s178 = scalar_select %p177, %s176, 47
      %s179 = smul.addr %s178, 2
      %s180 = smul.addr %s179, 4
      %s181 = scalar_lea.vmem %s0, %s180
      %s182 = smul.u32 16, %s16
      %p183 = scmp.eq.s32.totalorder %s16, 0
      // Predicated region
      $region29: #{_lambda_.3} parent=27 // pred_check
        %p184 = pneg %p183
      $region30: #{_lambda_.3} parent=27 // pred_check_branch
        %186 = sbr.rel (%p184) target = $region32
      $region31: #{_lambda_.3} parent=27 // pred_region
        %187 = vst [vmem:[%s2] sm:$0xff] 0.0
        %188 = vst [vmem:[%s2 + $0x8] sm:$0xff] 0.0
        %189 = vst [vmem:[%s3] sm:$0xff] 0.0
        %190 = vst [vmem:[%s3 + $0x8] sm:$0xff] 0.0
        %191 = vst [vmem:[%s4] sm:$0xff] 0.0
        %192 = vst [vmem:[%s4 + $0x8] sm:$0xff] 0.0
      $region32: #{_lambda_.3} parent=27 // pred_fallthru
        _
      %v193 = vld [vmem:[%s181] sm:$0xff]
      %v194 = vld [vmem:[%s181 + $0x8] sm:$0xff]
      %v195 = vld [vmem:[%s181 + $0x10] sm:$0xff]
      %v196 = vld [vmem:[%s181 + $0x18] sm:$0xff]
      %v197 = vld [vmem:[%s181 + $0x20] sm:$0xff]
      %v198 = vld [vmem:[%s181 + $0x28] sm:$0xff]
      %v199 = vld [vmem:[%s181 + $0x30] sm:$0xff]
      %v200 = vld [vmem:[%s181 + $0x38] sm:$0xff]
      %v201 = vld [vmem:[%s181 + $0x40] sm:$0xff]
      %v202 = vld [vmem:[%s181 + $0x48] sm:$0xff]
      %v203 = vld [vmem:[%s181 + $0x50] sm:$0xff]
      %v204 = vld [vmem:[%s181 + $0x58] sm:$0xff]
      %v205 = vld [vmem:[%s181 + $0x60] sm:$0xff]
      %v206 = vld [vmem:[%s181 + $0x68] sm:$0xff]
      %v207 = vld [vmem:[%s181 + $0x70] sm:$0xff]
      %v208 = vld [vmem:[%s181 + $0x78] sm:$0xff]
      %v209 = vld [vmem:[%s1] sm:$0xff]
      %v210 = vld [vmem:[%s1 + $0x8] sm:$0xff]
      %v211 = vld [vmem:[%s1 + $0x10] sm:$0xff]
      %v212 = vld [vmem:[%s1 + $0x18] sm:$0xff]
      %v213 = vld [vmem:[%s1 + $0x20] sm:$0xff]
      %v214 = vld [vmem:[%s1 + $0x28] sm:$0xff]
      %v215 = vld [vmem:[%s1 + $0x30] sm:$0xff]
      %v216 = vld [vmem:[%s1 + $0x38] sm:$0xff]
      %v217 = vld [vmem:[%s1 + $0x40] sm:$0xff]
      %v218 = vld [vmem:[%s1 + $0x48] sm:$0xff]
      %v219 = vld [vmem:[%s1 + $0x50] sm:$0xff]
      %v220 = vld [vmem:[%s1 + $0x58] sm:$0xff]
      %v221 = vld [vmem:[%s1 + $0x60] sm:$0xff]
      %v222 = vld [vmem:[%s1 + $0x68] sm:$0xff]
      %v223 = vld [vmem:[%s1 + $0x70] sm:$0xff]
      %v224 = vld [vmem:[%s1 + $0x78] sm:$0xff]
      %v225 = vld [vmem:[%s1 + $0x80] sm:$0xff]
      %v226 = vld [vmem:[%s1 + $0x88] sm:$0xff]
      %v227 = vld [vmem:[%s1 + $0x90] sm:$0xff]
      %v228 = vld [vmem:[%s1 + $0x98] sm:$0xff]
      %v229 = vld [vmem:[%s1 + $0xa0] sm:$0xff]
      %v230 = vld [vmem:[%s1 + $0xa8] sm:$0xff]
      %v231 = vld [vmem:[%s1 + $0xb0] sm:$0xff]
      %v232 = vld [vmem:[%s1 + $0xb8] sm:$0xff]
      %v233 = vld [vmem:[%s1 + $0xc0] sm:$0xff]
      %v234 = vld [vmem:[%s1 + $0xc8] sm:$0xff]
      %v235 = vld [vmem:[%s1 + $0xd0] sm:$0xff]
      %v236 = vld [vmem:[%s1 + $0xd8] sm:$0xff]
      %v237 = vld [vmem:[%s1 + $0xe0] sm:$0xff]
      %v238 = vld [vmem:[%s1 + $0xe8] sm:$0xff]
      %v239 = vld [vmem:[%s1 + $0xf0] sm:$0xff]
      %v240 = vld [vmem:[%s1 + $0xf8] sm:$0xff]
      %v241 = vld [vmem:[%s1 + $0x100] sm:$0xff]
      %v242 = vld [vmem:[%s1 + $0x108] sm:$0xff]
      %v243 = vld [vmem:[%s1 + $0x110] sm:$0xff]
      %v244 = vld [vmem:[%s1 + $0x118] sm:$0xff]
      %v245 = vld [vmem:[%s1 + $0x120] sm:$0xff]
      %v246 = vld [vmem:[%s1 + $0x128] sm:$0xff]
      %v247 = vld [vmem:[%s1 + $0x130] sm:$0xff]
      %v248 = vld [vmem:[%s1 + $0x138] sm:$0xff]
      %v249 = vld [vmem:[%s1 + $0x140] sm:$0xff]
      %v250 = vld [vmem:[%s1 + $0x148] sm:$0xff]
      %v251 = vld [vmem:[%s1 + $0x150] sm:$0xff]
      %v252 = vld [vmem:[%s1 + $0x158] sm:$0xff]
      %v253 = vld [vmem:[%s1 + $0x160] sm:$0xff]
      %v254 = vld [vmem:[%s1 + $0x168] sm:$0xff]
      %v255 = vld [vmem:[%s1 + $0x170] sm:$0xff]
      %v256 = vld [vmem:[%s1 + $0x178] sm:$0xff]
      %v257 = vld [vmem:[%s1 + $0x180] sm:$0xff]
      %v258 = vld [vmem:[%s1 + $0x188] sm:$0xff]
      %v259 = vld [vmem:[%s1 + $0x190] sm:$0xff]
      %v260 = vld [vmem:[%s1 + $0x198] sm:$0xff]
      %v261 = vld [vmem:[%s1 + $0x1a0] sm:$0xff]
      %v262 = vld [vmem:[%s1 + $0x1a8] sm:$0xff]
      %v263 = vld [vmem:[%s1 + $0x1b0] sm:$0xff]
      %v264 = vld [vmem:[%s1 + $0x1b8] sm:$0xff]
      %v265 = vld [vmem:[%s1 + $0x1c0] sm:$0xff]
      %v266 = vld [vmem:[%s1 + $0x1c8] sm:$0xff]
      %v267 = vld [vmem:[%s1 + $0x1d0] sm:$0xff]
      %v268 = vld [vmem:[%s1 + $0x1d8] sm:$0xff]
      %v269 = vld [vmem:[%s1 + $0x1e0] sm:$0xff]
      %v270 = vld [vmem:[%s1 + $0x1e8] sm:$0xff]
      %v271 = vld [vmem:[%s1 + $0x1f0] sm:$0xff]
      %v272 = vld [vmem:[%s1 + $0x1f8] sm:$0xff]
      %v289 = vunpack.c.l.b16 %v193
      %v290 = vunpack.c.h.b16 %v193
      %v291 = vunpack.c.l.b16 %v194
      %v292 = vunpack.c.h.b16 %v194
      %v293 = vunpack.c.l.b16 %v195
      %v294 = vunpack.c.h.b16 %v195
      %v295 = vunpack.c.l.b16 %v196
      %v296 = vunpack.c.h.b16 %v196
      %v297 = vunpack.c.l.b16 %v197
      %v298 = vunpack.c.h.b16 %v197
      %v299 = vunpack.c.l.b16 %v198
      %v300 = vunpack.c.h.b16 %v198
      %v301 = vunpack.c.l.b16 %v199
      %v302 = vunpack.c.h.b16 %v199
      %v303 = vunpack.c.l.b16 %v200
      %v304 = vunpack.c.h.b16 %v200
      %v305 = vunpack.c.l.b16 %v201
      %v306 = vunpack.c.h.b16 %v201
      %v307 = vunpack.c.l.b16 %v202
      %v308 = vunpack.c.h.b16 %v202
      %v309 = vunpack.c.l.b16 %v203
      %v310 = vunpack.c.h.b16 %v203
      %v311 = vunpack.c.l.b16 %v204
      %v312 = vunpack.c.h.b16 %v204
      %v313 = vunpack.c.l.b16 %v205
      %v314 = vunpack.c.h.b16 %v205
      %v315 = vunpack.c.l.b16 %v206
      %v316 = vunpack.c.h.b16 %v206
      %v317 = vunpack.c.l.b16 %v207
      %v318 = vunpack.c.h.b16 %v207
      %v319 = vunpack.c.l.b16 %v208
      %v320 = vunpack.c.h.b16 %v208
      %v321 = vpack.c.b16 %v291, %v289
      %v322 = vpack.c.b16 %v292, %v290
      %v323 = vpack.c.b16 %v295, %v293
      %v324 = vpack.c.b16 %v296, %v294
      %v325 = vpack.c.b16 %v299, %v297
      %v326 = vpack.c.b16 %v300, %v298
      %v327 = vpack.c.b16 %v303, %v301
      %v328 = vpack.c.b16 %v304, %v302
      %v329 = vpack.c.b16 %v307, %v305
      %v330 = vpack.c.b16 %v308, %v306
      %v331 = vpack.c.b16 %v311, %v309
      %v332 = vpack.c.b16 %v312, %v310
      %v333 = vpack.c.b16 %v315, %v313
      %v334 = vpack.c.b16 %v316, %v314
      %v335 = vpack.c.b16 %v319, %v317
      %v336 = vpack.c.b16 %v320, %v318
      %v417 = vunpack.c.l.b16 %v209
      %v418 = vunpack.c.h.b16 %v209
      %v419 = vunpack.c.l.b16 %v210
      %v420 = vunpack.c.h.b16 %v210
      %v421 = vunpack.c.l.b16 %v211
      %v422 = vunpack.c.h.b16 %v211
      %v423 = vunpack.c.l.b16 %v212
      %v424 = vunpack.c.h.b16 %v212
      %v425 = vunpack.c.l.b16 %v213
      %v426 = vunpack.c.h.b16 %v213
      %v427 = vunpack.c.l.b16 %v214
      %v428 = vunpack.c.h.b16 %v214
      %v429 = vunpack.c.l.b16 %v215
      %v430 = vunpack.c.h.b16 %v215
      %v431 = vunpack.c.l.b16 %v216
      %v432 = vunpack.c.h.b16 %v216
      %v433 = vunpack.c.l.b16 %v217
      %v434 = vunpack.c.h.b16 %v217
      %v435 = vunpack.c.l.b16 %v218
      %v436 = vunpack.c.h.b16 %v218
      %v437 = vunpack.c.l.b16 %v219
      %v438 = vunpack.c.h.b16 %v219
      %v439 = vunpack.c.l.b16 %v220
      %v440 = vunpack.c.h.b16 %v220
      %v441 = vunpack.c.l.b16 %v221
      %v442 = vunpack.c.h.b16 %v221
      %v443 = vunpack.c.l.b16 %v222
      %v444 = vunpack.c.h.b16 %v222
      %v445 = vunpack.c.l.b16 %v223
      %v446 = vunpack.c.h.b16 %v223
      %v447 = vunpack.c.l.b16 %v224
      %v448 = vunpack.c.h.b16 %v224
      %v449 = vunpack.c.l.b16 %v225
      %v450 = vunpack.c.h.b16 %v225
      %v451 = vunpack.c.l.b16 %v226
      %v452 = vunpack.c.h.b16 %v226
      %v453 = vunpack.c.l.b16 %v227
      %v454 = vunpack.c.h.b16 %v227
      %v455 = vunpack.c.l.b16 %v228
      %v456 = vunpack.c.h.b16 %v228
      %v457 = vunpack.c.l.b16 %v229
      %v458 = vunpack.c.h.b16 %v229
      %v459 = vunpack.c.l.b16 %v230
      %v460 = vunpack.c.h.b16 %v230
      %v461 = vunpack.c.l.b16 %v231
      %v462 = vunpack.c.h.b16 %v231
      %v463 = vunpack.c.l.b16 %v232
      %v464 = vunpack.c.h.b16 %v232
      %v465 = vunpack.c.l.b16 %v233
      %v466 = vunpack.c.h.b16 %v233
      %v467 = vunpack.c.l.b16 %v234
      %v468 = vunpack.c.h.b16 %v234
      %v469 = vunpack.c.l.b16 %v235
      %v470 = vunpack.c.h.b16 %v235
      %v471 = vunpack.c.l.b16 %v236
      %v472 = vunpack.c.h.b16 %v236
      %v473 = vunpack.c.l.b16 %v237
      %v474 = vunpack.c.h.b16 %v237
      %v475 = vunpack.c.l.b16 %v238
      %v476 = vunpack.c.h.b16 %v238
      %v477 = vunpack.c.l.b16 %v239
      %v478 = vunpack.c.h.b16 %v239
      %v479 = vunpack.c.l.b16 %v240
      %v480 = vunpack.c.h.b16 %v240
      %v481 = vunpack.c.l.b16 %v241
      %v482 = vunpack.c.h.b16 %v241
      %v483 = vunpack.c.l.b16 %v242
      %v484 = vunpack.c.h.b16 %v242
      %v485 = vunpack.c.l.b16 %v243
      %v486 = vunpack.c.h.b16 %v243
      %v487 = vunpack.c.l.b16 %v244
      %v488 = vunpack.c.h.b16 %v244
      %v489 = vunpack.c.l.b16 %v245
      %v490 = vunpack.c.h.b16 %v245
      %v491 = vunpack.c.l.b16 %v246
      %v492 = vunpack.c.h.b16 %v246
      %v493 = vunpack.c.l.b16 %v247
      %v494 = vunpack.c.h.b16 %v247
      %v495 = vunpack.c.l.b16 %v248
      %v496 = vunpack.c.h.b16 %v248
      %v497 = vunpack.c.l.b16 %v249
      %v498 = vunpack.c.h.b16 %v249
      %v499 = vunpack.c.l.b16 %v250
      %v500 = vunpack.c.h.b16 %v250
      %v501 = vunpack.c.l.b16 %v251
      %v502 = vunpack.c.h.b16 %v251
      %v503 = vunpack.c.l.b16 %v252
      %v504 = vunpack.c.h.b16 %v252
      %v505 = vunpack.c.l.b16 %v253
      %v506 = vunpack.c.h.b16 %v253
      %v507 = vunpack.c.l.b16 %v254
      %v508 = vunpack.c.h.b16 %v254
      %v509 = vunpack.c.l.b16 %v255
      %v510 = vunpack.c.h.b16 %v255
      %v511 = vunpack.c.l.b16 %v256
      %v512 = vunpack.c.h.b16 %v256
      %v513 = vunpack.c.l.b16 %v257
      %v514 = vunpack.c.h.b16 %v257
      %v515 = vunpack.c.l.b16 %v258
      %v516 = vunpack.c.h.b16 %v258
      %v517 = vunpack.c.l.b16 %v259
      %v518 = vunpack.c.h.b16 %v259
      %v519 = vunpack.c.l.b16 %v260
      %v520 = vunpack.c.h.b16 %v260
      %v521 = vunpack.c.l.b16 %v261
      %v522 = vunpack.c.h.b16 %v261
      %v523 = vunpack.c.l.b16 %v262
      %v524 = vunpack.c.h.b16 %v262
      %v525 = vunpack.c.l.b16 %v263
      %v526 = vunpack.c.h.b16 %v263
      %v527 = vunpack.c.l.b16 %v264
      %v528 = vunpack.c.h.b16 %v264
      %v529 = vunpack.c.l.b16 %v265
      %v530 = vunpack.c.h.b16 %v265
      %v531 = vunpack.c.l.b16 %v266
      %v532 = vunpack.c.h.b16 %v266
      %v533 = vunpack.c.l.b16 %v267
      %v534 = vunpack.c.h.b16 %v267
      %v535 = vunpack.c.l.b16 %v268
      %v536 = vunpack.c.h.b16 %v268
      %v537 = vunpack.c.l.b16 %v269
      %v538 = vunpack.c.h.b16 %v269
      %v539 = vunpack.c.l.b16 %v270
      %v540 = vunpack.c.h.b16 %v270
      %v541 = vunpack.c.l.b16 %v271
      %v542 = vunpack.c.h.b16 %v271
      %v543 = vunpack.c.l.b16 %v272
      %v544 = vunpack.c.h.b16 %v272
      %v545 = vpack.c.b16 %v421, %v417
      %v546 = vpack.c.b16 %v422, %v418
      %v547 = vpack.c.b16 %v423, %v419
      %v548 = vpack.c.b16 %v424, %v420
      %v549 = vpack.c.b16 %v429, %v425
      %v550 = vpack.c.b16 %v430, %v426
      %v551 = vpack.c.b16 %v431, %v427
      %v552 = vpack.c.b16 %v432, %v428
      %v553 = vpack.c.b16 %v437, %v433
      %v554 = vpack.c.b16 %v438, %v434
      %v555 = vpack.c.b16 %v439, %v435
      %v556 = vpack.c.b16 %v440, %v436
      %v557 = vpack.c.b16 %v445, %v441
      %v558 = vpack.c.b16 %v446, %v442
      %v559 = vpack.c.b16 %v447, %v443
      %v560 = vpack.c.b16 %v448, %v444
      %v561 = vpack.c.b16 %v453, %v449
      %v562 = vpack.c.b16 %v454, %v450
      %v563 = vpack.c.b16 %v455, %v451
      %v564 = vpack.c.b16 %v456, %v452
      %v565 = vpack.c.b16 %v461, %v457
      %v566 = vpack.c.b16 %v462, %v458
      %v567 = vpack.c.b16 %v463, %v459
      %v568 = vpack.c.b16 %v464, %v460
      %v569 = vpack.c.b16 %v469, %v465
      %v570 = vpack.c.b16 %v470, %v466
      %v571 = vpack.c.b16 %v471, %v467
      %v572 = vpack.c.b16 %v472, %v468
      %v573 = vpack.c.b16 %v477, %v473
      %v574 = vpack.c.b16 %v478, %v474
      %v575 = vpack.c.b16 %v479, %v475
      %v576 = vpack.c.b16 %v480, %v476
      %v577 = vpack.c.b16 %v485, %v481
      %v578 = vpack.c.b16 %v486, %v482
      %v579 = vpack.c.b16 %v487, %v483
      %v580 = vpack.c.b16 %v488, %v484
      %v581 = vpack.c.b16 %v493, %v489
      %v582 = vpack.c.b16 %v494, %v490
      %v583 = vpack.c.b16 %v495, %v491
      %v584 = vpack.c.b16 %v496, %v492
      %v585 = vpack.c.b16 %v501, %v497
      %v586 = vpack.c.b16 %v502, %v498
      %v587 = vpack.c.b16 %v503, %v499
      %v588 = vpack.c.b16 %v504, %v500
      %v589 = vpack.c.b16 %v509, %v505
      %v590 = vpack.c.b16 %v510, %v506
      %v591 = vpack.c.b16 %v511, %v507
      %v592 = vpack.c.b16 %v512, %v508
      %v593 = vpack.c.b16 %v517, %v513
      %v594 = vpack.c.b16 %v518, %v514
      %v595 = vpack.c.b16 %v519, %v515
      %v596 = vpack.c.b16 %v520, %v516
      %v597 = vpack.c.b16 %v525, %v521
      %v598 = vpack.c.b16 %v526, %v522
      %v599 = vpack.c.b16 %v527, %v523
      %v600 = vpack.c.b16 %v528, %v524
      %v601 = vpack.c.b16 %v533, %v529
      %v602 = vpack.c.b16 %v534, %v530
      %v603 = vpack.c.b16 %v535, %v531
      %v604 = vpack.c.b16 %v536, %v532
      %v605 = vpack.c.b16 %v541, %v537
      %v606 = vpack.c.b16 %v542, %v538
      %v607 = vpack.c.b16 %v543, %v539
      %v608 = vpack.c.b16 %v544, %v540
      %673 = vmatprep.subr.bf16.mxu0 %v574
      %674 = vmatpush1.bf16.msra.mxu0 %v573
      %675 = vmatprep.subr.bf16.mxu0 %v570
      %676 = vmatpush1.bf16.msra.mxu0 %v569
      %677 = vmatprep.subr.bf16.mxu0 %v566
      %678 = vmatpush1.bf16.msra.mxu0 %v565
      %679 = vmatprep.subr.bf16.mxu0 %v562
      %680 = vmatpush1.bf16.msra.mxu0 %v561
      %681 = vmatprep.subr.bf16.mxu0 %v558
      %682 = vmatpush1.bf16.msra.mxu0 %v557
      %683 = vmatprep.subr.bf16.mxu0 %v554
      %684 = vmatpush1.bf16.msra.mxu0 %v553
      %685 = vmatprep.subr.bf16.mxu0 %v550
      %686 = vmatpush1.bf16.msra.mxu0 %v549
      %687 = vmatprep.subr.bf16.mxu0 %v546
      %688 = vmatpush1.bf16.msra.mxu0 %v545
      %689 = vmatprep.subr.bf16.mxu0 %v606
      %690 = vmatpush2.bf16.msra.mxu0 %v605
      %691 = vmatprep.subr.bf16.mxu0 %v602
      %692 = vmatpush2.bf16.msra.mxu0 %v601
      %693 = vmatprep.subr.bf16.mxu0 %v598
      %694 = vmatpush2.bf16.msra.mxu0 %v597
      %695 = vmatprep.subr.bf16.mxu0 %v594
      %696 = vmatpush2.bf16.msra.mxu0 %v593
      %697 = vmatprep.subr.bf16.mxu0 %v590
      %698 = vmatpush2.bf16.msra.mxu0 %v589
      %699 = vmatprep.subr.bf16.mxu0 %v586
      %700 = vmatpush2.bf16.msra.mxu0 %v585
      %701 = vmatprep.subr.bf16.mxu0 %v582
      %702 = vmatpush2.bf16.msra.mxu0 %v581
      %703 = vmatprep.subr.bf16.mxu0 %v578
      %704 = vmatpush2.bf16.msra.mxu0 %v577
      %705 = vmatprep.mubr.bf16.mxu0 %v322
      %706 = vmatmul.mubr.bf16.gmra.mxu0 %v321
      %v707 = vpop.f32.mrf.mxu0
      %v708 = vadd.f32 0.0, %v707
      %v709 = vpop.f32.mrf.mxu0
      %v710 = vadd.f32 0.0, %v709
      %v711 = vpop.f32.mrf.mxu0
      %v712 = vadd.f32 0.0, %v711
      %v713 = vpop.f32.mrf.mxu0
      %v714 = vadd.f32 0.0, %v713
      %715 = vmatprep.mubr.bf16.mxu0 %v324
      %716 = vmatmul.mubr.bf16.gmra.mxu0 %v323
      %v717 = vpop.f32.mrf.mxu0
      %v718 = vadd.f32 0.0, %v717
      %v719 = vpop.f32.mrf.mxu0
      %v720 = vadd.f32 0.0, %v719
      %v721 = vpop.f32.mrf.mxu0
      %v722 = vadd.f32 0.0, %v721
      %v723 = vpop.f32.mrf.mxu0
      %v724 = vadd.f32 0.0, %v723
      %725 = vmatprep.mubr.bf16.mxu0 %v326
      %726 = vmatmul.mubr.bf16.gmra.mxu0 %v325
      %v727 = vpop.f32.mrf.mxu0
      %v728 = vadd.f32 0.0, %v727
      %v729 = vpop.f32.mrf.mxu0
      %v730 = vadd.f32 0.0, %v729
      %v731 = vpop.f32.mrf.mxu0
      %v732 = vadd.f32 0.0, %v731
      %v733 = vpop.f32.mrf.mxu0
      %v734 = vadd.f32 0.0, %v733
      %735 = vmatprep.mubr.bf16.mxu0 %v328
      %736 = vmatmul.mubr.bf16.gmra.mxu0 %v327
      %v737 = vpop.f32.mrf.mxu0
      %v738 = vadd.f32 0.0, %v737
      %v739 = vpop.f32.mrf.mxu0
      %v740 = vadd.f32 0.0, %v739
      %v741 = vpop.f32.mrf.mxu0
      %v742 = vadd.f32 0.0, %v741
      %v743 = vpop.f32.mrf.mxu0
      %v744 = vadd.f32 0.0, %v743
      %745 = vmatprep.mubr.bf16.mxu0 %v330
      %746 = vmatmul.mubr.bf16.gmra.mxu0 %v329
      %v747 = vpop.f32.mrf.mxu0
      %v748 = vadd.f32 0.0, %v747
      %v749 = vpop.f32.mrf.mxu0
      %v750 = vadd.f32 0.0, %v749
      %v751 = vpop.f32.mrf.mxu0
      %v752 = vadd.f32 0.0, %v751
      %v753 = vpop.f32.mrf.mxu0
      %v754 = vadd.f32 0.0, %v753
      %755 = vmatprep.mubr.bf16.mxu0 %v332
      %756 = vmatmul.mubr.bf16.gmra.mxu0 %v331
      %v757 = vpop.f32.mrf.mxu0
      %v758 = vadd.f32 0.0, %v757
      %v759 = vpop.f32.mrf.mxu0
      %v760 = vadd.f32 0.0, %v759
      %v761 = vpop.f32.mrf.mxu0
      %v762 = vadd.f32 0.0, %v761
      %v763 = vpop.f32.mrf.mxu0
      %v764 = vadd.f32 0.0, %v763
      %765 = vmatprep.mubr.bf16.mxu0 %v334
      %766 = vmatmul.mubr.bf16.gmra.mxu0 %v333
      %v767 = vpop.f32.mrf.mxu0
      %v768 = vadd.f32 0.0, %v767
      %v769 = vpop.f32.mrf.mxu0
      %v770 = vadd.f32 0.0, %v769
      %v771 = vpop.f32.mrf.mxu0
      %v772 = vadd.f32 0.0, %v771
      %v773 = vpop.f32.mrf.mxu0
      %v774 = vadd.f32 0.0, %v773
      %775 = vmatprep.mubr.bf16.mxu0 %v336
      %776 = vmatmul.mubr.bf16.gmra.mxu0 %v335
      %v777 = vpop.f32.mrf.mxu0
      %v778 = vadd.f32 0.0, %v777
      %v779 = vpop.f32.mrf.mxu0
      %v780 = vadd.f32 0.0, %v779
      %v781 = vpop.f32.mrf.mxu0
      %v782 = vadd.f32 0.0, %v781
      %v783 = vpop.f32.mrf.mxu0
      %v784 = vadd.f32 0.0, %v783
      %785 = vdwg.mxu0
      %786 = vmatprep.subr.bf16.mxu0 %v576
      %787 = vmatpush1.bf16.msra.mxu0 %v575
      %788 = vmatprep.subr.bf16.mxu0 %v572
      %789 = vmatpush1.bf16.msra.mxu0 %v571
      %790 = vmatprep.subr.bf16.mxu0 %v568
      %791 = vmatpush1.bf16.msra.mxu0 %v567
      %792 = vmatprep.subr.bf16.mxu0 %v564
      %793 = vmatpush1.bf16.msra.mxu0 %v563
      %794 = vmatprep.subr.bf16.mxu0 %v560
      %795 = vmatpush1.bf16.msra.mxu0 %v559
      %796 = vmatprep.subr.bf16.mxu0 %v556
      %797 = vmatpush1.bf16.msra.mxu0 %v555
      %798 = vmatprep.subr.bf16.mxu0 %v552
      %799 = vmatpush1.bf16.msra.mxu0 %v551
      %800 = vmatprep.subr.bf16.mxu0 %v548
      %801 = vmatpush1.bf16.msra.mxu0 %v547
      %802 = vmatprep.subr.bf16.mxu0 %v608
      %803 = vmatpush2.bf16.msra.mxu0 %v607
      %804 = vmatprep.subr.bf16.mxu0 %v604
      %805 = vmatpush2.bf16.msra.mxu0 %v603
      %806 = vmatprep.subr.bf16.mxu0 %v600
      %807 = vmatpush2.bf16.msra.mxu0 %v599
      %808 = vmatprep.subr.bf16.mxu0 %v596
      %809 = vmatpush2.bf16.msra.mxu0 %v595
      %810 = vmatprep.subr.bf16.mxu0 %v592
      %811 = vmatpush2.bf16.msra.mxu0 %v591
      %812 = vmatprep.subr.bf16.mxu0 %v588
      %813 = vmatpush2.bf16.msra.mxu0 %v587
      %814 = vmatprep.subr.bf16.mxu0 %v584
      %815 = vmatpush2.bf16.msra.mxu0 %v583
      %816 = vmatprep.subr.bf16.mxu0 %v580
      %817 = vmatpush2.bf16.msra.mxu0 %v579
      %818 = vmatprep.mubr.bf16.mxu0 %v322
      %819 = vmatmul.mubr.bf16.gmra.mxu0 %v321
      %v820 = vpop.f32.mrf.mxu0
      %v821 = vadd.f32 0.0, %v820
      %v822 = vpop.f32.mrf.mxu0
      %v823 = vadd.f32 0.0, %v822
      %v824 = vpop.f32.mrf.mxu0
      %v825 = vadd.f32 0.0, %v824
      %v826 = vpop.f32.mrf.mxu0
      %v827 = vadd.f32 0.0, %v826
      %828 = vmatprep.mubr.bf16.mxu0 %v324
      %829 = vmatmul.mubr.bf16.gmra.mxu0 %v323
      %v830 = vpop.f32.mrf.mxu0
      %v831 = vadd.f32 0.0, %v830
      %v832 = vpop.f32.mrf.mxu0
      %v833 = vadd.f32 0.0, %v832
      %v834 = vpop.f32.mrf.mxu0
      %v835 = vadd.f32 0.0, %v834
      %v836 = vpop.f32.mrf.mxu0
      %v837 = vadd.f32 0.0, %v836
      %838 = vmatprep.mubr.bf16.mxu0 %v326
      %839 = vmatmul.mubr.bf16.gmra.mxu0 %v325
      %v840 = vpop.f32.mrf.mxu0
      %v841 = vadd.f32 0.0, %v840
      %v842 = vpop.f32.mrf.mxu0
      %v843 = vadd.f32 0.0, %v842
      %v844 = vpop.f32.mrf.mxu0
      %v845 = vadd.f32 0.0, %v844
      %v846 = vpop.f32.mrf.mxu0
      %v847 = vadd.f32 0.0, %v846
      %848 = vmatprep.mubr.bf16.mxu0 %v328
      %849 = vmatmul.mubr.bf16.gmra.mxu0 %v327
      %v850 = vpop.f32.mrf.mxu0
      %v851 = vadd.f32 0.0, %v850
      %v852 = vpop.f32.mrf.mxu0
      %v853 = vadd.f32 0.0, %v852
      %v854 = vpop.f32.mrf.mxu0
      %v855 = vadd.f32 0.0, %v854
      %v856 = vpop.f32.mrf.mxu0
      %v857 = vadd.f32 0.0, %v856
      %858 = vmatprep.mubr.bf16.mxu0 %v330
      %859 = vmatmul.mubr.bf16.gmra.mxu0 %v329
      %v860 = vpop.f32.mrf.mxu0
      %v861 = vadd.f32 0.0, %v860
      %v862 = vpop.f32.mrf.mxu0
      %v863 = vadd.f32 0.0, %v862
      %v864 = vpop.f32.mrf.mxu0
      %v865 = vadd.f32 0.0, %v864
      %v866 = vpop.f32.mrf.mxu0
      %v867 = vadd.f32 0.0, %v866
      %868 = vmatprep.mubr.bf16.mxu0 %v332
      %869 = vmatmul.mubr.bf16.gmra.mxu0 %v331
      %v870 = vpop.f32.mrf.mxu0
      %v871 = vadd.f32 0.0, %v870
      %v872 = vpop.f32.mrf.mxu0
      %v873 = vadd.f32 0.0, %v872
      %v874 = vpop.f32.mrf.mxu0
      %v875 = vadd.f32 0.0, %v874
      %v876 = vpop.f32.mrf.mxu0
      %v877 = vadd.f32 0.0, %v876
      %878 = vmatprep.mubr.bf16.mxu0 %v334
      %879 = vmatmul.mubr.bf16.gmra.mxu0 %v333
      %v880 = vpop.f32.mrf.mxu0
      %v881 = vadd.f32 0.0, %v880
      %v882 = vpop.f32.mrf.mxu0
      %v883 = vadd.f32 0.0, %v882
      %v884 = vpop.f32.mrf.mxu0
      %v885 = vadd.f32 0.0, %v884
      %v886 = vpop.f32.mrf.mxu0
      %v887 = vadd.f32 0.0, %v886
      %888 = vmatprep.mubr.bf16.mxu0 %v336
      %889 = vmatmul.mubr.bf16.gmra.mxu0 %v335
      %v890 = vpop.f32.mrf.mxu0
      %v891 = vadd.f32 0.0, %v890
      %v892 = vpop.f32.mrf.mxu0
      %v893 = vadd.f32 0.0, %v892
      %v894 = vpop.f32.mrf.mxu0
      %v895 = vadd.f32 0.0, %v894
      %v896 = vpop.f32.mrf.mxu0
      %v897 = vadd.f32 0.0, %v896
      %898 = vdwg.mxu0
      %v899 = vmul.f32 %v708, %v708
      %v900 = vmul.f32 %v710, %v710
      %v901 = vmul.f32 %v712, %v712
      %v902 = vmul.f32 %v714, %v714
      %v903 = vmul.f32 %v718, %v718
      %v904 = vmul.f32 %v720, %v720
      %v905 = vmul.f32 %v722, %v722
      %v906 = vmul.f32 %v724, %v724
      %v907 = vmul.f32 %v728, %v728
      %v908 = vmul.f32 %v730, %v730
      %v909 = vmul.f32 %v732, %v732
      %v910 = vmul.f32 %v734, %v734
      %v911 = vmul.f32 %v738, %v738
      %v912 = vmul.f32 %v740, %v740
      %v913 = vmul.f32 %v742, %v742
      %v914 = vmul.f32 %v744, %v744
      %v915 = vmul.f32 %v748, %v748
      %v916 = vmul.f32 %v750, %v750
      %v917 = vmul.f32 %v752, %v752
      %v918 = vmul.f32 %v754, %v754
      %v919 = vmul.f32 %v758, %v758
      %v920 = vmul.f32 %v760, %v760
      %v921 = vmul.f32 %v762, %v762
      %v922 = vmul.f32 %v764, %v764
      %v923 = vmul.f32 %v768, %v768
      %v924 = vmul.f32 %v770, %v770
      %v925 = vmul.f32 %v772, %v772
      %v926 = vmul.f32 %v774, %v774
      %v927 = vmul.f32 %v778, %v778
      %v928 = vmul.f32 %v780, %v780
      %v929 = vmul.f32 %v782, %v782
      %v930 = vmul.f32 %v784, %v784
      %v931 = vmul.f32 %v821, %v821
      %v932 = vmul.f32 %v823, %v823
      %v933 = vmul.f32 %v825, %v825
      %v934 = vmul.f32 %v827, %v827
      %v935 = vmul.f32 %v831, %v831
      %v936 = vmul.f32 %v833, %v833
      %v937 = vmul.f32 %v835, %v835
      %v938 = vmul.f32 %v837, %v837
      %v939 = vmul.f32 %v841, %v841
      %v940 = vmul.f32 %v843, %v843
      %v941 = vmul.f32 %v845, %v845
      %v942 = vmul.f32 %v847, %v847
      %v943 = vmul.f32 %v851, %v851
      %v944 = vmul.f32 %v853, %v853
      %v945 = vmul.f32 %v855, %v855
      %v946 = vmul.f32 %v857, %v857
      %v947 = vmul.f32 %v861, %v861
      %v948 = vmul.f32 %v863, %v863
      %v949 = vmul.f32 %v865, %v865
      %v950 = vmul.f32 %v867, %v867
      %v951 = vmul.f32 %v871, %v871
      %v952 = vmul.f32 %v873, %v873
      %v953 = vmul.f32 %v875, %v875
      %v954 = vmul.f32 %v877, %v877
      %v955 = vmul.f32 %v881, %v881
      %v956 = vmul.f32 %v883, %v883
      %v957 = vmul.f32 %v885, %v885
      %v958 = vmul.f32 %v887, %v887
      %v959 = vmul.f32 %v891, %v891
      %v960 = vmul.f32 %v893, %v893
      %v961 = vmul.f32 %v895, %v895
      %v962 = vmul.f32 %v897, %v897
      %v963 = vadd.f32 %v899, %v931
      %v964 = vadd.f32 %v900, %v932
      %v965 = vadd.f32 %v901, %v933
      %v966 = vadd.f32 %v902, %v934
      %v967 = vadd.f32 %v903, %v935
      %v968 = vadd.f32 %v904, %v936
      %v969 = vadd.f32 %v905, %v937
      %v970 = vadd.f32 %v906, %v938
      %v971 = vadd.f32 %v907, %v939
      %v972 = vadd.f32 %v908, %v940
      %v973 = vadd.f32 %v909, %v941
      %v974 = vadd.f32 %v910, %v942
      %v975 = vadd.f32 %v911, %v943
      %v976 = vadd.f32 %v912, %v944
      %v977 = vadd.f32 %v913, %v945
      %v978 = vadd.f32 %v914, %v946
      %v979 = vadd.f32 %v915, %v947
      %v980 = vadd.f32 %v916, %v948
      %v981 = vadd.f32 %v917, %v949
      %v982 = vadd.f32 %v918, %v950
      %v983 = vadd.f32 %v919, %v951
      %v984 = vadd.f32 %v920, %v952
      %v985 = vadd.f32 %v921, %v953
      %v986 = vadd.f32 %v922, %v954
      %v987 = vadd.f32 %v923, %v955
      %v988 = vadd.f32 %v924, %v956
      %v989 = vadd.f32 %v925, %v957
      %v990 = vadd.f32 %v926, %v958
      %v991 = vadd.f32 %v927, %v959
      %v992 = vadd.f32 %v928, %v960
      %v993 = vadd.f32 %v929, %v961
      %v994 = vadd.f32 %v930, %v962
      %v995 = vmax.f32 %v963, 1e-07
      %v996 = vmax.f32 %v964, 1e-07
      %v997 = vmax.f32 %v965, 1e-07
      %v998 = vmax.f32 %v966, 1e-07
      %v999 = vmax.f32 %v967, 1e-07
      %v1000 = vmax.f32 %v968, 1e-07
      %v1001 = vmax.f32 %v969, 1e-07
      %v1002 = vmax.f32 %v970, 1e-07
      %v1003 = vmax.f32 %v971, 1e-07
      %v1004 = vmax.f32 %v972, 1e-07
      %v1005 = vmax.f32 %v973, 1e-07
      %v1006 = vmax.f32 %v974, 1e-07
      %v1007 = vmax.f32 %v975, 1e-07
      %v1008 = vmax.f32 %v976, 1e-07
      %v1009 = vmax.f32 %v977, 1e-07
      %v1010 = vmax.f32 %v978, 1e-07
      %v1011 = vmax.f32 %v979, 1e-07
      %v1012 = vmax.f32 %v980, 1e-07
      %v1013 = vmax.f32 %v981, 1e-07
      %v1014 = vmax.f32 %v982, 1e-07
      %v1015 = vmax.f32 %v983, 1e-07
      %v1016 = vmax.f32 %v984, 1e-07
      %v1017 = vmax.f32 %v985, 1e-07
      %v1018 = vmax.f32 %v986, 1e-07
      %v1019 = vmax.f32 %v987, 1e-07
      %v1020 = vmax.f32 %v988, 1e-07
      %v1021 = vmax.f32 %v989, 1e-07
      %v1022 = vmax.f32 %v990, 1e-07
      %v1023 = vmax.f32 %v991, 1e-07
      %v1024 = vmax.f32 %v992, 1e-07
      %v1025 = vmax.f32 %v993, 1e-07
      %v1026 = vmax.f32 %v994, 1e-07
      %v1027 = vrsqrt.pop %v995
      %v1028 = vmul.f32 %v995, %v1027
      %vm1029 = vcmp.eq.f32.partialorder %v995, inf
      %v1030 = vsel %vm1029, %v995, %v1028
      %vm1031 = vcmp.eq.f32.partialorder %v995, 0.0
      %v1032 = vand.u32 %v995, 2147483648
      %v1033 = vsel %vm1031, %v1032, %v1030
      %v1034 = vrsqrt.pop %v996
      %v1035 = vmul.f32 %v996, %v1034
      %vm1036 = vcmp.eq.f32.partialorder %v996, inf
      %v1037 = vsel %vm1036, %v996, %v1035
      %vm1038 = vcmp.eq.f32.partialorder %v996, 0.0
      %v1039 = vand.u32 %v996, 2147483648
      %v1040 = vsel %vm1038, %v1039, %v1037
      %v1041 = vrsqrt.pop %v997
      %v1042 = vmul.f32 %v997, %v1041
      %vm1043 = vcmp.eq.f32.partialorder %v997, inf
      %v1044 = vsel %vm1043, %v997, %v1042
      %vm1045 = vcmp.eq.f32.partialorder %v997, 0.0
      %v1046 = vand.u32 %v997, 2147483648
      %v1047 = vsel %vm1045, %v1046, %v1044
      %v1048 = vrsqrt.pop %v998
      %v1049 = vmul.f32 %v998, %v1048
      %vm1050 = vcmp.eq.f32.partialorder %v998, inf
      %v1051 = vsel %vm1050, %v998, %v1049
      %vm1052 = vcmp.eq.f32.partialorder %v998, 0.0
      %v1053 = vand.u32 %v998, 2147483648
      %v1054 = vsel %vm1052, %v1053, %v1051
      %v1055 = vrsqrt.pop %v999
      %v1056 = vmul.f32 %v999, %v1055
      %vm1057 = vcmp.eq.f32.partialorder %v999, inf
      %v1058 = vsel %vm1057, %v999, %v1056
      %vm1059 = vcmp.eq.f32.partialorder %v999, 0.0
      %v1060 = vand.u32 %v999, 2147483648
      %v1061 = vsel %vm1059, %v1060, %v1058
      %v1062 = vrsqrt.pop %v1000
      %v1063 = vmul.f32 %v1000, %v1062
      %vm1064 = vcmp.eq.f32.partialorder %v1000, inf
      %v1065 = vsel %vm1064, %v1000, %v1063
      %vm1066 = vcmp.eq.f32.partialorder %v1000, 0.0
      %v1067 = vand.u32 %v1000, 2147483648
      %v1068 = vsel %vm1066, %v1067, %v1065
      %v1069 = vrsqrt.pop %v1001
      %v1070 = vmul.f32 %v1001, %v1069
      %vm1071 = vcmp.eq.f32.partialorder %v1001, inf
      %v1072 = vsel %vm1071, %v1001, %v1070
      %vm1073 = vcmp.eq.f32.partialorder %v1001, 0.0
      %v1074 = vand.u32 %v1001, 2147483648
      %v1075 = vsel %vm1073, %v1074, %v1072
      %v1076 = vrsqrt.pop %v1002
      %v1077 = vmul.f32 %v1002, %v1076
      %vm1078 = vcmp.eq.f32.partialorder %v1002, inf
      %v1079 = vsel %vm1078, %v1002, %v1077
      %vm1080 = vcmp.eq.f32.partialorder %v1002, 0.0
      %v1081 = vand.u32 %v1002, 2147483648
      %v1082 = vsel %vm1080, %v1081, %v1079
      %v1083 = vrsqrt.pop %v1003
      %v1084 = vmul.f32 %v1003, %v1083
      %vm1085 = vcmp.eq.f32.partialorder %v1003, inf
      %v1086 = vsel %vm1085, %v1003, %v1084
      %vm1087 = vcmp.eq.f32.partialorder %v1003, 0.0
      %v1088 = vand.u32 %v1003, 2147483648
      %v1089 = vsel %vm1087, %v1088, %v1086
      %v1090 = vrsqrt.pop %v1004
      %v1091 = vmul.f32 %v1004, %v1090
      %vm1092 = vcmp.eq.f32.partialorder %v1004, inf
      %v1093 = vsel %vm1092, %v1004, %v1091
      %vm1094 = vcmp.eq.f32.partialorder %v1004, 0.0
      %v1095 = vand.u32 %v1004, 2147483648
      %v1096 = vsel %vm1094, %v1095, %v1093
      %v1097 = vrsqrt.pop %v1005
      %v1098 = vmul.f32 %v1005, %v1097
      %vm1099 = vcmp.eq.f32.partialorder %v1005, inf
      %v1100 = vsel %vm1099, %v1005, %v1098
      %vm1101 = vcmp.eq.f32.partialorder %v1005, 0.0
      %v1102 = vand.u32 %v1005, 2147483648
      %v1103 = vsel %vm1101, %v1102, %v1100
      %v1104 = vrsqrt.pop %v1006
      %v1105 = vmul.f32 %v1006, %v1104
      %vm1106 = vcmp.eq.f32.partialorder %v1006, inf
      %v1107 = vsel %vm1106, %v1006, %v1105
      %vm1108 = vcmp.eq.f32.partialorder %v1006, 0.0
      %v1109 = vand.u32 %v1006, 2147483648
      %v1110 = vsel %vm1108, %v1109, %v1107
      %v1111 = vrsqrt.pop %v1007
      %v1112 = vmul.f32 %v1007, %v1111
      %vm1113 = vcmp.eq.f32.partialorder %v1007, inf
      %v1114 = vsel %vm1113, %v1007, %v1112
      %vm1115 = vcmp.eq.f32.partialorder %v1007, 0.0
      %v1116 = vand.u32 %v1007, 2147483648
      %v1117 = vsel %vm1115, %v1116, %v1114
      %v1118 = vrsqrt.pop %v1008
      %v1119 = vmul.f32 %v1008, %v1118
      %vm1120 = vcmp.eq.f32.partialorder %v1008, inf
      %v1121 = vsel %vm1120, %v1008, %v1119
      %vm1122 = vcmp.eq.f32.partialorder %v1008, 0.0
      %v1123 = vand.u32 %v1008, 2147483648
      %v1124 = vsel %vm1122, %v1123, %v1121
      %v1125 = vrsqrt.pop %v1009
      %v1126 = vmul.f32 %v1009, %v1125
      %vm1127 = vcmp.eq.f32.partialorder %v1009, inf
      %v1128 = vsel %vm1127, %v1009, %v1126
      %vm1129 = vcmp.eq.f32.partialorder %v1009, 0.0
      %v1130 = vand.u32 %v1009, 2147483648
      %v1131 = vsel %vm1129, %v1130, %v1128
      %v1132 = vrsqrt.pop %v1010
      %v1133 = vmul.f32 %v1010, %v1132
      %vm1134 = vcmp.eq.f32.partialorder %v1010, inf
      %v1135 = vsel %vm1134, %v1010, %v1133
      %vm1136 = vcmp.eq.f32.partialorder %v1010, 0.0
      %v1137 = vand.u32 %v1010, 2147483648
      %v1138 = vsel %vm1136, %v1137, %v1135
      %v1139 = vrsqrt.pop %v1011
      %v1140 = vmul.f32 %v1011, %v1139
      %vm1141 = vcmp.eq.f32.partialorder %v1011, inf
      %v1142 = vsel %vm1141, %v1011, %v1140
      %vm1143 = vcmp.eq.f32.partialorder %v1011, 0.0
      %v1144 = vand.u32 %v1011, 2147483648
      %v1145 = vsel %vm1143, %v1144, %v1142
      %v1146 = vrsqrt.pop %v1012
      %v1147 = vmul.f32 %v1012, %v1146
      %vm1148 = vcmp.eq.f32.partialorder %v1012, inf
      %v1149 = vsel %vm1148, %v1012, %v1147
      %vm1150 = vcmp.eq.f32.partialorder %v1012, 0.0
      %v1151 = vand.u32 %v1012, 2147483648
      %v1152 = vsel %vm1150, %v1151, %v1149
      %v1153 = vrsqrt.pop %v1013
      %v1154 = vmul.f32 %v1013, %v1153
      %vm1155 = vcmp.eq.f32.partialorder %v1013, inf
      %v1156 = vsel %vm1155, %v1013, %v1154
      %vm1157 = vcmp.eq.f32.partialorder %v1013, 0.0
      %v1158 = vand.u32 %v1013, 2147483648
      %v1159 = vsel %vm1157, %v1158, %v1156
      %v1160 = vrsqrt.pop %v1014
      %v1161 = vmul.f32 %v1014, %v1160
      %vm1162 = vcmp.eq.f32.partialorder %v1014, inf
      %v1163 = vsel %vm1162, %v1014, %v1161
      %vm1164 = vcmp.eq.f32.partialorder %v1014, 0.0
      %v1165 = vand.u32 %v1014, 2147483648
      %v1166 = vsel %vm1164, %v1165, %v1163
      %v1167 = vrsqrt.pop %v1015
      %v1168 = vmul.f32 %v1015, %v1167
      %vm1169 = vcmp.eq.f32.partialorder %v1015, inf
      %v1170 = vsel %vm1169, %v1015, %v1168
      %vm1171 = vcmp.eq.f32.partialorder %v1015, 0.0
      %v1172 = vand.u32 %v1015, 2147483648
      %v1173 = vsel %vm1171, %v1172, %v1170
      %v1174 = vrsqrt.pop %v1016
      %v1175 = vmul.f32 %v1016, %v1174
      %vm1176 = vcmp.eq.f32.partialorder %v1016, inf
      %v1177 = vsel %vm1176, %v1016, %v1175
      %vm1178 = vcmp.eq.f32.partialorder %v1016, 0.0
      %v1179 = vand.u32 %v1016, 2147483648
      %v1180 = vsel %vm1178, %v1179, %v1177
      %v1181 = vrsqrt.pop %v1017
      %v1182 = vmul.f32 %v1017, %v1181
      %vm1183 = vcmp.eq.f32.partialorder %v1017, inf
      %v1184 = vsel %vm1183, %v1017, %v1182
      %vm1185 = vcmp.eq.f32.partialorder %v1017, 0.0
      %v1186 = vand.u32 %v1017, 2147483648
      %v1187 = vsel %vm1185, %v1186, %v1184
      %v1188 = vrsqrt.pop %v1018
      %v1189 = vmul.f32 %v1018, %v1188
      %vm1190 = vcmp.eq.f32.partialorder %v1018, inf
      %v1191 = vsel %vm1190, %v1018, %v1189
      %vm1192 = vcmp.eq.f32.partialorder %v1018, 0.0
      %v1193 = vand.u32 %v1018, 2147483648
      %v1194 = vsel %vm1192, %v1193, %v1191
      %v1195 = vrsqrt.pop %v1019
      %v1196 = vmul.f32 %v1019, %v1195
      %vm1197 = vcmp.eq.f32.partialorder %v1019, inf
      %v1198 = vsel %vm1197, %v1019, %v1196
      %vm1199 = vcmp.eq.f32.partialorder %v1019, 0.0
      %v1200 = vand.u32 %v1019, 2147483648
      %v1201 = vsel %vm1199, %v1200, %v1198
      %v1202 = vrsqrt.pop %v1020
      %v1203 = vmul.f32 %v1020, %v1202
      %vm1204 = vcmp.eq.f32.partialorder %v1020, inf
      %v1205 = vsel %vm1204, %v1020, %v1203
      %vm1206 = vcmp.eq.f32.partialorder %v1020, 0.0
      %v1207 = vand.u32 %v1020, 2147483648
      %v1208 = vsel %vm1206, %v1207, %v1205
      %v1209 = vrsqrt.pop %v1021
      %v1210 = vmul.f32 %v1021, %v1209
      %vm1211 = vcmp.eq.f32.partialorder %v1021, inf
      %v1212 = vsel %vm1211, %v1021, %v1210
      %vm1213 = vcmp.eq.f32.partialorder %v1021, 0.0
      %v1214 = vand.u32 %v1021, 2147483648
      %v1215 = vsel %vm1213, %v1214, %v1212
      %v1216 = vrsqrt.pop %v1022
      %v1217 = vmul.f32 %v1022, %v1216
      %vm1218 = vcmp.eq.f32.partialorder %v1022, inf
      %v1219 = vsel %vm1218, %v1022, %v1217
      %vm1220 = vcmp.eq.f32.partialorder %v1022, 0.0
      %v1221 = vand.u32 %v1022, 2147483648
      %v1222 = vsel %vm1220, %v1221, %v1219
      %v1223 = vrsqrt.pop %v1023
      %v1224 = vmul.f32 %v1023, %v1223
      %vm1225 = vcmp.eq.f32.partialorder %v1023, inf
      %v1226 = vsel %vm1225, %v1023, %v1224
      %vm1227 = vcmp.eq.f32.partialorder %v1023, 0.0
      %v1228 = vand.u32 %v1023, 2147483648
      %v1229 = vsel %vm1227, %v1228, %v1226
      %v1230 = vrsqrt.pop %v1024
      %v1231 = vmul.f32 %v1024, %v1230
      %vm1232 = vcmp.eq.f32.partialorder %v1024, inf
      %v1233 = vsel %vm1232, %v1024, %v1231
      %vm1234 = vcmp.eq.f32.partialorder %v1024, 0.0
      %v1235 = vand.u32 %v1024, 2147483648
      %v1236 = vsel %vm1234, %v1235, %v1233
      %v1237 = vrsqrt.pop %v1025
      %v1238 = vmul.f32 %v1025, %v1237
      %vm1239 = vcmp.eq.f32.partialorder %v1025, inf
      %v1240 = vsel %vm1239, %v1025, %v1238
      %vm1241 = vcmp.eq.f32.partialorder %v1025, 0.0
      %v1242 = vand.u32 %v1025, 2147483648
      %v1243 = vsel %vm1241, %v1242, %v1240
      %v1244 = vrsqrt.pop %v1026
      %v1245 = vmul.f32 %v1026, %v1244
      %vm1246 = vcmp.eq.f32.partialorder %v1026, inf
      %v1247 = vsel %vm1246, %v1026, %v1245
      %vm1248 = vcmp.eq.f32.partialorder %v1026, 0.0
      %v1249 = vand.u32 %v1026, 2147483648
      %v1250 = vsel %vm1248, %v1249, %v1247
      %v1251 = vsub.f32 %v1145, %v1033
      %v1252 = vsub.f32 %v1152, %v1040
      %v1253 = vsub.f32 %v1159, %v1047
      %v1254 = vsub.f32 %v1166, %v1054
      %v1255 = vsub.f32 %v1173, %v1061
      %v1256 = vsub.f32 %v1180, %v1068
      %v1257 = vsub.f32 %v1187, %v1075
      %v1258 = vsub.f32 %v1194, %v1082
      %v1259 = vsub.f32 %v1201, %v1089
      %v1260 = vsub.f32 %v1208, %v1096
      %v1261 = vsub.f32 %v1215, %v1103
      %v1262 = vsub.f32 %v1222, %v1110
      %v1263 = vsub.f32 %v1229, %v1117
      %v1264 = vsub.f32 %v1236, %v1124
      %v1265 = vsub.f32 %v1243, %v1131
      %v1266 = vsub.f32 %v1250, %v1138
      %v1267 = vmul.f32 %v1251, %v1251
      %v1268 = vmul.f32 %v1252, %v1252
      %v1269 = vmul.f32 %v1253, %v1253
      %v1270 = vmul.f32 %v1254, %v1254
      %v1271 = vmul.f32 %v1255, %v1255
      %v1272 = vmul.f32 %v1256, %v1256
      %v1273 = vmul.f32 %v1257, %v1257
      %v1274 = vmul.f32 %v1258, %v1258
      %v1275 = vmul.f32 %v1259, %v1259
      %v1276 = vmul.f32 %v1260, %v1260
      %v1277 = vmul.f32 %v1261, %v1261
      %v1278 = vmul.f32 %v1262, %v1262
      %v1279 = vmul.f32 %v1263, %v1263
      %v1280 = vmul.f32 %v1264, %v1264
      %v1281 = vmul.f32 %v1265, %v1265
      %v1282 = vmul.f32 %v1266, %v1266
      %v1283 = vadd.f32 %v1145, 1.1920929e-07
      %v1284 = vadd.f32 %v1152, 1.1920929e-07
      %v1285 = vadd.f32 %v1159, 1.1920929e-07
      %v1286 = vadd.f32 %v1166, 1.1920929e-07
      %v1287 = vadd.f32 %v1173, 1.1920929e-07
      %v1288 = vadd.f32 %v1180, 1.1920929e-07
      %v1289 = vadd.f32 %v1187, 1.1920929e-07
      %v1290 = vadd.f32 %v1194, 1.1920929e-07
      %v1291 = vadd.f32 %v1201, 1.1920929e-07
      %v1292 = vadd.f32 %v1208, 1.1920929e-07
      %v1293 = vadd.f32 %v1215, 1.1920929e-07
      %v1294 = vadd.f32 %v1222, 1.1920929e-07
      %v1295 = vadd.f32 %v1229, 1.1920929e-07
      %v1296 = vadd.f32 %v1236, 1.1920929e-07
      %v1297 = vadd.f32 %v1243, 1.1920929e-07
      %v1298 = vadd.f32 %v1250, 1.1920929e-07
      %v1299 = vlog2.pop %v1283
      %v1300 = vmul.f32 %v1299, 0.6931472
      %v1301 = vlog2.pop %v1284
      %v1302 = vmul.f32 %v1301, 0.6931472
      %v1303 = vlog2.pop %v1285
      %v1304 = vmul.f32 %v1303, 0.6931472
      %v1305 = vlog2.pop %v1286
      %v1306 = vmul.f32 %v1305, 0.6931472
      %v1307 = vlog2.pop %v1287
      %v1308 = vmul.f32 %v1307, 0.6931472
      %v1309 = vlog2.pop %v1288
      %v1310 = vmul.f32 %v1309, 0.6931472
      %v1311 = vlog2.pop %v1289
      %v1312 = vmul.f32 %v1311, 0.6931472
      %v1313 = vlog2.pop %v1290
      %v1314 = vmul.f32 %v1313, 0.6931472
      %v1315 = vlog2.pop %v1291
      %v1316 = vmul.f32 %v1315, 0.6931472
      %v1317 = vlog2.pop %v1292
      %v1318 = vmul.f32 %v1317, 0.6931472
      %v1319 = vlog2.pop %v1293
      %v1320 = vmul.f32 %v1319, 0.6931472
      %v1321 = vlog2.pop %v1294
      %v1322 = vmul.f32 %v1321, 0.6931472
      %v1323 = vlog2.pop %v1295
      %v1324 = vmul.f32 %v1323, 0.6931472
      %v1325 = vlog2.pop %v1296
      %v1326 = vmul.f32 %v1325, 0.6931472
      %v1327 = vlog2.pop %v1297
      %v1328 = vmul.f32 %v1327, 0.6931472
      %v1329 = vlog2.pop %v1298
      %v1330 = vmul.f32 %v1329, 0.6931472
      %v1331 = vadd.f32 %v1033, 1.1920929e-07
      %v1332 = vadd.f32 %v1040, 1.1920929e-07
      %v1333 = vadd.f32 %v1047, 1.1920929e-07
      %v1334 = vadd.f32 %v1054, 1.1920929e-07
      %v1335 = vadd.f32 %v1061, 1.1920929e-07
      %v1336 = vadd.f32 %v1068, 1.1920929e-07
      %v1337 = vadd.f32 %v1075, 1.1920929e-07
      %v1338 = vadd.f32 %v1082, 1.1920929e-07
      %v1339 = vadd.f32 %v1089, 1.1920929e-07
      %v1340 = vadd.f32 %v1096, 1.1920929e-07
      %v1341 = vadd.f32 %v1103, 1.1920929e-07
      %v1342 = vadd.f32 %v1110, 1.1920929e-07
      %v1343 = vadd.f32 %v1117, 1.1920929e-07
      %v1344 = vadd.f32 %v1124, 1.1920929e-07
      %v1345 = vadd.f32 %v1131, 1.1920929e-07
      %v1346 = vadd.f32 %v1138, 1.1920929e-07
      %v1347 = vlog2.pop %v1331
      %v1348 = vmul.f32 %v1347, 0.6931472
      %v1349 = vlog2.pop %v1332
      %v1350 = vmul.f32 %v1349, 0.6931472
      %v1351 = vlog2.pop %v1333
      %v1352 = vmul.f32 %v1351, 0.6931472
      %v1353 = vlog2.pop %v1334
      %v1354 = vmul.f32 %v1353, 0.6931472
      %v1355 = vlog2.pop %v1335
      %v1356 = vmul.f32 %v1355, 0.6931472
      %v1357 = vlog2.pop %v1336
      %v1358 = vmul.f32 %v1357, 0.6931472
      %v1359 = vlog2.pop %v1337
      %v1360 = vmul.f32 %v1359, 0.6931472
      %v1361 = vlog2.pop %v1338
      %v1362 = vmul.f32 %v1361, 0.6931472
      %v1363 = vlog2.pop %v1339
      %v1364 = vmul.f32 %v1363, 0.6931472
      %v1365 = vlog2.pop %v1340
      %v1366 = vmul.f32 %v1365, 0.6931472
      %v1367 = vlog2.pop %v1341
      %v1368 = vmul.f32 %v1367, 0.6931472
      %v1369 = vlog2.pop %v1342
      %v1370 = vmul.f32 %v1369, 0.6931472
      %v1371 = vlog2.pop %v1343
      %v1372 = vmul.f32 %v1371, 0.6931472
      %v1373 = vlog2.pop %v1344
      %v1374 = vmul.f32 %v1373, 0.6931472
      %v1375 = vlog2.pop %v1345
      %v1376 = vmul.f32 %v1375, 0.6931472
      %v1377 = vlog2.pop %v1346
      %v1378 = vmul.f32 %v1377, 0.6931472
      %v1379 = vsub.f32 %v1300, %v1348
      %v1380 = vsub.f32 %v1302, %v1350
      %v1381 = vsub.f32 %v1304, %v1352
      %v1382 = vsub.f32 %v1306, %v1354
      %v1383 = vsub.f32 %v1308, %v1356
      %v1384 = vsub.f32 %v1310, %v1358
      %v1385 = vsub.f32 %v1312, %v1360
      %v1386 = vsub.f32 %v1314, %v1362
      %v1387 = vsub.f32 %v1316, %v1364
      %v1388 = vsub.f32 %v1318, %v1366
      %v1389 = vsub.f32 %v1320, %v1368
      %v1390 = vsub.f32 %v1322, %v1370
      %v1391 = vsub.f32 %v1324, %v1372
      %v1392 = vsub.f32 %v1326, %v1374
      %v1393 = vsub.f32 %v1328, %v1376
      %v1394 = vsub.f32 %v1330, %v1378
      %v1395 = vand.u32 2147483647, %v1379
      %v1396 = vand.u32 2147483647, %v1380
      %v1397 = vand.u32 2147483647, %v1381
      %v1398 = vand.u32 2147483647, %v1382
      %v1399 = vand.u32 2147483647, %v1383
      %v1400 = vand.u32 2147483647, %v1384
      %v1401 = vand.u32 2147483647, %v1385
      %v1402 = vand.u32 2147483647, %v1386
      %v1403 = vand.u32 2147483647, %v1387
      %v1404 = vand.u32 2147483647, %v1388
      %v1405 = vand.u32 2147483647, %v1389
      %v1406 = vand.u32 2147483647, %v1390
      %v1407 = vand.u32 2147483647, %v1391
      %v1408 = vand.u32 2147483647, %v1392
      %v1409 = vand.u32 2147483647, %v1393
      %v1410 = vand.u32 2147483647, %v1394
      %v1411 = vld [vmem:[%s2] sm:$0xff]
      %v1412 = vld [vmem:[%s2 + $0x8] sm:$0xff]
      %v1413 = vadd.f32 %v1267, %v1269
      %v1414 = vadd.f32 %v1268, %v1270
      %v1415 = vadd.f32 %v1413, %v1271
      %v1416 = vadd.f32 %v1414, %v1272
      %v1417 = vadd.f32 %v1415, %v1273
      %v1418 = vadd.f32 %v1416, %v1274
      %v1419 = vadd.f32 %v1417, %v1275
      %v1420 = vadd.f32 %v1418, %v1276
      %v1421 = vadd.f32 %v1419, %v1277
      %v1422 = vadd.f32 %v1420, %v1278
      %v1423 = vadd.f32 %v1421, %v1279
      %v1424 = vadd.f32 %v1422, %v1280
      %v1425 = vadd.f32 %v1423, %v1281
      %v1426 = vadd.f32 %v1424, %v1282
      %v1427 = vadd.f32 %v1411, %v1425
      %v1428 = vadd.f32 %v1412, %v1426
      %1429 = vst [vmem:[%s2] sm:$0xff] %v1427
      %1430 = vst [vmem:[%s2 + $0x8] sm:$0xff] %v1428
      %v1431 = vld [vmem:[%s3] sm:$0xff]
      %v1432 = vld [vmem:[%s3 + $0x8] sm:$0xff]
      %v1433 = vadd.f32 %v1011, %v1013
      %v1434 = vadd.f32 %v1012, %v1014
      %v1435 = vadd.f32 %v1433, %v1015
      %v1436 = vadd.f32 %v1434, %v1016
      %v1437 = vadd.f32 %v1435, %v1017
      %v1438 = vadd.f32 %v1436, %v1018
      %v1439 = vadd.f32 %v1437, %v1019
      %v1440 = vadd.f32 %v1438, %v1020
      %v1441 = vadd.f32 %v1439, %v1021
      %v1442 = vadd.f32 %v1440, %v1022
      %v1443 = vadd.f32 %v1441, %v1023
      %v1444 = vadd.f32 %v1442, %v1024
      %v1445 = vadd.f32 %v1443, %v1025
      %v1446 = vadd.f32 %v1444, %v1026
      %v1447 = vadd.f32 %v1431, %v1445
      %v1448 = vadd.f32 %v1432, %v1446
      %1449 = vst [vmem:[%s3] sm:$0xff] %v1447
      %1450 = vst [vmem:[%s3 + $0x8] sm:$0xff] %v1448
      %v1451 = vld [vmem:[%s4] sm:$0xff]
      %v1452 = vld [vmem:[%s4 + $0x8] sm:$0xff]
      %v1453 = vadd.f32 %v1395, %v1397
      %v1454 = vadd.f32 %v1396, %v1398
      %v1455 = vadd.f32 %v1453, %v1399
      %v1456 = vadd.f32 %v1454, %v1400
      %v1457 = vadd.f32 %v1455, %v1401
      %v1458 = vadd.f32 %v1456, %v1402
      %v1459 = vadd.f32 %v1457, %v1403
      %v1460 = vadd.f32 %v1458, %v1404
      %v1461 = vadd.f32 %v1459, %v1405
      %v1462 = vadd.f32 %v1460, %v1406
      %v1463 = vadd.f32 %v1461, %v1407
      %v1464 = vadd.f32 %v1462, %v1408
      %v1465 = vadd.f32 %v1463, %v1409
      %v1466 = vadd.f32 %v1464, %v1410
      %v1467 = vadd.f32 %v1451, %v1465
      %v1468 = vadd.f32 %v1452, %v1466
      %1469 = vst [vmem:[%s4] sm:$0xff] %v1467
      %1470 = vst [vmem:[%s4 + $0x8] sm:$0xff] %v1468
      // Predicated region
      $region33: #{_lambda_.3} parent=27 // pred_check
        %p1471 = pneg %p76
      $region34: #{_lambda_.3} parent=27 // pred_check_branch
        %1473 = sbr.rel (%p1471) target = $region36
      $region35: #{_lambda_.3} parent=27 // pred_region
        _
      $region36: #{_lambda_.3} parent=27 // pred_fallthru
        _
      // Predicated region
      $region37: #{_lambda_.3} parent=27 // pred_check
        %p1474 = pneg %p97
      $region38: #{_lambda_.3} parent=27 // pred_check_branch
        %1476 = sbr.rel (%p1474) target = $region40
      $region39: #{_lambda_.3} parent=27 // pred_region
        _
      $region40: #{_lambda_.3} parent=27 // pred_fallthru
        _
      // Predicated region
      $region41: #{_lambda_.3} parent=27 // pred_check
        %p1477 = pneg %p118
      $region42: #{_lambda_.3} parent=27 // pred_check_branch
        %1479 = sbr.rel (%p1477) target = $region44
      $region43: #{_lambda_.3} parent=27 // pred_region
        _
      $region44: #{_lambda_.3} parent=27 // pred_fallthru
        _
      // Predicated region
      $region45: #{_lambda_.3} parent=27 // pred_check
        %p1480 = pneg %p76
      $region46: #{_lambda_.3} parent=27 // pred_check_branch
        %1482 = sbr.rel (%p1480) target = $region48
      $region47: #{_lambda_.3} parent=27 // pred_region
        _
      $region48: #{_lambda_.3} parent=27 // pred_fallthru
        _
      // Predicated region
      $region49: #{_lambda_.3} parent=27 // pred_check
        %p1483 = pneg %p97
      $region50: #{_lambda_.3} parent=27 // pred_check_branch
        %1485 = sbr.rel (%p1483) target = $region52
      $region51: #{_lambda_.3} parent=27 // pred_region
        _
      $region52: #{_lambda_.3} parent=27 // pred_fallthru
        _
      // Predicated region
      $region53: #{_lambda_.3} parent=27 // pred_check
        %p1486 = pneg %p118
      $region54: #{_lambda_.3} parent=27 // pred_check_branch
        %1488 = sbr.rel (%p1486) target = $region56
      $region55: #{_lambda_.3} parent=27 // pred_region
        _
      $region56: #{_lambda_.3} parent=27 // pred_fallthru
        _
    $region28: #{_lambda_.3} parent=5 // pred_fallthru
      _
    %p1489 = scmp.le.s32.totalorder 2, %s11
    // Predicated region
    $region57: #{_lambda_.3} parent=5 // pred_check
      %p1490 = pneg %p1489
    $region58: #{_lambda_.3} parent=5 // pred_check_branch
      %1492 = sbr.rel (%p1490) target = $region60
    $region59: #{_lambda_.3} parent=5 // pred_region
      %s1493 = ssub.s32 %s11, 2
    $region60: #{_lambda_.3} parent=5 // pred_fallthru
      _
  $region6: #{_lambda_.3} parent=0 // loop_footer
    %s15 = sadd.s32 1, %s11
  $region7: #{_lambda_.3} parent=0 // loop_footer_branch
    %10 = sbr.rel target = $region3
  $region8: #{_lambda_.3} parent=0 // loop_exit
    _

// kernel: _lambda_.5
$region0: #{_lambda_.5}
  #allocation0 [shape = 'u32[]', space=smem, size = 0x4, offset = 0x4, fixed_abs, tag = 'smem constant byte address 0x4 - core index']
  #allocation1 [shape = 'u32[144,128]{1,0:T(1,128)}', space=vmem, size = 0x12000, scoped, tag = 'internal scratch']
  %s0 = inlined_call_operand.vmem [shape: bf16[640,128], index: 0, kind: input, shape index: {}]
  %s1 = inlined_call_operand.vmem [shape: bf16[128,256], index: 1, kind: input, shape index: {}]
  %s2 = inlined_call_operand.vmem [shape: f32[8,128], index: 2, kind: output, shape index: {0}]
  %s3 = inlined_call_operand.vmem [shape: f32[8,128], index: 3, kind: output, shape index: {1}]
  %s4 = inlined_call_operand.vmem [shape: f32[8,128], index: 4, kind: output, shape index: {2}]
  %5 = xla_tuple %s2, %s3, %s4
  %s6 = sld [smem:[#allocation0]]
  $region61: #{_lambda_.5} parent=0
    _
  %s8 = ssub.s32 1, %s6
  %s9 = scalar_select 0, %s8, %s6
  loop: start=0, step=1, limit=7
  $region2: #{_lambda_.5} parent=0 // loop_pre_header
    _
  $region3: #{_lambda_.5} parent=0 // loop_header
    %s11 = sphi 0, %s15
    %p12 = scmp.ge.s32.totalorder %s11, 7
    %s21 = sphi 0, %s23
    %s24 = sphi 0, %s21
    %s25 = sphi 0, %s24
    %s41 = sphi 0, %s25
    %s45 = sphi 0, %s45
    %s47 = sphi 0, %s45
    %s48 = sphi 0, %s47
    %s62 = sphi 0, %s48
    %s66 = sphi 0, %s66
    %s68 = sphi 0, %s66
    %s69 = sphi 0, %s68
    %s83 = sphi 0, %s69
    %s87 = sphi 0, %s87
    %s89 = sphi 0, %s87
    %s90 = sphi 0, %s89
    %s104 = sphi 0, %s90
    %s108 = sphi 0, %s108
    %s110 = sphi 0, %s108
    %s111 = sphi 0, %s110
    %s125 = sphi 0, %s111
  $region4: #{_lambda_.5} parent=0 // loop_header_branch
    %14 = sbr.rel (%p12) target = $region8
  $region5: #{_lambda_.5} parent=0 // loop_body
    %s16 = ssub.s32 %s11, 1
    %s17 = ssub.s32 %s11, 2
    %s18 = sadd.s32 %s11, 1
    %s19 = ssub.s32 %s11, %s18
    %p20 = scmp.eq.s32.totalorder %s19, 0
    %s22 = sadd.s32 %s21, 1
    %s23 = scalar_select %p20, %s21, %s22
    %p26 = pneg %p20
    %p27 = scmp.eq.s32.totalorder %s11, 4
    %p28 = por %p26, %p27
    %p29 = scmp.ne.s32.totalorder %s21, %s24
    %p30 = scmp.eq.s32.totalorder %s11, 0
    %p31 = por %p29, %p30
    %p32 = scmp.ne.s32.totalorder %s21, %s24
    %p33 = scmp.eq.s32.totalorder %s16, 4
    %p34 = por %p32, %p33
    %p35 = scmp.ne.s32.totalorder %s24, %s25
    %p36 = scmp.eq.s32.totalorder %s16, 0
    %p37 = por %p35, %p36
    %p38 = scmp.ne.s32.totalorder %s24, %s25
    %p39 = scmp.eq.s32.totalorder %s17, 4
    %p40 = por %p38, %p39
    %p42 = scmp.ne.s32.totalorder %s25, %s41
    %p43 = scmp.eq.s32.totalorder %s17, 0
    %p44 = por %p42, %p43
    %s46 = sadd.s32 %s45, 1
    %p49 = scmp.eq.s32.totalorder %s11, 4
    %p50 = scmp.ne.s32.totalorder %s45, %s47
    %p51 = scmp.eq.s32.totalorder %s11, 0
    %p52 = por %p50, %p51
    %p53 = scmp.ne.s32.totalorder %s45, %s47
    %p54 = scmp.eq.s32.totalorder %s16, 4
    %p55 = por %p53, %p54
    %p56 = scmp.ne.s32.totalorder %s47, %s48
    %p57 = scmp.eq.s32.totalorder %s16, 0
    %p58 = por %p56, %p57
    %p59 = scmp.ne.s32.totalorder %s47, %s48
    %p60 = scmp.eq.s32.totalorder %s17, 4
    %p61 = por %p59, %p60
    %p63 = scmp.ne.s32.totalorder %s48, %s62
    %p64 = scmp.eq.s32.totalorder %s17, 0
    %p65 = por %p63, %p64
    %s67 = sadd.s32 %s66, 1
    %p70 = scmp.eq.s32.totalorder %s11, 4
    %p71 = scmp.ne.s32.totalorder %s66, %s68
    %p72 = scmp.eq.s32.totalorder %s11, 0
    %p73 = por %p71, %p72
    %p74 = scmp.ne.s32.totalorder %s66, %s68
    %p75 = scmp.eq.s32.totalorder %s16, 4
    %p76 = por %p74, %p75
    %p77 = scmp.ne.s32.totalorder %s68, %s69
    %p78 = scmp.eq.s32.totalorder %s16, 0
    %p79 = por %p77, %p78
    %p80 = scmp.ne.s32.totalorder %s68, %s69
    %p81 = scmp.eq.s32.totalorder %s17, 4
    %p82 = por %p80, %p81
    %p84 = scmp.ne.s32.totalorder %s69, %s83
    %p85 = scmp.eq.s32.totalorder %s17, 0
    %p86 = por %p84, %p85
    %s88 = sadd.s32 %s87, 1
    %p91 = scmp.eq.s32.totalorder %s11, 4
    %p92 = scmp.ne.s32.totalorder %s87, %s89
    %p93 = scmp.eq.s32.totalorder %s11, 0
    %p94 = por %p92, %p93
    %p95 = scmp.ne.s32.totalorder %s87, %s89
    %p96 = scmp.eq.s32.totalorder %s16, 4
    %p97 = por %p95, %p96
    %p98 = scmp.ne.s32.totalorder %s89, %s90
    %p99 = scmp.eq.s32.totalorder %s16, 0
    %p100 = por %p98, %p99
    %p101 = scmp.ne.s32.totalorder %s89, %s90
    %p102 = scmp.eq.s32.totalorder %s17, 4
    %p103 = por %p101, %p102
    %p105 = scmp.ne.s32.totalorder %s90, %s104
    %p106 = scmp.eq.s32.totalorder %s17, 0
    %p107 = por %p105, %p106
    %s109 = sadd.s32 %s108, 1
    %p112 = scmp.eq.s32.totalorder %s11, 4
    %p113 = scmp.ne.s32.totalorder %s108, %s110
    %p114 = scmp.eq.s32.totalorder %s11, 0
    %p115 = por %p113, %p114
    %p116 = scmp.ne.s32.totalorder %s108, %s110
    %p117 = scmp.eq.s32.totalorder %s16, 4
    %p118 = por %p116, %p117
    %p119 = scmp.ne.s32.totalorder %s110, %s111
    %p120 = scmp.eq.s32.totalorder %s16, 0
    %p121 = por %p119, %p120
    %p122 = scmp.ne.s32.totalorder %s110, %s111
    %p123 = scmp.eq.s32.totalorder %s17, 4
    %p124 = por %p122, %p123
    %p126 = scmp.ne.s32.totalorder %s111, %s125
    %p127 = scmp.eq.s32.totalorder %s17, 0
    %p128 = por %p126, %p127
    %p129 = scmp.le.s32.totalorder 1, %s11
    %p130 = scmp.lt.s32.totalorder %s11, 6
    %p131 = pnand %p129, %p130
    %p132 = pneg %p131
    // Predicated region
    $region9: #{_lambda_.5} parent=5 // pred_check
      _
    $region10: #{_lambda_.5} parent=5 // pred_check_branch
      %134 = sbr.rel (%p131) target = $region12
    $region11: #{_lambda_.5} parent=5 // pred_region
      %s135 = ssub.s32 %s11, 1
      // Predicated region
      $region13: #{_lambda_.5} parent=11 // pred_check
        %p136 = pneg %p58
      $region14: #{_lambda_.5} parent=11 // pred_check_branch
        %138 = sbr.rel (%p136) target = $region16
      $region15: #{_lambda_.5} parent=11 // pred_region
        _
      $region16: #{_lambda_.5} parent=11 // pred_fallthru
        _
    $region12: #{_lambda_.5} parent=5 // pred_fallthru
      _
    %p139 = scmp.lt.s32.totalorder %s11, 5
    // Predicated region
    $region17: #{_lambda_.5} parent=5 // pred_check
      %p140 = pneg %p139
    $region18: #{_lambda_.5} parent=5 // pred_check_branch
      %142 = sbr.rel (%p140) target = $region20
    $region19: #{_lambda_.5} parent=5 // pred_region
      // Predicated region
      $region21: #{_lambda_.5} parent=19 // pred_check
        %p143 = pneg %p31
      $region22: #{_lambda_.5} parent=19 // pred_check_branch
        %145 = sbr.rel (%p143) target = $region24
      $region23: #{_lambda_.5} parent=19 // pred_region
        %s146 = smul.u32 16, %s11
        %p147 = scmp.lt.s32.totalorder %s146, 79
        %s148 = scalar_select %p147, %s146, 79
        %s149 = smul.addr %s148, 4
        %s150 = scalar_lea.vmem %s0, %s149
        %s151 = smul.u32 16, %s11
      $region24: #{_lambda_.5} parent=19 // pred_fallthru
        _
    $region20: #{_lambda_.5} parent=5 // pred_fallthru
      _
    %p152 = scmp.le.s32.totalorder 1, %s11
    %p153 = scmp.lt.s32.totalorder %s11, 6
    %p154 = pnand %p152, %p153
    %p155 = pneg %p154
    // Predicated region
    $region25: #{_lambda_.5} parent=5 // pred_check
      _
    $region26: #{_lambda_.5} parent=5 // pred_check_branch
      %157 = sbr.rel (%p154) target = $region28
    $region27: #{_lambda_.5} parent=5 // pred_region
      %s158 = ssub.s32 %s11, 1
      %s159 = smul.u32 16, %s16
      %p160 = scmp.lt.s32.totalorder %s159, 79
      %s161 = scalar_select %p160, %s159, 79
      %s162 = smul.addr %s161, 4
      %s163 = scalar_lea.vmem %s0, %s162
      %p164 = pneg %p37
      %p165 = pneg %p34
      %p166 = pneg %p58
      %p167 = pneg %p55
      %p168 = pneg %p79
      %p169 = pneg %p76
      %p170 = pneg %p100
      %p171 = pneg %p97
      %p172 = pneg %p121
      %p173 = pneg %p118
      %s174 = smul.u32 16, %s16
      %p175 = scmp.lt.s32.totalorder %s174, 79
      %s176 = scalar_select %p175, %s174, 79
      %s177 = smul.addr %s176, 4
      %s178 = scalar_lea.vmem %s0, %s177
      %s179 = smul.u32 16, %s16
      %p181 = scmp.eq.s32.totalorder %s16, 0
      // Predicated region
      $region29: #{_lambda_.5} parent=27 // pred_check
        %p182 = pneg %p181
      $region30: #{_lambda_.5} parent=27 // pred_check_branch
        %184 = sbr.rel (%p182) target = $region32
      $region31: #{_lambda_.5} parent=27 // pred_region
        %185 = vst [vmem:[%s2] sm:$0xff] 0.0
        %186 = vst [vmem:[%s3] sm:$0xff] 0.0
        %187 = vst [vmem:[%s4] sm:$0xff] 0.0
      $region32: #{_lambda_.5} parent=27 // pred_fallthru
        _
      %v188 = vld [vmem:[%s178] sm:$0xf]
      %v189 = vld [vmem:[%s178 + $0x4] sm:$0xf]
      %v190 = vld [vmem:[%s178 + $0x8] sm:$0xf]
      %v191 = vld [vmem:[%s178 + $0xc] sm:$0xf]
      %v192 = vld [vmem:[%s178 + $0x10] sm:$0xf]
      %v193 = vld [vmem:[%s178 + $0x14] sm:$0xf]
      %v194 = vld [vmem:[%s178 + $0x18] sm:$0xf]
      %v195 = vld [vmem:[%s178 + $0x1c] sm:$0xf]
      %v196 = vld [vmem:[%s178 + $0x20] sm:$0xf]
      %v197 = vld [vmem:[%s178 + $0x24] sm:$0xf]
      %v198 = vld [vmem:[%s178 + $0x28] sm:$0xf]
      %v199 = vld [vmem:[%s178 + $0x2c] sm:$0xf]
      %v200 = vld [vmem:[%s178 + $0x30] sm:$0xf]
      %v201 = vld [vmem:[%s178 + $0x34] sm:$0xf]
      %v202 = vld [vmem:[%s178 + $0x38] sm:$0xf]
      %v203 = vld [vmem:[%s178 + $0x3c] sm:$0xf]
      %v204 = vld [vmem:[%s1] sm:$0xff]
      %v205 = vld [vmem:[%s1 + $0x8] sm:$0xff]
      %v206 = vld [vmem:[%s1 + $0x10] sm:$0xff]
      %v207 = vld [vmem:[%s1 + $0x18] sm:$0xff]
      %v208 = vld [vmem:[%s1 + $0x20] sm:$0xff]
      %v209 = vld [vmem:[%s1 + $0x28] sm:$0xff]
      %v210 = vld [vmem:[%s1 + $0x30] sm:$0xff]
      %v211 = vld [vmem:[%s1 + $0x38] sm:$0xff]
      %v212 = vld [vmem:[%s1 + $0x40] sm:$0xff]
      %v213 = vld [vmem:[%s1 + $0x48] sm:$0xff]
      %v214 = vld [vmem:[%s1 + $0x50] sm:$0xff]
      %v215 = vld [vmem:[%s1 + $0x58] sm:$0xff]
      %v216 = vld [vmem:[%s1 + $0x60] sm:$0xff]
      %v217 = vld [vmem:[%s1 + $0x68] sm:$0xff]
      %v218 = vld [vmem:[%s1 + $0x70] sm:$0xff]
      %v219 = vld [vmem:[%s1 + $0x78] sm:$0xff]
      %v236 = vunpack.c.l.b16 %v188
      %v237 = vunpack.c.l.b16 %v189
      %v238 = vunpack.c.l.b16 %v190
      %v239 = vunpack.c.l.b16 %v191
      %v240 = vunpack.c.l.b16 %v192
      %v241 = vunpack.c.l.b16 %v193
      %v242 = vunpack.c.l.b16 %v194
      %v243 = vunpack.c.l.b16 %v195
      %v244 = vunpack.c.l.b16 %v196
      %v245 = vunpack.c.l.b16 %v197
      %v246 = vunpack.c.l.b16 %v198
      %v247 = vunpack.c.l.b16 %v199
      %v248 = vunpack.c.l.b16 %v200
      %v249 = vunpack.c.l.b16 %v201
      %v250 = vunpack.c.l.b16 %v202
      %v251 = vunpack.c.l.b16 %v203
      %v252 = vpack.c.b16 %v237, %v236
      %v253 = vpack.c.b16 %v239, %v238
      %v254 = vpack.c.b16 %v241, %v240
      %v255 = vpack.c.b16 %v243, %v242
      %v256 = vpack.c.b16 %v245, %v244
      %v257 = vpack.c.b16 %v247, %v246
      %v258 = vpack.c.b16 %v249, %v248
      %v259 = vpack.c.b16 %v251, %v250
      %v284 = vunpack.c.l.b16 %v204
      %v285 = vunpack.c.h.b16 %v204
      %v286 = vunpack.c.l.b16 %v205
      %v287 = vunpack.c.h.b16 %v205
      %v288 = vunpack.c.l.b16 %v206
      %v289 = vunpack.c.h.b16 %v206
      %v290 = vunpack.c.l.b16 %v207
      %v291 = vunpack.c.h.b16 %v207
      %v292 = vunpack.c.l.b16 %v208
      %v293 = vunpack.c.h.b16 %v208
      %v294 = vunpack.c.l.b16 %v209
      %v295 = vunpack.c.h.b16 %v209
      %v296 = vunpack.c.l.b16 %v210
      %v297 = vunpack.c.h.b16 %v210
      %v298 = vunpack.c.l.b16 %v211
      %v299 = vunpack.c.h.b16 %v211
      %v300 = vunpack.c.l.b16 %v212
      %v301 = vunpack.c.h.b16 %v212
      %v302 = vunpack.c.l.b16 %v213
      %v303 = vunpack.c.h.b16 %v213
      %v304 = vunpack.c.l.b16 %v214
      %v305 = vunpack.c.h.b16 %v214
      %v306 = vunpack.c.l.b16 %v215
      %v307 = vunpack.c.h.b16 %v215
      %v308 = vunpack.c.l.b16 %v216
      %v309 = vunpack.c.h.b16 %v216
      %v310 = vunpack.c.l.b16 %v217
      %v311 = vunpack.c.h.b16 %v217
      %v312 = vunpack.c.l.b16 %v218
      %v313 = vunpack.c.h.b16 %v218
      %v314 = vunpack.c.l.b16 %v219
      %v315 = vunpack.c.h.b16 %v219
      %v316 = vpack.c.b16 %v286, %v284
      %v317 = vpack.c.b16 %v287, %v285
      %v318 = vpack.c.b16 %v290, %v288
      %v319 = vpack.c.b16 %v291, %v289
      %v320 = vpack.c.b16 %v294, %v292
      %v321 = vpack.c.b16 %v295, %v293
      %v322 = vpack.c.b16 %v298, %v296
      %v323 = vpack.c.b16 %v299, %v297
      %v324 = vpack.c.b16 %v302, %v300
      %v325 = vpack.c.b16 %v303, %v301
      %v326 = vpack.c.b16 %v306, %v304
      %v327 = vpack.c.b16 %v307, %v305
      %v328 = vpack.c.b16 %v310, %v308
      %v329 = vpack.c.b16 %v311, %v309
      %v330 = vpack.c.b16 %v314, %v312
      %v331 = vpack.c.b16 %v315, %v313
      %348 = vmatprep.subr.bf16.mxu0 %v331
      %349 = vmatpush1.bf16.msra.mxu0 %v330
      %350 = vmatprep.subr.bf16.mxu0 %v329
      %351 = vmatpush1.bf16.msra.mxu0 %v328
      %352 = vmatprep.subr.bf16.mxu0 %v327
      %353 = vmatpush1.bf16.msra.mxu0 %v326
      %354 = vmatprep.subr.bf16.mxu0 %v325
      %355 = vmatpush1.bf16.msra.mxu0 %v324
      %356 = vmatprep.subr.bf16.mxu0 %v323
      %357 = vmatpush1.bf16.msra.mxu0 %v322
      %358 = vmatprep.subr.bf16.mxu0 %v321
      %359 = vmatpush1.bf16.msra.mxu0 %v320
      %360 = vmatprep.subr.bf16.mxu0 %v319
      %361 = vmatpush1.bf16.msra.mxu0 %v318
      %362 = vmatprep.subr.bf16.mxu0 %v317
      %363 = vmatpush1.bf16.msra.mxu0 %v316
      %364 = vmatprep.subr.bf16.mxu0 0
      %365 = vmatpush2.bf16.msra.mxu0 0
      %366 = vmatprep.subr.bf16.mxu0 0
      %367 = vmatpush2.bf16.msra.mxu0 0
      %368 = vmatprep.subr.bf16.mxu0 0
      %369 = vmatpush2.bf16.msra.mxu0 0
      %370 = vmatprep.subr.bf16.mxu0 0
      %371 = vmatpush2.bf16.msra.mxu0 0
      %372 = vmatprep.subr.bf16.mxu0 0
      %373 = vmatpush2.bf16.msra.mxu0 0
      %374 = vmatprep.subr.bf16.mxu0 0
      %375 = vmatpush2.bf16.msra.mxu0 0
      %376 = vmatprep.subr.bf16.mxu0 0
      %377 = vmatpush2.bf16.msra.mxu0 0
      %378 = vmatprep.subr.bf16.mxu0 0
      %379 = vmatpush2.bf16.msra.mxu0 0
      %380 = vmatprep.mubr.bf16.mxu0 0
      %381 = vmatmul.mubr.bf16.gmra.mxu0 %v252
      %v382 = vpop.f32.mrf.mxu0
      %v383 = vadd.f32 0.0, %v382
      %v384 = vpop.f32.mrf.mxu0
      %v385 = vadd.f32 0.0, %v384
      %v386 = vpop.f32.mrf.mxu0
      %v387 = vadd.f32 0.0, %v386
      %v388 = vpop.f32.mrf.mxu0
      %v389 = vadd.f32 0.0, %v388
      %390 = vmatprep.mubr.bf16.mxu0 0
      %391 = vmatmul.mubr.bf16.gmra.mxu0 %v253
      %v392 = vpop.f32.mrf.mxu0
      %v393 = vadd.f32 0.0, %v392
      %v394 = vpop.f32.mrf.mxu0
      %v395 = vadd.f32 0.0, %v394
      %v396 = vpop.f32.mrf.mxu0
      %v397 = vadd.f32 0.0, %v396
      %v398 = vpop.f32.mrf.mxu0
      %v399 = vadd.f32 0.0, %v398
      %400 = vmatprep.mubr.bf16.mxu0 0
      %401 = vmatmul.mubr.bf16.gmra.mxu0 %v254
      %v402 = vpop.f32.mrf.mxu0
      %v403 = vadd.f32 0.0, %v402
      %v404 = vpop.f32.mrf.mxu0
      %v405 = vadd.f32 0.0, %v404
      %v406 = vpop.f32.mrf.mxu0
      %v407 = vadd.f32 0.0, %v406
      %v408 = vpop.f32.mrf.mxu0
      %v409 = vadd.f32 0.0, %v408
      %410 = vmatprep.mubr.bf16.mxu0 0
      %411 = vmatmul.mubr.bf16.gmra.mxu0 %v255
      %v412 = vpop.f32.mrf.mxu0
      %v413 = vadd.f32 0.0, %v412
      %v414 = vpop.f32.mrf.mxu0
      %v415 = vadd.f32 0.0, %v414
      %v416 = vpop.f32.mrf.mxu0
      %v417 = vadd.f32 0.0, %v416
      %v418 = vpop.f32.mrf.mxu0
      %v419 = vadd.f32 0.0, %v418
      %420 = vmatprep.mubr.bf16.mxu0 0
      %421 = vmatmul.mubr.bf16.gmra.mxu0 %v256
      %v422 = vpop.f32.mrf.mxu0
      %v423 = vadd.f32 0.0, %v422
      %v424 = vpop.f32.mrf.mxu0
      %v425 = vadd.f32 0.0, %v424
      %v426 = vpop.f32.mrf.mxu0
      %v427 = vadd.f32 0.0, %v426
      %v428 = vpop.f32.mrf.mxu0
      %v429 = vadd.f32 0.0, %v428
      %430 = vmatprep.mubr.bf16.mxu0 0
      %431 = vmatmul.mubr.bf16.gmra.mxu0 %v257
      %v432 = vpop.f32.mrf.mxu0
      %v433 = vadd.f32 0.0, %v432
      %v434 = vpop.f32.mrf.mxu0
      %v435 = vadd.f32 0.0, %v434
      %v436 = vpop.f32.mrf.mxu0
      %v437 = vadd.f32 0.0, %v436
      %v438 = vpop.f32.mrf.mxu0
      %v439 = vadd.f32 0.0, %v438
      %440 = vmatprep.mubr.bf16.mxu0 0
      %441 = vmatmul.mubr.bf16.gmra.mxu0 %v258
      %v442 = vpop.f32.mrf.mxu0
      %v443 = vadd.f32 0.0, %v442
      %v444 = vpop.f32.mrf.mxu0
      %v445 = vadd.f32 0.0, %v444
      %v446 = vpop.f32.mrf.mxu0
      %v447 = vadd.f32 0.0, %v446
      %v448 = vpop.f32.mrf.mxu0
      %v449 = vadd.f32 0.0, %v448
      %450 = vmatprep.mubr.bf16.mxu0 0
      %451 = vmatmul.mubr.bf16.gmra.mxu0 %v259
      %v452 = vpop.f32.mrf.mxu0
      %v453 = vadd.f32 0.0, %v452
      %v454 = vpop.f32.mrf.mxu0
      %v455 = vadd.f32 0.0, %v454
      %v456 = vpop.f32.mrf.mxu0
      %v457 = vadd.f32 0.0, %v456
      %v458 = vpop.f32.mrf.mxu0
      %v459 = vadd.f32 0.0, %v458
      %460 = vdwg.mxu0
      %v461 = vmul.f32 %v383, %v383
      %v462 = vmul.f32 %v387, %v387
      %v463 = vmul.f32 %v393, %v393
      %v464 = vmul.f32 %v397, %v397
      %v465 = vmul.f32 %v403, %v403
      %v466 = vmul.f32 %v407, %v407
      %v467 = vmul.f32 %v413, %v413
      %v468 = vmul.f32 %v417, %v417
      %v469 = vmul.f32 %v423, %v423
      %v470 = vmul.f32 %v427, %v427
      %v471 = vmul.f32 %v433, %v433
      %v472 = vmul.f32 %v437, %v437
      %v473 = vmul.f32 %v443, %v443
      %v474 = vmul.f32 %v447, %v447
      %v475 = vmul.f32 %v453, %v453
      %v476 = vmul.f32 %v457, %v457
      %v477 = vmul.f32 %v385, %v385
      %v478 = vmul.f32 %v389, %v389
      %v479 = vmul.f32 %v395, %v395
      %v480 = vmul.f32 %v399, %v399
      %v481 = vmul.f32 %v405, %v405
      %v482 = vmul.f32 %v409, %v409
      %v483 = vmul.f32 %v415, %v415
      %v484 = vmul.f32 %v419, %v419
      %v485 = vmul.f32 %v425, %v425
      %v486 = vmul.f32 %v429, %v429
      %v487 = vmul.f32 %v435, %v435
      %v488 = vmul.f32 %v439, %v439
      %v489 = vmul.f32 %v445, %v445
      %v490 = vmul.f32 %v449, %v449
      %v491 = vmul.f32 %v455, %v455
      %v492 = vmul.f32 %v459, %v459
      %v493 = vadd.f32 %v461, %v477
      %v494 = vadd.f32 %v462, %v478
      %v495 = vadd.f32 %v463, %v479
      %v496 = vadd.f32 %v464, %v480
      %v497 = vadd.f32 %v465, %v481
      %v498 = vadd.f32 %v466, %v482
      %v499 = vadd.f32 %v467, %v483
      %v500 = vadd.f32 %v468, %v484
      %v501 = vadd.f32 %v469, %v485
      %v502 = vadd.f32 %v470, %v486
      %v503 = vadd.f32 %v471, %v487
      %v504 = vadd.f32 %v472, %v488
      %v505 = vadd.f32 %v473, %v489
      %v506 = vadd.f32 %v474, %v490
      %v507 = vadd.f32 %v475, %v491
      %v508 = vadd.f32 %v476, %v492
      %v509 = vmax.f32 %v493, 1e-07
      %v510 = vmax.f32 %v494, 1e-07
      %v511 = vmax.f32 %v495, 1e-07
      %v512 = vmax.f32 %v496, 1e-07
      %v513 = vmax.f32 %v497, 1e-07
      %v514 = vmax.f32 %v498, 1e-07
      %v515 = vmax.f32 %v499, 1e-07
      %v516 = vmax.f32 %v500, 1e-07
      %v517 = vmax.f32 %v501, 1e-07
      %v518 = vmax.f32 %v502, 1e-07
      %v519 = vmax.f32 %v503, 1e-07
      %v520 = vmax.f32 %v504, 1e-07
      %v521 = vmax.f32 %v505, 1e-07
      %v522 = vmax.f32 %v506, 1e-07
      %v523 = vmax.f32 %v507, 1e-07
      %v524 = vmax.f32 %v508, 1e-07
      %v525 = vrsqrt.pop %v509
      %v526 = vmul.f32 %v509, %v525
      %vm527 = vcmp.eq.f32.partialorder %v509, inf
      %v528 = vsel %vm527, %v509, %v526
      %vm529 = vcmp.eq.f32.partialorder %v509, 0.0
      %v530 = vand.u32 %v509, 2147483648
      %v531 = vsel %vm529, %v530, %v528
      %v532 = vrsqrt.pop %v510
      %v533 = vmul.f32 %v510, %v532
      %vm534 = vcmp.eq.f32.partialorder %v510, inf
      %v535 = vsel %vm534, %v510, %v533
      %vm536 = vcmp.eq.f32.partialorder %v510, 0.0
      %v537 = vand.u32 %v510, 2147483648
      %v538 = vsel %vm536, %v537, %v535
      %v539 = vrsqrt.pop %v511
      %v540 = vmul.f32 %v511, %v539
      %vm541 = vcmp.eq.f32.partialorder %v511, inf
      %v542 = vsel %vm541, %v511, %v540
      %vm543 = vcmp.eq.f32.partialorder %v511, 0.0
      %v544 = vand.u32 %v511, 2147483648
      %v545 = vsel %vm543, %v544, %v542
      %v546 = vrsqrt.pop %v512
      %v547 = vmul.f32 %v512, %v546
      %vm548 = vcmp.eq.f32.partialorder %v512, inf
      %v549 = vsel %vm548, %v512, %v547
      %vm550 = vcmp.eq.f32.partialorder %v512, 0.0
      %v551 = vand.u32 %v512, 2147483648
      %v552 = vsel %vm550, %v551, %v549
      %v553 = vrsqrt.pop %v513
      %v554 = vmul.f32 %v513, %v553
      %vm555 = vcmp.eq.f32.partialorder %v513, inf
      %v556 = vsel %vm555, %v513, %v554
      %vm557 = vcmp.eq.f32.partialorder %v513, 0.0
      %v558 = vand.u32 %v513, 2147483648
      %v559 = vsel %vm557, %v558, %v556
      %v560 = vrsqrt.pop %v514
      %v561 = vmul.f32 %v514, %v560
      %vm562 = vcmp.eq.f32.partialorder %v514, inf
      %v563 = vsel %vm562, %v514, %v561
      %vm564 = vcmp.eq.f32.partialorder %v514, 0.0
      %v565 = vand.u32 %v514, 2147483648
      %v566 = vsel %vm564, %v565, %v563
      %v567 = vrsqrt.pop %v515
      %v568 = vmul.f32 %v515, %v567
      %vm569 = vcmp.eq.f32.partialorder %v515, inf
      %v570 = vsel %vm569, %v515, %v568
      %vm571 = vcmp.eq.f32.partialorder %v515, 0.0
      %v572 = vand.u32 %v515, 2147483648
      %v573 = vsel %vm571, %v572, %v570
      %v574 = vrsqrt.pop %v516
      %v575 = vmul.f32 %v516, %v574
      %vm576 = vcmp.eq.f32.partialorder %v516, inf
      %v577 = vsel %vm576, %v516, %v575
      %vm578 = vcmp.eq.f32.partialorder %v516, 0.0
      %v579 = vand.u32 %v516, 2147483648
      %v580 = vsel %vm578, %v579, %v577
      %v581 = vrsqrt.pop %v517
      %v582 = vmul.f32 %v517, %v581
      %vm583 = vcmp.eq.f32.partialorder %v517, inf
      %v584 = vsel %vm583, %v517, %v582
      %vm585 = vcmp.eq.f32.partialorder %v517, 0.0
      %v586 = vand.u32 %v517, 2147483648
      %v587 = vsel %vm585, %v586, %v584
      %v588 = vrsqrt.pop %v518
      %v589 = vmul.f32 %v518, %v588
      %vm590 = vcmp.eq.f32.partialorder %v518, inf
      %v591 = vsel %vm590, %v518, %v589
      %vm592 = vcmp.eq.f32.partialorder %v518, 0.0
      %v593 = vand.u32 %v518, 2147483648
      %v594 = vsel %vm592, %v593, %v591
      %v595 = vrsqrt.pop %v519
      %v596 = vmul.f32 %v519, %v595
      %vm597 = vcmp.eq.f32.partialorder %v519, inf
      %v598 = vsel %vm597, %v519, %v596
      %vm599 = vcmp.eq.f32.partialorder %v519, 0.0
      %v600 = vand.u32 %v519, 2147483648
      %v601 = vsel %vm599, %v600, %v598
      %v602 = vrsqrt.pop %v520
      %v603 = vmul.f32 %v520, %v602
      %vm604 = vcmp.eq.f32.partialorder %v520, inf
      %v605 = vsel %vm604, %v520, %v603
      %vm606 = vcmp.eq.f32.partialorder %v520, 0.0
      %v607 = vand.u32 %v520, 2147483648
      %v608 = vsel %vm606, %v607, %v605
      %v609 = vrsqrt.pop %v521
      %v610 = vmul.f32 %v521, %v609
      %vm611 = vcmp.eq.f32.partialorder %v521, inf
      %v612 = vsel %vm611, %v521, %v610
      %vm613 = vcmp.eq.f32.partialorder %v521, 0.0
      %v614 = vand.u32 %v521, 2147483648
      %v615 = vsel %vm613, %v614, %v612
      %v616 = vrsqrt.pop %v522
      %v617 = vmul.f32 %v522, %v616
      %vm618 = vcmp.eq.f32.partialorder %v522, inf
      %v619 = vsel %vm618, %v522, %v617
      %vm620 = vcmp.eq.f32.partialorder %v522, 0.0
      %v621 = vand.u32 %v522, 2147483648
      %v622 = vsel %vm620, %v621, %v619
      %v623 = vrsqrt.pop %v523
      %v624 = vmul.f32 %v523, %v623
      %vm625 = vcmp.eq.f32.partialorder %v523, inf
      %v626 = vsel %vm625, %v523, %v624
      %vm627 = vcmp.eq.f32.partialorder %v523, 0.0
      %v628 = vand.u32 %v523, 2147483648
      %v629 = vsel %vm627, %v628, %v626
      %v630 = vrsqrt.pop %v524
      %v631 = vmul.f32 %v524, %v630
      %vm632 = vcmp.eq.f32.partialorder %v524, inf
      %v633 = vsel %vm632, %v524, %v631
      %vm634 = vcmp.eq.f32.partialorder %v524, 0.0
      %v635 = vand.u32 %v524, 2147483648
      %v636 = vsel %vm634, %v635, %v633
      %v637 = vsub.f32 %v587, %v531
      %v638 = vsub.f32 %v594, %v538
      %v639 = vsub.f32 %v601, %v545
      %v640 = vsub.f32 %v608, %v552
      %v641 = vsub.f32 %v615, %v559
      %v642 = vsub.f32 %v622, %v566
      %v643 = vsub.f32 %v629, %v573
      %v644 = vsub.f32 %v636, %v580
      %v645 = vmul.f32 %v637, %v637
      %v646 = vmul.f32 %v638, %v638
      %v647 = vmul.f32 %v639, %v639
      %v648 = vmul.f32 %v640, %v640
      %v649 = vmul.f32 %v641, %v641
      %v650 = vmul.f32 %v642, %v642
      %v651 = vmul.f32 %v643, %v643
      %v652 = vmul.f32 %v644, %v644
      %v653 = vadd.f32 %v587, 1.1920929e-07
      %v654 = vadd.f32 %v594, 1.1920929e-07
      %v655 = vadd.f32 %v601, 1.1920929e-07
      %v656 = vadd.f32 %v608, 1.1920929e-07
      %v657 = vadd.f32 %v615, 1.1920929e-07
      %v658 = vadd.f32 %v622, 1.1920929e-07
      %v659 = vadd.f32 %v629, 1.1920929e-07
      %v660 = vadd.f32 %v636, 1.1920929e-07
      %v661 = vlog2.pop %v653
      %v662 = vmul.f32 %v661, 0.6931472
      %v663 = vlog2.pop %v654
      %v664 = vmul.f32 %v663, 0.6931472
      %v665 = vlog2.pop %v655
      %v666 = vmul.f32 %v665, 0.6931472
      %v667 = vlog2.pop %v656
      %v668 = vmul.f32 %v667, 0.6931472
      %v669 = vlog2.pop %v657
      %v670 = vmul.f32 %v669, 0.6931472
      %v671 = vlog2.pop %v658
      %v672 = vmul.f32 %v671, 0.6931472
      %v673 = vlog2.pop %v659
      %v674 = vmul.f32 %v673, 0.6931472
      %v675 = vlog2.pop %v660
      %v676 = vmul.f32 %v675, 0.6931472
      %v677 = vadd.f32 %v531, 1.1920929e-07
      %v678 = vadd.f32 %v538, 1.1920929e-07
      %v679 = vadd.f32 %v545, 1.1920929e-07
      %v680 = vadd.f32 %v552, 1.1920929e-07
      %v681 = vadd.f32 %v559, 1.1920929e-07
      %v682 = vadd.f32 %v566, 1.1920929e-07
      %v683 = vadd.f32 %v573, 1.1920929e-07
      %v684 = vadd.f32 %v580, 1.1920929e-07
      %v685 = vlog2.pop %v677
      %v686 = vmul.f32 %v685, 0.6931472
      %v687 = vlog2.pop %v678
      %v688 = vmul.f32 %v687, 0.6931472
      %v689 = vlog2.pop %v679
      %v690 = vmul.f32 %v689, 0.6931472
      %v691 = vlog2.pop %v680
      %v692 = vmul.f32 %v691, 0.6931472
      %v693 = vlog2.pop %v681
      %v694 = vmul.f32 %v693, 0.6931472
      %v695 = vlog2.pop %v682
      %v696 = vmul.f32 %v695, 0.6931472
      %v697 = vlog2.pop %v683
      %v698 = vmul.f32 %v697, 0.6931472
      %v699 = vlog2.pop %v684
      %v700 = vmul.f32 %v699, 0.6931472
      %v701 = vsub.f32 %v662, %v686
      %v702 = vsub.f32 %v664, %v688
      %v703 = vsub.f32 %v666, %v690
      %v704 = vsub.f32 %v668, %v692
      %v705 = vsub.f32 %v670, %v694
      %v706 = vsub.f32 %v672, %v696
      %v707 = vsub.f32 %v674, %v698
      %v708 = vsub.f32 %v676, %v700
      %v709 = vand.u32 2147483647, %v701
      %v710 = vand.u32 2147483647, %v702
      %v711 = vand.u32 2147483647, %v703
      %v712 = vand.u32 2147483647, %v704
      %v713 = vand.u32 2147483647, %v705
      %v714 = vand.u32 2147483647, %v706
      %v715 = vand.u32 2147483647, %v707
      %v716 = vand.u32 2147483647, %v708
      %v717 = vld [vmem:[%s2] sm:$0xff]
      %v718 = vadd.f32 %v645, %v646
      %v719 = vadd.f32 %v718, %v647
      %v720 = vadd.f32 %v719, %v648
      %v721 = vadd.f32 %v720, %v649
      %v722 = vadd.f32 %v721, %v650
      %v723 = vadd.f32 %v722, %v651
      %v724 = vadd.f32 %v723, %v652
      %v725 = vadd.f32 %v717, %v724
      %726 = vst [vmem:[%s2] sm:$0xff] %v725
      %v727 = vld [vmem:[%s3] sm:$0xff]
      %v728 = vadd.f32 %v517, %v518
      %v729 = vadd.f32 %v728, %v519
      %v730 = vadd.f32 %v729, %v520
      %v731 = vadd.f32 %v730, %v521
      %v732 = vadd.f32 %v731, %v522
      %v733 = vadd.f32 %v732, %v523
      %v734 = vadd.f32 %v733, %v524
      %v735 = vadd.f32 %v727, %v734
      %736 = vst [vmem:[%s3] sm:$0xff] %v735
      %v737 = vld [vmem:[%s4] sm:$0xff]
      %v738 = vadd.f32 %v709, %v710
      %v739 = vadd.f32 %v738, %v711
      %v740 = vadd.f32 %v739, %v712
      %v741 = vadd.f32 %v740, %v713
      %v742 = vadd.f32 %v741, %v714
      %v743 = vadd.f32 %v742, %v715
      %v744 = vadd.f32 %v743, %v716
      %v745 = vadd.f32 %v737, %v744
      %746 = vst [vmem:[%s4] sm:$0xff] %v745
      // Predicated region
      $region33: #{_lambda_.5} parent=27 // pred_check
        %p747 = pneg %p76
      $region34: #{_lambda_.5} parent=27 // pred_check_branch
        %749 = sbr.rel (%p747) target = $region36
      $region35: #{_lambda_.5} parent=27 // pred_region
        _
      $region36: #{_lambda_.5} parent=27 // pred_fallthru
        _
      // Predicated region
      $region37: #{_lambda_.5} parent=27 // pred_check
        %p750 = pneg %p97
      $region38: #{_lambda_.5} parent=27 // pred_check_branch
        %752 = sbr.rel (%p750) target = $region40
      $region39: #{_lambda_.5} parent=27 // pred_region
        _
      $region40: #{_lambda_.5} parent=27 // pred_fallthru
        _
      // Predicated region
      $region41: #{_lambda_.5} parent=27 // pred_check
        %p753 = pneg %p118
      $region42: #{_lambda_.5} parent=27 // pred_check_branch
        %755 = sbr.rel (%p753) target = $region44
      $region43: #{_lambda_.5} parent=27 // pred_region
        _
      $region44: #{_lambda_.5} parent=27 // pred_fallthru
        _
      // Predicated region
      $region45: #{_lambda_.5} parent=27 // pred_check
        %p756 = pneg %p76
      $region46: #{_lambda_.5} parent=27 // pred_check_branch
        %758 = sbr.rel (%p756) target = $region48
      $region47: #{_lambda_.5} parent=27 // pred_region
        _
      $region48: #{_lambda_.5} parent=27 // pred_fallthru
        _
      // Predicated region
      $region49: #{_lambda_.5} parent=27 // pred_check
        %p759 = pneg %p97
      $region50: #{_lambda_.5} parent=27 // pred_check_branch
        %761 = sbr.rel (%p759) target = $region52
      $region51: #{_lambda_.5} parent=27 // pred_region
        _
      $region52: #{_lambda_.5} parent=27 // pred_fallthru
        _
      // Predicated region
      $region53: #{_lambda_.5} parent=27 // pred_check
        %p762 = pneg %p118
      $region54: #{_lambda_.5} parent=27 // pred_check_branch
        %764 = sbr.rel (%p762) target = $region56
      $region55: #{_lambda_.5} parent=27 // pred_region
        _
      $region56: #{_lambda_.5} parent=27 // pred_fallthru
        _
    $region28: #{_lambda_.5} parent=5 // pred_fallthru
      _
    %p765 = scmp.le.s32.totalorder 2, %s11
    // Predicated region
    $region57: #{_lambda_.5} parent=5 // pred_check
      %p766 = pneg %p765
    $region58: #{_lambda_.5} parent=5 // pred_check_branch
      %768 = sbr.rel (%p766) target = $region60
    $region59: #{_lambda_.5} parent=5 // pred_region
      %s769 = ssub.s32 %s11, 2
    $region60: #{_lambda_.5} parent=5 // pred_fallthru
      _
  $region6: #{_lambda_.5} parent=0 // loop_footer
    %s15 = sadd.s32 1, %s11
  $region7: #{_lambda_.5} parent=0 // loop_footer_branch
    %10 = sbr.rel target = $region3
  $region8: #{_lambda_.5} parent=0 // loop_exit
    _

</llo_original>
